<compile_context>
chip_gen: v7x
topology: tpu7x:2x2x1
jax: 0.10.0
libtpu: 0.0.40
codegen_flags: <defaults>
</compile_context>

<pallas_src>
import jax
import jax.numpy as jnp
from jax import lax
from jax.experimental import pallas as pl
from jax.experimental.pallas import tpu as pltpu

EPS = 1e-5
LANE = 128
_VMEM_LIMIT = 32 * 1024 * 1024  # safe on v5e/v6e (128 MiB phys) and v7x (64 MiB)


def _round_up(x, m):
    return (x + m - 1) // m * m


def _pad_axis(a, axis, target, value=0.0):
    pad = target - a.shape[axis]
    if pad == 0:
        return a
    cfg = [(0, 0)] * a.ndim
    cfg[axis] = (0, pad)
    return jnp.pad(a, cfg, constant_values=value)


# ---------------- Pallas kernels ----------------

def _matmul_bn_relu_kernel(x_ref, w_ref, scale_ref, bias_ref, o_ref):
    y = jnp.dot(x_ref[...], w_ref[...], preferred_element_type=jnp.float32)
    y = y * scale_ref[...] + bias_ref[...]
    o_ref[...] = jnp.maximum(y, 0.0).astype(o_ref.dtype)


def _dw_taps(x_ref, w9, stride, Ho, Wo):
    """Accumulate the 9 depthwise taps from contiguous in-kernel slices."""
    acc = None
    for dy in range(3):
        for dx in range(3):
            k = 3 * dy + dx
            if stride == 1:
                t = x_ref[0, dy:dy + Ho, dx:dx + Wo, :]
            else:
                ph = 2 * (dy % 2) + (dx % 2)
                t = x_ref[ph, dy // 2:dy // 2 + Ho, dx // 2:dx // 2 + Wo, :]
            term = t.astype(jnp.float32) * w9[k:k + 1, :]
            acc = term if acc is None else acc + term
    return acc  # (Ho, Wo, C), f32


def _make_dw_kernel(stride, Ho, Wo):
    """9-tap depthwise MAC + BN + ReLU (used for the avg-pool shortcut)."""

    def kernel(x_ref, w_ref, scale_ref, bias_ref, o_ref):
        w9 = w_ref[...].astype(jnp.float32)            # (9, TC)
        scale = scale_ref[...].astype(jnp.float32)     # (1, TC)
        bias = bias_ref[...].astype(jnp.float32)       # (1, TC)
        acc = _dw_taps(x_ref, w9, stride, Ho, Wo)
        y = jnp.maximum(acc * scale + bias, 0.0)
        o_ref[...] = y.astype(o_ref.dtype)[None]

    return kernel


def _make_dw_matmul_kernel(stride, Ho, Wo, with_residual, mm_dtype):
    """Fused: depthwise3x3 + BN2 + ReLU  ->  1x1 matmul (W3) + BN3
    (+ residual) + ReLU.  One image per grid step; full channel extent."""

    def kernel(x_ref, w9_ref, s2_ref, b2_ref, w3_ref, s3_ref, b3_ref, *rest):
        if with_residual:
            res_ref, o_ref = rest
        else:
            (o_ref,) = rest
        w9 = w9_ref[...].astype(jnp.float32)           # (9, Cm)
        s2 = s2_ref[...].astype(jnp.float32)           # (1, Cm)
        b2 = b2_ref[...].astype(jnp.float32)           # (1, Cm)

        acc = _dw_taps(x_ref, w9, stride, Ho, Wo)      # (Ho, Wo, Cm)
        y2 = jnp.maximum(acc * s2 + b2, 0.0)
        y2 = y2.reshape(Ho * Wo, -1).astype(mm_dtype)  # (Ho*Wo, Cm)

        y3 = jnp.dot(y2, w3_ref[...], preferred_element_type=jnp.float32)
        y3 = y3 * s3_ref[...] + b3_ref[...]            # (Ho*Wo, Co)
        if with_residual:
            y3 = y3 + res_ref[...].reshape(Ho * Wo, -1).astype(jnp.float32)
        y3 = jnp.maximum(y3, 0.0)
        o_ref[...] = y3.reshape(1, Ho, Wo, -1).astype(o_ref.dtype)

    return kernel


# ---------------- kernel wrappers ----------------

def matmul_bn_act(x2d, w, scale, bias, *, mm_dtype=jnp.float32,
                  out_dtype=jnp.float32):
    """relu(x2d @ w * scale + bias); per-channel scale/bias.
    K and N are expected to be multiples of 128 (lane-dense)."""
    M, K = x2d.shape
    _, Np = w.shape

    TM = 512 if M >= 512 else _round_up(M, 8)
    Mp = _round_up(M, TM)
    if Mp != M:
        x2d = jnp.pad(x2d, ((0, Mp - M), (0, 0)))

    x2d = x2d.astype(mm_dtype)
    w = w.astype(mm_dtype)
    scale2 = scale.reshape(1, Np).astype(jnp.float32)
    bias2 = bias.reshape(1, Np).astype(jnp.float32)

    out = pl.pallas_call(
        _matmul_bn_relu_kernel,
        out_shape=jax.ShapeDtypeStruct((Mp, Np), out_dtype),
        grid=(Mp // TM,),
        in_specs=[
            pl.BlockSpec((TM, K), lambda i: (i, 0)),
            pl.BlockSpec((K, Np), lambda i: (0, 0)),
            pl.BlockSpec((1, Np), lambda i: (0, 0)),
            pl.BlockSpec((1, Np), lambda i: (0, 0)),
        ],
        out_specs=pl.BlockSpec((TM, Np), lambda i: (i, 0)),
        compiler_params=pltpu.CompilerParams(
            dimension_semantics=("parallel",),
            vmem_limit_bytes=_VMEM_LIMIT),
    )(x2d, w, scale2, bias2)
    return out[:M] if Mp != M else out


def fused_dw_conv3(x_sp, w9, s2, b2, W3, s3, b3, residual=None, *, n_img,
                   stride, Ho, Wo, mm_dtype=jnp.float32, out_dtype=jnp.float32):
    """relu( relu(dw3x3(x)*s2+b2) @ W3 * s3 + b3 [+ residual] ), one image per
    grid step.  x_sp is (N*P, Hs, Ws, Cm) with P=1 (stride 1, padded image) or
    P=4 (stride 2, even/odd phase planes)."""
    NP, Hs, Ws, Cm = x_sp.shape
    P = NP // n_img
    Co = W3.shape[1]

    kern = _make_dw_matmul_kernel(stride, Ho, Wo, residual is not None, mm_dtype)
    in_specs = [
        pl.BlockSpec((P, Hs, Ws, Cm), lambda n: (n, 0, 0, 0)),
        pl.BlockSpec((9, Cm), lambda n: (0, 0)),
        pl.BlockSpec((1, Cm), lambda n: (0, 0)),
        pl.BlockSpec((1, Cm), lambda n: (0, 0)),
        pl.BlockSpec((Cm, Co), lambda n: (0, 0)),
        pl.BlockSpec((1, Co), lambda n: (0, 0)),
        pl.BlockSpec((1, Co), lambda n: (0, 0)),
    ]
    args = [x_sp, w9.astype(jnp.float32),
            s2.reshape(1, Cm).astype(jnp.float32),
            b2.reshape(1, Cm).astype(jnp.float32),
            W3.astype(mm_dtype),
            s3.reshape(1, Co).astype(jnp.float32),
            b3.reshape(1, Co).astype(jnp.float32)]
    if residual is not None:
        in_specs.append(pl.BlockSpec((1, Ho, Wo, Co), lambda n: (n, 0, 0, 0)))
        args.append(residual.astype(jnp.float32))

    return pl.pallas_call(
        kern,
        out_shape=jax.ShapeDtypeStruct((n_img, Ho, Wo, Co), out_dtype),
        grid=(n_img,),
        in_specs=in_specs,
        out_specs=pl.BlockSpec((1, Ho, Wo, Co), lambda n: (n, 0, 0, 0)),
        compiler_params=pltpu.CompilerParams(
            dimension_semantics=("parallel",),
            vmem_limit_bytes=_VMEM_LIMIT),
    )(*args)


def depthwise_bn_relu(x_sp, w9, scale, bias, *, n_img, stride, Ho, Wo,
                      out_dtype=jnp.float32):
    """relu(depthwise3x3(x) * scale + bias).  Used for the avg-pool shortcut."""
    NP, Hs, Ws, C = x_sp.shape
    P = NP // n_img
    TC = min(C, LANE)
    kern = _make_dw_kernel(stride, Ho, Wo)
    return pl.pallas_call(
        kern,
        out_shape=jax.ShapeDtypeStruct((n_img, Ho, Wo, C), out_dtype),
        grid=(n_img, C // TC),
        in_specs=[
            pl.BlockSpec((P, Hs, Ws, TC), lambda n, c: (n, 0, 0, c)),
            pl.BlockSpec((9, TC), lambda n, c: (0, c)),
            pl.BlockSpec((1, TC), lambda n, c: (0, c)),
            pl.BlockSpec((1, TC), lambda n, c: (0, c)),
        ],
        out_specs=pl.BlockSpec((1, Ho, Wo, TC), lambda n, c: (n, 0, 0, c)),
        compiler_params=pltpu.CompilerParams(
            dimension_semantics=("parallel", "parallel"),
            vmem_limit_bytes=_VMEM_LIMIT),
    )(x_sp, w9,
      scale.reshape(1, C).astype(jnp.float32),
      bias.reshape(1, C).astype(jnp.float32))


# ---------------- glue ----------------

def _fold_bn(bn):
    scale = bn['gamma'] / jnp.sqrt(bn['var'] + EPS)
    bias = bn['beta'] - bn['mean'] * scale
    return scale, bias


def _grouped_1x1_to_dense(w, in_ch, groups):
    # w: [out_ch, in_ch // groups] (PyTorch 1x1 conv weight, kernel dims dropped).
    # Dense block-diagonal form (zeros off the block diagonal) -- ShuffleNet
    # group widths are far below 128 lanes, so per-group tiling does not pay.
    out_ch = w.shape[0]
    og, ig = out_ch // groups, in_ch // groups
    W = jnp.zeros((in_ch, out_ch), jnp.float32)
    for gi in range(groups):
        W = W.at[gi * ig:(gi + 1) * ig, gi * og:(gi + 1) * og].set(
            w[gi * og:(gi + 1) * og, :].T)
    return W


def _prep_depthwise_input(x_nhwc, stride):
    """Spatial pad=1; for stride 2 split into 4 even/odd phase planes so the 9
    strided conv windows become contiguous in-kernel slices."""
    N, H, W, C = x_nhwc.shape
    Ho = (H - 1) // stride + 1
    Wo = (W - 1) // stride + 1
    xp = jnp.pad(x_nhwc, ((0, 0), (1, 1), (1, 1), (0, 0)))
    if stride == 1:
        return xp, Ho, Wo
    Hp, Wp = H + 2, W + 2
    xp = jnp.pad(xp, ((0, 0), (0, Hp % 2), (0, Wp % 2), (0, 0)))  # make even
    phases = jnp.stack(
        [xp[:, 0::2, 0::2, :], xp[:, 0::2, 1::2, :],
         xp[:, 1::2, 0::2, :], xp[:, 1::2, 1::2, :]], axis=1)
    _, _, Hph, Wph, _ = phases.shape
    return phases.reshape(N * 4, Hph, Wph, C), Ho, Wo


def bottleneck_forward(x_nchw, params, *, in_planes, out_planes, stride, groups,
                       use_bf16=False):
    g = 1 if in_planes == 24 else groups
    mid = out_planes // 4
    mm_dtype = jnp.bfloat16 if use_bf16 else jnp.float32
    act_dtype = jnp.bfloat16 if use_bf16 else jnp.float32

    x = jnp.transpose(x_nchw, (0, 2, 3, 1)).astype(jnp.float32)  # NHWC
    N, H, W, Cin = x.shape
    Cinp = _round_up(Cin, LANE)
    midp = _round_up(mid, LANE)
    outp = _round_up(out_planes, LANE)

    xp_c = _pad_axis(x, -1, Cinp)                       # lane-dense input

    # conv1 (1x1 grouped) + bn1 + relu; channel shuffle folded into W1 columns.
    W1 = _grouped_1x1_to_dense(params['w1'][:, :, 0, 0], Cin, g)   # (Cin, mid)
    s1, b1 = _fold_bn(params['bn1'])
    perm = jnp.arange(mid).reshape(g, mid // g).T.reshape(-1)      # shuffle perm
    W1, s1, b1 = W1[:, perm], s1[perm], b1[perm]
    W1p = _pad_axis(_pad_axis(W1, 0, Cinp), 1, midp)
    s1p = _pad_axis(s1, 0, midp, 1.0)
    b1p = _pad_axis(b1, 0, midp, 0.0)
    y1 = matmul_bn_act(xp_c.reshape(-1, Cinp), W1p, s1p, b1p,
                       mm_dtype=mm_dtype, out_dtype=act_dtype)
    y1 = y1.reshape(N, H, W, midp)

    # Fused conv2 (3x3 depthwise, stride, pad=1) + bn2 + relu
    #       + conv3 (1x1 grouped) + bn3 (+ residual) + relu.
    w9 = jnp.transpose(params['w2'][:, 0], (1, 2, 0)).reshape(9, mid)
    w9p = _pad_axis(w9, 1, midp)
    s2, b2 = _fold_bn(params['bn2'])
    s2p = _pad_axis(s2, 0, midp, 1.0)
    b2p = _pad_axis(b2, 0, midp, 0.0)

    W3 = _grouped_1x1_to_dense(params['w3'][:, :, 0, 0], mid, groups)
    s3, b3 = _fold_bn(params['bn3'])
    W3p = _pad_axis(_pad_axis(W3, 0, midp), 1, outp)
    s3p = _pad_axis(s3, 0, outp, 1.0)
    b3p = _pad_axis(b3, 0, outp, 0.0)

    y1_sp, Ho, Wo = _prep_depthwise_input(y1, stride)

    if stride == 1:
        # identity shortcut (module assumes in_planes == out_planes here)
        res = _pad_axis(x, -1, outp)
        out = fused_dw_conv3(y1_sp, w9p, s2p, b2p, W3p, s3p, b3p, residual=res,
                             n_img=N, stride=1, Ho=Ho, Wo=Wo,
                             mm_dtype=mm_dtype, out_dtype=jnp.float32)
        out = out[..., :out_planes]
    else:
        out = fused_dw_conv3(y1_sp, w9p, s2p, b2p, W3p, s3p, b3p,
                             n_img=N, stride=2, Ho=Ho, Wo=Wo,
                             mm_dtype=mm_dtype, out_dtype=jnp.float32)
        out = out[..., :out_planes]
        # shortcut: relu(avgpool 3x3, stride 2, pad 1) via the 9-tap kernel
        x_sp, _, _ = _prep_depthwise_input(xp_c, 2)
        wavg = jnp.full((9, Cinp), 1.0 / 9.0, jnp.float32)
        res = depthwise_bn_relu(x_sp, wavg,
                                jnp.ones((Cinp,), jnp.float32),
                                jnp.zeros((Cinp,), jnp.float32),
                                n_img=N, stride=2, Ho=Ho, Wo=Wo,
                                out_dtype=jnp.float32)
        res = res[..., :Cin]
        out = jnp.concatenate([out, res], axis=-1)  # relu(cat) == cat(relu)

    return jnp.transpose(out, (0, 3, 1, 2))  # back to NCHW


# ---------------- pure-JAX reference (for correctness check) ----------------

def _bn_ref(x, bn):
    gmm = bn['gamma'][None, :, None, None]
    bta = bn['beta'][None, :, None, None]
    mn = bn['mean'][None, :, None, None]
    vr = bn['var'][None, :, None, None]
    return (x - mn) / jnp.sqrt(vr + EPS) * gmm + bta


def bottleneck_ref(x, params, *, in_planes, out_planes, stride, groups):
    g = 1 if in_planes == 24 else groups
    mid = out_planes // 4
    dn = ('NCHW', 'OIHW', 'NCHW')
    out = lax.conv_general_dilated(x, params['w1'], (1, 1), 'VALID',
                                   dimension_numbers=dn, feature_group_count=g)
    out = jax.nn.relu(_bn_ref(out, params['bn1']))
    N, C, H, W = out.shape
    out = out.reshape(N, g, C // g, H, W).transpose(0, 2, 1, 3, 4).reshape(N, C, H, W)
    out = lax.conv_general_dilated(out, params['w2'], (stride, stride),
                                   ((1, 1), (1, 1)), dimension_numbers=dn,
                                   feature_group_count=mid)
    out = jax.nn.relu(_bn_ref(out, params['bn2']))
    out = lax.conv_general_dilated(out, params['w3'], (1, 1), 'VALID',
                                   dimension_numbers=dn, feature_group_count=groups)
    out = _bn_ref(out, params['bn3'])
    if stride == 2:
        res = lax.reduce_window(x, 0.0, lax.add, (1, 1, 3, 3), (1, 1, 2, 2),
                                ((0, 0), (0, 0), (1, 1), (1, 1))) / 9.0
        out = jax.nn.relu(jnp.concatenate([out, res], axis=1))
    else:
        out = jax.nn.relu(out + x)
    return out


# ---------------- deterministic parameter init ----------------

def init_params(key, in_planes, out_planes, groups):
    g = 1 if in_planes == 24 else groups
    mid = out_planes // 4
    ks = jax.random.split(key, 6)

    def bn_init(k, c):
        k1, k2, k3, k4 = jax.random.split(k, 4)
        return dict(
            gamma=jax.random.uniform(k1, (c,), jnp.float32, 0.5, 1.5),
            beta=0.1 * jax.random.normal(k2, (c,), jnp.float32),
            mean=0.1 * jax.random.normal(k3, (c,), jnp.float32),
            var=jax.random.uniform(k4, (c,), jnp.float32, 0.5, 1.5),
        )

    return dict(
        w1=0.2 * jax.random.normal(ks[0], (mid, in_planes // g, 1, 1), jnp.float32),
        w2=0.2 * jax.random.normal(ks[1], (mid, 1, 3, 3), jnp.float32),
        w3=0.2 * jax.random.normal(ks[2], (out_planes, mid // groups, 1, 1), jnp.float32),
        bn1=bn_init(ks[3], mid),
        bn2=bn_init(ks[4], mid),
        bn3=bn_init(ks[5], out_planes),
    )


if __name__ == "__main__":
    key = jax.random.PRNGKey(0)
    kx, kp = jax.random.split(key)
    in_planes, out_planes, groups = 16, 16, 2
    x = jax.random.normal(kx, (2, in_planes, 16, 16), jnp.float32)  # NCHW
    params = init_params(kp, in_planes, out_planes, groups)

    fwd = jax.jit(bottleneck_forward,
                  static_argnames=("in_planes", "out_planes", "stride",
                                   "groups", "use_bf16"))

    ok = True
    for stride in (1, 2):
        ref = bottleneck_ref(x, params, in_planes=in_planes,
                             out_planes=out_planes, stride=stride, groups=groups)

        # f32 path: strict correctness check.
        out = jax.block_until_ready(fwd(x, params, in_planes=in_planes,
                                        out_planes=out_planes, stride=stride,
                                        groups=groups, use_bf16=False))
        if out.shape != ref.shape or not bool(jnp.allclose(out, ref, atol=1e-4, rtol=1e-4)):
            ok = False

        # bf16 MXU path (v6e/v7x optimization): loose check.
        out_bf = jax.block_until_ready(fwd(x, params, in_planes=in_planes,
                                           out_planes=out_planes, stride=stride,
                                           groups=groups, use_bf16=True))
        if out_bf.shape != ref.shape or not bool(jnp.allclose(out_bf, ref, atol=2e-1, rtol=2e-1)):
            ok = False

    if ok:
        print("KERNEL_OK")
</pallas_src>

<mosaic_0001>
module attributes {stable_mosaic.version = 11 : i64} {
  func.func @_matmul_bn_relu_kernel(%arg0: i32, %arg1: memref<512x128xf32, #tpu.memory_space<vmem>>, %arg2: memref<128x128xf32, #tpu.memory_space<vmem>>, %arg3: memref<1x128xf32, #tpu.memory_space<vmem>>, %arg4: memref<1x128xf32, #tpu.memory_space<vmem>>, %arg5: memref<512x128xf32, #tpu.memory_space<vmem>>) attributes {dimension_semantics = [#tpu.dimension_semantics<parallel>], iteration_bounds = array<i64: 1>, scalar_prefetch = 0 : i64, scratch_operands = 0 : i64, tpu.core_type = #tpu.core_type<tc>, window_params = [{transform_indices = @transform_0, window_bounds = array<i64: 512, 128>}, {pipeline_mode = #tpu.pipeline_mode<synchronous>, transform_indices = @transform_1, window_bounds = array<i64: 128, 128>}, {pipeline_mode = #tpu.pipeline_mode<synchronous>, transform_indices = @transform_2, window_bounds = array<i64: 1, 128>}, {pipeline_mode = #tpu.pipeline_mode<synchronous>, transform_indices = @transform_3, window_bounds = array<i64: 1, 128>}, {transform_indices = @transform_4, window_bounds = array<i64: 512, 128>}]} {
    %c0 = arith.constant 0 : index
    %c0_0 = arith.constant 0 : index
    %0 = vector.load %arg1[%c0, %c0_0] : memref<512x128xf32, #tpu.memory_space<vmem>>, vector<512x128xf32>
    %c0_1 = arith.constant 0 : index
    %c0_2 = arith.constant 0 : index
    %1 = vector.load %arg2[%c0_1, %c0_2] : memref<128x128xf32, #tpu.memory_space<vmem>>, vector<128x128xf32>
    %cst = arith.constant dense<0.000000e+00> : vector<512x128xf32>
    %2 = tpu.matmul %0, %1, %cst {dimension_numbers = #tpu.dot_dimension_numbers<[1], [0], [0], [1], [0, 0, 1, 1], [], []>} : vector<512x128xf32>, vector<128x128xf32>, vector<512x128xf32> -> vector<512x128xf32>
    %c0_3 = arith.constant 0 : index
    %c0_4 = arith.constant 0 : index
    %3 = vector.load %arg3[%c0_3, %c0_4] : memref<1x128xf32, #tpu.memory_space<vmem>>, vector<1x128xf32>
    %4 = vector.broadcast %3 : vector<1x128xf32> to vector<512x128xf32>
    %5 = arith.mulf %2, %4 : vector<512x128xf32>
    %c0_5 = arith.constant 0 : index
    %c0_6 = arith.constant 0 : index
    %6 = vector.load %arg4[%c0_5, %c0_6] : memref<1x128xf32, #tpu.memory_space<vmem>>, vector<1x128xf32>
    %7 = vector.broadcast %6 : vector<1x128xf32> to vector<512x128xf32>
    %8 = arith.addf %5, %7 : vector<512x128xf32>
    %cst_7 = arith.constant 0.000000e+00 : f32
    %9 = vector.broadcast %cst_7 : f32 to vector<512x128xf32>
    %10 = arith.maximumf %8, %9 : vector<512x128xf32>
    %c0_8 = arith.constant 0 : index
    %c0_9 = arith.constant 0 : index
    %11 = vector.load %arg5[%c0_8, %c0_9] : memref<512x128xf32, #tpu.memory_space<vmem>>, vector<512x128xf32>
    tpu.vector_store %arg5[%c0_8, %c0_9], %10 {strides = array<i32>} : memref<512x128xf32, #tpu.memory_space<vmem>>, vector<512x128xf32>,
    return
  }
  func.func @transform_0(%arg0: i32) -> (i32, i32) {
    %c0_i32 = arith.constant 0 : i32
    %c0_i32_0 = arith.constant 0 : i32
    return %arg0, %c0_i32 : i32, i32
  }
  func.func @transform_1(%arg0: i32) -> (i32, i32) {
    %c0_i32 = arith.constant 0 : i32
    %c0_i32_0 = arith.constant 0 : i32
    %c0_i32_1 = arith.constant 0 : i32
    return %c0_i32, %c0_i32_0 : i32, i32
  }
  func.func @transform_2(%arg0: i32) -> (i32, i32) {
    %c0_i32 = arith.constant 0 : i32
    %c0_i32_0 = arith.constant 0 : i32
    %c0_i32_1 = arith.constant 0 : i32
    return %c0_i32, %c0_i32_0 : i32, i32
  }
  func.func @transform_3(%arg0: i32) -> (i32, i32) {
    %c0_i32 = arith.constant 0 : i32
    %c0_i32_0 = arith.constant 0 : i32
    %c0_i32_1 = arith.constant 0 : i32
    return %c0_i32, %c0_i32_0 : i32, i32
  }
  func.func @transform_4(%arg0: i32) -> (i32, i32) {
    %c0_i32 = arith.constant 0 : i32
    %c0_i32_0 = arith.constant 0 : i32
    return %arg0, %c0_i32 : i32, i32
  }
}

module attributes {stable_mosaic.version = 11 : i64} {
  func.func @kernel(%arg0: i32, %arg1: memref<1x18x18x128xf32, #tpu.memory_space<vmem>>, %arg2: memref<9x128xf32, #tpu.memory_space<vmem>>, %arg3: memref<1x128xf32, #tpu.memory_space<vmem>>, %arg4: memref<1x128xf32, #tpu.memory_space<vmem>>, %arg5: memref<128x128xf32, #tpu.memory_space<vmem>>, %arg6: memref<1x128xf32, #tpu.memory_space<vmem>>, %arg7: memref<1x128xf32, #tpu.memory_space<vmem>>, %arg8: memref<1x16x16x128xf32, #tpu.memory_space<vmem>>, %arg9: memref<1x16x16x128xf32, #tpu.memory_space<vmem>>) attributes {dimension_semantics = [#tpu.dimension_semantics<parallel>], iteration_bounds = array<i64: 2>, scalar_prefetch = 0 : i64, scratch_operands = 0 : i64, tpu.core_type = #tpu.core_type<tc>, window_params = [{transform_indices = @transform_0, window_bounds = array<i64: 1, 18, 18, 128>}, {pipeline_mode = #tpu.pipeline_mode<synchronous>, transform_indices = @transform_1, window_bounds = array<i64: 9, 128>}, {pipeline_mode = #tpu.pipeline_mode<synchronous>, transform_indices = @transform_2, window_bounds = array<i64: 1, 128>}, {pipeline_mode = #tpu.pipeline_mode<synchronous>, transform_indices = @transform_3, window_bounds = array<i64: 1, 128>}, {pipeline_mode = #tpu.pipeline_mode<synchronous>, transform_indices = @transform_4, window_bounds = array<i64: 128, 128>}, {pipeline_mode = #tpu.pipeline_mode<synchronous>, transform_indices = @transform_5, window_bounds = array<i64: 1, 128>}, {pipeline_mode = #tpu.pipeline_mode<synchronous>, transform_indices = @transform_6, window_bounds = array<i64: 1, 128>}, {transform_indices = @transform_7, window_bounds = array<i64: 1, 16, 16, 128>}, {transform_indices = @transform_8, window_bounds = array<i64: 1, 16, 16, 128>}]} {
    %c0 = arith.constant 0 : index
    %c0_0 = arith.constant 0 : index
    %0 = vector.load %arg2[%c0, %c0_0] : memref<9x128xf32, #tpu.memory_space<vmem>>, vector<9x128xf32>
    %c0_1 = arith.constant 0 : index
    %c0_2 = arith.constant 0 : index
    %1 = vector.load %arg3[%c0_1, %c0_2] : memref<1x128xf32, #tpu.memory_space<vmem>>, vector<1x128xf32>
    %c0_3 = arith.constant 0 : index
    %c0_4 = arith.constant 0 : index
    %2 = vector.load %arg4[%c0_3, %c0_4] : memref<1x128xf32, #tpu.memory_space<vmem>>, vector<1x128xf32>
    %c0_5 = arith.constant 0 : index
    %c0_6 = arith.constant 0 : index
    %c0_7 = arith.constant 0 : index
    %c0_8 = arith.constant 0 : index
    %3 = vector.load %arg1[%c0_5, %c0_6, %c0_7, %c0_8] : memref<1x18x18x128xf32, #tpu.memory_space<vmem>>, vector<1x16x16x128xf32>
    %4 = vector.shape_cast %3 : vector<1x16x16x128xf32> to vector<16x16x128xf32>
    %5 = vector.extract_strided_slice %0 {offsets = [0, 0], sizes = [1, 128], strides = [1, 1]} : vector<9x128xf32> to vector<1x128xf32>
    %6 = vector.shape_cast %5 : vector<1x128xf32> to vector<1x1x128xf32>
    %7 = vector.broadcast %6 : vector<1x1x128xf32> to vector<16x16x128xf32>
    %8 = arith.mulf %4, %7 : vector<16x16x128xf32>
    %c0_9 = arith.constant 0 : index
    %c0_10 = arith.constant 0 : index
    %c1 = arith.constant 1 : index
    %c0_11 = arith.constant 0 : index
    %9 = vector.load %arg1[%c0_9, %c0_10, %c1, %c0_11] : memref<1x18x18x128xf32, #tpu.memory_space<vmem>>, vector<1x16x16x128xf32>
    %10 = vector.shape_cast %9 : vector<1x16x16x128xf32> to vector<16x16x128xf32>
    %11 = vector.extract_strided_slice %0 {offsets = [1, 0], sizes = [1, 128], strides = [1, 1]} : vector<9x128xf32> to vector<1x128xf32>
    %12 = vector.shape_cast %11 : vector<1x128xf32> to vector<1x1x128xf32>
    %13 = vector.broadcast %12 : vector<1x1x128xf32> to vector<16x16x128xf32>
    %14 = arith.mulf %10, %13 : vector<16x16x128xf32>
    %15 = arith.addf %8, %14 : vector<16x16x128xf32>
    %c0_12 = arith.constant 0 : index
    %c0_13 = arith.constant 0 : index
    %c2 = arith.constant 2 : index
    %c0_14 = arith.constant 0 : index
    %16 = vector.load %arg1[%c0_12, %c0_13, %c2, %c0_14] : memref<1x18x18x128xf32, #tpu.memory_space<vmem>>, vector<1x16x16x128xf32>
    %17 = vector.shape_cast %16 : vector<1x16x16x128xf32> to vector<16x16x128xf32>
    %18 = vector.extract_strided_slice %0 {offsets = [2, 0], sizes = [1, 128], strides = [1, 1]} : vector<9x128xf32> to vector<1x128xf32>
    %19 = vector.shape_cast %18 : vector<1x128xf32> to vector<1x1x128xf32>
    %20 = vector.broadcast %19 : vector<1x1x128xf32> to vector<16x16x128xf32>
    %21 = arith.mulf %17, %20 : vector<16x16x128xf32>
    %22 = arith.addf %15, %21 : vector<16x16x128xf32>
    %c0_15 = arith.constant 0 : index
    %c1_16 = arith.constant 1 : index
    %c0_17 = arith.constant 0 : index
    %c0_18 = arith.constant 0 : index
    %23 = vector.load %arg1[%c0_15, %c1_16, %c0_17, %c0_18] : memref<1x18x18x128xf32, #tpu.memory_space<vmem>>, vector<1x16x16x128xf32>
    %24 = vector.shape_cast %23 : vector<1x16x16x128xf32> to vector<16x16x128xf32>
    %25 = vector.extract_strided_slice %0 {offsets = [3, 0], sizes = [1, 128], strides = [1, 1]} : vector<9x128xf32> to vector<1x128xf32>
    %26 = vector.shape_cast %25 : vector<1x128xf32> to vector<1x1x128xf32>
    %27 = vector.broadcast %26 : vector<1x1x128xf32> to vector<16x16x128xf32>
    %28 = arith.mulf %24, %27 : vector<16x16x128xf32>
    %29 = arith.addf %22, %28 : vector<16x16x128xf32>
    %c0_19 = arith.constant 0 : index
    %c1_20 = arith.constant 1 : index
    %c1_21 = arith.constant 1 : index
    %c0_22 = arith.constant 0 : index
    %30 = vector.load %arg1[%c0_19, %c1_20, %c1_21, %c0_22] : memref<1x18x18x128xf32, #tpu.memory_space<vmem>>, vector<1x16x16x128xf32>
    %31 = vector.shape_cast %30 : vector<1x16x16x128xf32> to vector<16x16x128xf32>
    %32 = vector.extract_strided_slice %0 {offsets = [4, 0], sizes = [1, 128], strides = [1, 1]} : vector<9x128xf32> to vector<1x128xf32>
    %33 = vector.shape_cast %32 : vector<1x128xf32> to vector<1x1x128xf32>
    %34 = vector.broadcast %33 : vector<1x1x128xf32> to vector<16x16x128xf32>
    %35 = arith.mulf %31, %34 : vector<16x16x128xf32>
    %36 = arith.addf %29, %35 : vector<16x16x128xf32>
    %c0_23 = arith.constant 0 : index
    %c1_24 = arith.constant 1 : index
    %c2_25 = arith.constant 2 : index
    %c0_26 = arith.constant 0 : index
    %37 = vector.load %arg1[%c0_23, %c1_24, %c2_25, %c0_26] : memref<1x18x18x128xf32, #tpu.memory_space<vmem>>, vector<1x16x16x128xf32>
    %38 = vector.shape_cast %37 : vector<1x16x16x128xf32> to vector<16x16x128xf32>
    %39 = vector.extract_strided_slice %0 {offsets = [5, 0], sizes = [1, 128], strides = [1, 1]} : vector<9x128xf32> to vector<1x128xf32>
    %40 = vector.shape_cast %39 : vector<1x128xf32> to vector<1x1x128xf32>
    %41 = vector.broadcast %40 : vector<1x1x128xf32> to vector<16x16x128xf32>
    %42 = arith.mulf %38, %41 : vector<16x16x128xf32>
    %43 = arith.addf %36, %42 : vector<16x16x128xf32>
    %c0_27 = arith.constant 0 : index
    %c2_28 = arith.constant 2 : index
    %c0_29 = arith.constant 0 : index
    %c0_30 = arith.constant 0 : index
    %44 = vector.load %arg1[%c0_27, %c2_28, %c0_29, %c0_30] : memref<1x18x18x128xf32, #tpu.memory_space<vmem>>, vector<1x16x16x128xf32>
    %45 = vector.shape_cast %44 : vector<1x16x16x128xf32> to vector<16x16x128xf32>
    %46 = vector.extract_strided_slice %0 {offsets = [6, 0], sizes = [1, 128], strides = [1, 1]} : vector<9x128xf32> to vector<1x128xf32>
    %47 = vector.shape_cast %46 : vector<1x128xf32> to vector<1x1x128xf32>
    %48 = vector.broadcast %47 : vector<1x1x128xf32> to vector<16x16x128xf32>
    %49 = arith.mulf %45, %48 : vector<16x16x128xf32>
    %50 = arith.addf %43, %49 : vector<16x16x128xf32>
    %c0_31 = arith.constant 0 : index
    %c2_32 = arith.constant 2 : index
    %c1_33 = arith.constant 1 : index
    %c0_34 = arith.constant 0 : index
    %51 = vector.load %arg1[%c0_31, %c2_32, %c1_33, %c0_34] : memref<1x18x18x128xf32, #tpu.memory_space<vmem>>, vector<1x16x16x128xf32>
    %52 = vector.shape_cast %51 : vector<1x16x16x128xf32> to vector<16x16x128xf32>
    %53 = vector.extract_strided_slice %0 {offsets = [7, 0], sizes = [1, 128], strides = [1, 1]} : vector<9x128xf32> to vector<1x128xf32>
    %54 = vector.shape_cast %53 : vector<1x128xf32> to vector<1x1x128xf32>
    %55 = vector.broadcast %54 : vector<1x1x128xf32> to vector<16x16x128xf32>
    %56 = arith.mulf %52, %55 : vector<16x16x128xf32>
    %57 = arith.addf %50, %56 : vector<16x16x128xf32>
    %c0_35 = arith.constant 0 : index
    %c2_36 = arith.constant 2 : index
    %c2_37 = arith.constant 2 : index
    %c0_38 = arith.constant 0 : index
    %58 = vector.load %arg1[%c0_35, %c2_36, %c2_37, %c0_38] : memref<1x18x18x128xf32, #tpu.memory_space<vmem>>, vector<1x16x16x128xf32>
    %59 = vector.shape_cast %58 : vector<1x16x16x128xf32> to vector<16x16x128xf32>
    %60 = vector.extract_strided_slice %0 {offsets = [8, 0], sizes = [1, 128], strides = [1, 1]} : vector<9x128xf32> to vector<1x128xf32>
    %61 = vector.shape_cast %60 : vector<1x128xf32> to vector<1x1x128xf32>
    %62 = vector.broadcast %61 : vector<1x1x128xf32> to vector<16x16x128xf32>
    %63 = arith.mulf %59, %62 : vector<16x16x128xf32>
    %64 = arith.addf %57, %63 : vector<16x16x128xf32>
    %65 = vector.shape_cast %1 : vector<1x128xf32> to vector<1x1x128xf32>
    %66 = vector.broadcast %65 : vector<1x1x128xf32> to vector<16x16x128xf32>
    %67 = arith.mulf %64, %66 : vector<16x16x128xf32>
    %68 = vector.shape_cast %2 : vector<1x128xf32> to vector<1x1x128xf32>
    %69 = vector.broadcast %68 : vector<1x1x128xf32> to vector<16x16x128xf32>
    %70 = arith.addf %67, %69 : vector<16x16x128xf32>
    %cst = arith.constant 0.000000e+00 : f32
    %71 = vector.broadcast %cst : f32 to vector<16x16x128xf32>
    %72 = arith.maximumf %70, %71 : vector<16x16x128xf32>
    %73 = vector.shape_cast %72 : vector<16x16x128xf32> to vector<256x128xf32>
    %c0_39 = arith.constant 0 : index
    %c0_40 = arith.constant 0 : index
    %74 = vector.load %arg5[%c0_39, %c0_40] : memref<128x128xf32, #tpu.memory_space<vmem>>, vector<128x128xf32>
    %cst_41 = arith.constant dense<0.000000e+00> : vector<256x128xf32>
    %75 = tpu.matmul %73, %74, %cst_41 {dimension_numbers = #tpu.dot_dimension_numbers<[1], [0], [0], [1], [0, 0, 1, 1], [], []>} : vector<256x128xf32>, vector<128x128xf32>, vector<256x128xf32> -> vector<256x128xf32>
    %c0_42 = arith.constant 0 : index
    %c0_43 = arith.constant 0 : index
    %76 = vector.load %arg6[%c0_42, %c0_43] : memref<1x128xf32, #tpu.memory_space<vmem>>, vector<1x128xf32>
    %77 = vector.broadcast %76 : vector<1x128xf32> to vector<256x128xf32>
    %78 = arith.mulf %75, %77 : vector<256x128xf32>
    %c0_44 = arith.constant 0 : index
    %c0_45 = arith.constant 0 : index
    %79 = vector.load %arg7[%c0_44, %c0_45] : memref<1x128xf32, #tpu.memory_space<vmem>>, vector<1x128xf32>
    %80 = vector.broadcast %79 : vector<1x128xf32> to vector<256x128xf32>
    %81 = arith.addf %78, %80 : vector<256x128xf32>
    %c0_46 = arith.constant 0 : index
    %c0_47 = arith.constant 0 : index
    %c0_48 = arith.constant 0 : index
    %c0_49 = arith.constant 0 : index
    %82 = vector.load %arg8[%c0_46, %c0_47, %c0_48, %c0_49] : memref<1x16x16x128xf32, #tpu.memory_space<vmem>>, vector<1x16x16x128xf32>
    %83 = vector.shape_cast %82 : vector<1x16x16x128xf32> to vector<256x128xf32>
    %84 = arith.addf %81, %83 : vector<256x128xf32>
    %cst_50 = arith.constant 0.000000e+00 : f32
    %85 = vector.broadcast %cst_50 : f32 to vector<256x128xf32>
    %86 = arith.maximumf %84, %85 : vector<256x128xf32>
    %87 = vector.shape_cast %86 : vector<256x128xf32> to vector<1x16x16x128xf32>
    %c0_51 = arith.constant 0 : index
    %c0_52 = arith.constant 0 : index
    %c0_53 = arith.constant 0 : index
    %c0_54 = arith.constant 0 : index
    %88 = vector.load %arg9[%c0_51, %c0_52, %c0_53, %c0_54] : memref<1x16x16x128xf32, #tpu.memory_space<vmem>>, vector<1x16x16x128xf32>
    tpu.vector_store %arg9[%c0_51, %c0_52, %c0_53, %c0_54], %87 {strides = array<i32>} : memref<1x16x16x128xf32, #tpu.memory_space<vmem>>, vector<1x16x16x128xf32>,
    return
  }
  func.func @transform_0(%arg0: i32) -> (i32, i32, i32, i32) {
    %c0_i32 = arith.constant 0 : i32
    %c0_i32_0 = arith.constant 0 : i32
    %c0_i32_1 = arith.constant 0 : i32
    %c0_i32_2 = arith.constant 0 : i32
    return %arg0, %c0_i32, %c0_i32_0, %c0_i32_1 : i32, i32, i32, i32
  }
  func.func @transform_1(%arg0: i32) -> (i32, i32) {
    %c0_i32 = arith.constant 0 : i32
    %c0_i32_0 = arith.constant 0 : i32
    %c0_i32_1 = arith.constant 0 : i32
    return %c0_i32, %c0_i32_0 : i32, i32
  }
  func.func @transform_2(%arg0: i32) -> (i32, i32) {
    %c0_i32 = arith.constant 0 : i32
    %c0_i32_0 = arith.constant 0 : i32
    %c0_i32_1 = arith.constant 0 : i32
    return %c0_i32, %c0_i32_0 : i32, i32
  }
  func.func @transform_3(%arg0: i32) -> (i32, i32) {
    %c0_i32 = arith.constant 0 : i32
    %c0_i32_0 = arith.constant 0 : i32
    %c0_i32_1 = arith.constant 0 : i32
    return %c0_i32, %c0_i32_0 : i32, i32
  }
  func.func @transform_4(%arg0: i32) -> (i32, i32) {
    %c0_i32 = arith.constant 0 : i32
    %c0_i32_0 = arith.constant 0 : i32
    %c0_i32_1 = arith.constant 0 : i32
    return %c0_i32, %c0_i32_0 : i32, i32
  }
  func.func @transform_5(%arg0: i32) -> (i32, i32) {
    %c0_i32 = arith.constant 0 : i32
    %c0_i32_0 = arith.constant 0 : i32
    %c0_i32_1 = arith.constant 0 : i32
    return %c0_i32, %c0_i32_0 : i32, i32
  }
  func.func @transform_6(%arg0: i32) -> (i32, i32) {
    %c0_i32 = arith.constant 0 : i32
    %c0_i32_0 = arith.constant 0 : i32
    %c0_i32_1 = arith.constant 0 : i32
    return %c0_i32, %c0_i32_0 : i32, i32
  }
  func.func @transform_7(%arg0: i32) -> (i32, i32, i32, i32) {
    %c0_i32 = arith.constant 0 : i32
    %c0_i32_0 = arith.constant 0 : i32
    %c0_i32_1 = arith.constant 0 : i32
    %c0_i32_2 = arith.constant 0 : i32
    return %arg0, %c0_i32, %c0_i32_0, %c0_i32_1 : i32, i32, i32, i32
  }
  func.func @transform_8(%arg0: i32) -> (i32, i32, i32, i32) {
    %c0_i32 = arith.constant 0 : i32
    %c0_i32_0 = arith.constant 0 : i32
    %c0_i32_1 = arith.constant 0 : i32
    %c0_i32_2 = arith.constant 0 : i32
    return %arg0, %c0_i32, %c0_i32_0, %c0_i32_1 : i32, i32, i32, i32
  }
}

</mosaic_0001>

<llo_original>
// kernel: bottleneck_forward.2
$region0: #{bottleneck_forward.2}
  #allocation0 [shape = 'u32[]', space=smem, size = 0x4, offset = 0x4, fixed_abs, tag = 'smem constant byte address 0x4 - core index']
  #allocation1 [shape = 'u32[144,128]{1,0:T(1,128)}', space=vmem, size = 0x12000, scoped, tag = 'internal scratch']
  %s0 = inlined_call_operand.vmem [shape: f32[512,128], index: 0, kind: input, shape index: {}]
  %s1 = inlined_call_operand.vmem [shape: f32[128,128], index: 1, kind: input, shape index: {}]
  %s2 = inlined_call_operand.vmem [shape: f32[1,128], index: 2, kind: input, shape index: {}]
  %s3 = inlined_call_operand.vmem [shape: f32[1,128], index: 3, kind: input, shape index: {}]
  %s4 = inlined_call_operand.vmem [shape: f32[512,128], index: 4, kind: output, shape index: {}]
  %s5 = sld [smem:[#allocation0]]
  $region26: #{bottleneck_forward.2} parent=0
    _
  %s7 = ssub.s32 1, %s5
  %s8 = scalar_select 0, %s7, %s5
  // Predicated region
  $region2: #{bottleneck_forward.2} parent=0 // pred_check
    _
  $region3: #{bottleneck_forward.2} parent=0 // pred_check_branch
    %10 = sbr.rel (0) target = $region5
  $region4: #{bottleneck_forward.2} parent=0 // pred_region
    _
  $region5: #{bottleneck_forward.2} parent=0 // pred_fallthru
    _
  // Predicated region
  $region6: #{bottleneck_forward.2} parent=0 // pred_check
    _
  $region7: #{bottleneck_forward.2} parent=0 // pred_check_branch
    %12 = sbr.rel (0) target = $region9
  $region8: #{bottleneck_forward.2} parent=0 // pred_region
    _
  $region9: #{bottleneck_forward.2} parent=0 // pred_fallthru
    _
  // Predicated region
  $region10: #{bottleneck_forward.2} parent=0 // pred_check
    _
  $region11: #{bottleneck_forward.2} parent=0 // pred_check_branch
    %14 = sbr.rel (0) target = $region13
  $region12: #{bottleneck_forward.2} parent=0 // pred_region
    _
  $region13: #{bottleneck_forward.2} parent=0 // pred_fallthru
    _
  // Predicated region
  $region14: #{bottleneck_forward.2} parent=0 // pred_check
    _
  $region15: #{bottleneck_forward.2} parent=0 // pred_check_branch
    %16 = sbr.rel (0) target = $region17
  $region16: #{bottleneck_forward.2} parent=0 // pred_region
    _
  $region17: #{bottleneck_forward.2} parent=0 // pred_fallthru
    _
  %v17 = vld [vmem:[%s0] sm:$0xff]
  %v18 = vld [vmem:[%s0 + $0x8] sm:$0xff]
  %v19 = vld [vmem:[%s0 + $0x10] sm:$0xff]
  %v20 = vld [vmem:[%s0 + $0x18] sm:$0xff]
  %v21 = vld [vmem:[%s0 + $0x20] sm:$0xff]
  %v22 = vld [vmem:[%s0 + $0x28] sm:$0xff]
  %v23 = vld [vmem:[%s0 + $0x30] sm:$0xff]
  %v24 = vld [vmem:[%s0 + $0x38] sm:$0xff]
  %v25 = vld [vmem:[%s0 + $0x40] sm:$0xff]
  %v26 = vld [vmem:[%s0 + $0x48] sm:$0xff]
  %v27 = vld [vmem:[%s0 + $0x50] sm:$0xff]
  %v28 = vld [vmem:[%s0 + $0x58] sm:$0xff]
  %v29 = vld [vmem:[%s0 + $0x60] sm:$0xff]
  %v30 = vld [vmem:[%s0 + $0x68] sm:$0xff]
  %v31 = vld [vmem:[%s0 + $0x70] sm:$0xff]
  %v32 = vld [vmem:[%s0 + $0x78] sm:$0xff]
  %v33 = vld [vmem:[%s0 + $0x80] sm:$0xff]
  %v34 = vld [vmem:[%s0 + $0x88] sm:$0xff]
  %v35 = vld [vmem:[%s0 + $0x90] sm:$0xff]
  %v36 = vld [vmem:[%s0 + $0x98] sm:$0xff]
  %v37 = vld [vmem:[%s0 + $0xa0] sm:$0xff]
  %v38 = vld [vmem:[%s0 + $0xa8] sm:$0xff]
  %v39 = vld [vmem:[%s0 + $0xb0] sm:$0xff]
  %v40 = vld [vmem:[%s0 + $0xb8] sm:$0xff]
  %v41 = vld [vmem:[%s0 + $0xc0] sm:$0xff]
  %v42 = vld [vmem:[%s0 + $0xc8] sm:$0xff]
  %v43 = vld [vmem:[%s0 + $0xd0] sm:$0xff]
  %v44 = vld [vmem:[%s0 + $0xd8] sm:$0xff]
  %v45 = vld [vmem:[%s0 + $0xe0] sm:$0xff]
  %v46 = vld [vmem:[%s0 + $0xe8] sm:$0xff]
  %v47 = vld [vmem:[%s0 + $0xf0] sm:$0xff]
  %v48 = vld [vmem:[%s0 + $0xf8] sm:$0xff]
  %v49 = vld [vmem:[%s0 + $0x100] sm:$0xff]
  %v50 = vld [vmem:[%s0 + $0x108] sm:$0xff]
  %v51 = vld [vmem:[%s0 + $0x110] sm:$0xff]
  %v52 = vld [vmem:[%s0 + $0x118] sm:$0xff]
  %v53 = vld [vmem:[%s0 + $0x120] sm:$0xff]
  %v54 = vld [vmem:[%s0 + $0x128] sm:$0xff]
  %v55 = vld [vmem:[%s0 + $0x130] sm:$0xff]
  %v56 = vld [vmem:[%s0 + $0x138] sm:$0xff]
  %v57 = vld [vmem:[%s0 + $0x140] sm:$0xff]
  %v58 = vld [vmem:[%s0 + $0x148] sm:$0xff]
  %v59 = vld [vmem:[%s0 + $0x150] sm:$0xff]
  %v60 = vld [vmem:[%s0 + $0x158] sm:$0xff]
  %v61 = vld [vmem:[%s0 + $0x160] sm:$0xff]
  %v62 = vld [vmem:[%s0 + $0x168] sm:$0xff]
  %v63 = vld [vmem:[%s0 + $0x170] sm:$0xff]
  %v64 = vld [vmem:[%s0 + $0x178] sm:$0xff]
  %v65 = vld [vmem:[%s0 + $0x180] sm:$0xff]
  %v66 = vld [vmem:[%s0 + $0x188] sm:$0xff]
  %v67 = vld [vmem:[%s0 + $0x190] sm:$0xff]
  %v68 = vld [vmem:[%s0 + $0x198] sm:$0xff]
  %v69 = vld [vmem:[%s0 + $0x1a0] sm:$0xff]
  %v70 = vld [vmem:[%s0 + $0x1a8] sm:$0xff]
  %v71 = vld [vmem:[%s0 + $0x1b0] sm:$0xff]
  %v72 = vld [vmem:[%s0 + $0x1b8] sm:$0xff]
  %v73 = vld [vmem:[%s0 + $0x1c0] sm:$0xff]
  %v74 = vld [vmem:[%s0 + $0x1c8] sm:$0xff]
  %v75 = vld [vmem:[%s0 + $0x1d0] sm:$0xff]
  %v76 = vld [vmem:[%s0 + $0x1d8] sm:$0xff]
  %v77 = vld [vmem:[%s0 + $0x1e0] sm:$0xff]
  %v78 = vld [vmem:[%s0 + $0x1e8] sm:$0xff]
  %v79 = vld [vmem:[%s0 + $0x1f0] sm:$0xff]
  %v80 = vld [vmem:[%s0 + $0x1f8] sm:$0xff]
  %v81 = vld [vmem:[%s1] sm:$0xff]
  %v82 = vld [vmem:[%s1 + $0x8] sm:$0xff]
  %v83 = vld [vmem:[%s1 + $0x10] sm:$0xff]
  %v84 = vld [vmem:[%s1 + $0x18] sm:$0xff]
  %v85 = vld [vmem:[%s1 + $0x20] sm:$0xff]
  %v86 = vld [vmem:[%s1 + $0x28] sm:$0xff]
  %v87 = vld [vmem:[%s1 + $0x30] sm:$0xff]
  %v88 = vld [vmem:[%s1 + $0x38] sm:$0xff]
  %v89 = vld [vmem:[%s1 + $0x40] sm:$0xff]
  %v90 = vld [vmem:[%s1 + $0x48] sm:$0xff]
  %v91 = vld [vmem:[%s1 + $0x50] sm:$0xff]
  %v92 = vld [vmem:[%s1 + $0x58] sm:$0xff]
  %v93 = vld [vmem:[%s1 + $0x60] sm:$0xff]
  %v94 = vld [vmem:[%s1 + $0x68] sm:$0xff]
  %v95 = vld [vmem:[%s1 + $0x70] sm:$0xff]
  %v96 = vld [vmem:[%s1 + $0x78] sm:$0xff]
  %97 = vmatprep.subr.mxu0 0.0
  %98 = vmatpush1.msra.mxu0 %v81
  %99 = vmatprep.subr.mxu0 0.0
  %100 = vmatpush1.msra.mxu0 %v82
  %101 = vmatprep.subr.mxu0 0.0
  %102 = vmatpush1.msra.mxu0 %v83
  %103 = vmatprep.subr.mxu0 0.0
  %104 = vmatpush1.msra.mxu0 %v84
  %105 = vmatprep.subr.mxu0 0.0
  %106 = vmatpush1.msra.mxu0 %v85
  %107 = vmatprep.subr.mxu0 0.0
  %108 = vmatpush1.msra.mxu0 %v86
  %109 = vmatprep.subr.mxu0 0.0
  %110 = vmatpush1.msra.mxu0 %v87
  %111 = vmatprep.subr.mxu0 0.0
  %112 = vmatpush1.msra.mxu0 %v88
  %113 = vmatprep.subr.mxu0 0.0
  %114 = vmatpush1.msra.mxu0 %v89
  %115 = vmatprep.subr.mxu0 0.0
  %116 = vmatpush1.msra.mxu0 %v90
  %117 = vmatprep.subr.mxu0 0.0
  %118 = vmatpush1.msra.mxu0 %v91
  %119 = vmatprep.subr.mxu0 0.0
  %120 = vmatpush1.msra.mxu0 %v92
  %121 = vmatprep.subr.mxu0 0.0
  %122 = vmatpush1.msra.mxu0 %v93
  %123 = vmatprep.subr.mxu0 0.0
  %124 = vmatpush1.msra.mxu0 %v94
  %125 = vmatprep.subr.mxu0 0.0
  %126 = vmatpush1.msra.mxu0 %v95
  %127 = vmatprep.subr.mxu0 0.0
  %128 = vmatpush1.msra.mxu0 %v96
  %129 = vmatprep.subr.mxu0 0.0
  %130 = vmatpush1.msra.mxu0 0.0
  %131 = vmatprep.subr.mxu0 0.0
  %132 = vmatpush1.msra.mxu0 0.0
  %133 = vmatprep.subr.mxu0 0.0
  %134 = vmatpush1.msra.mxu0 0.0
  %135 = vmatprep.subr.mxu0 0.0
  %136 = vmatpush1.msra.mxu0 0.0
  %137 = vmatprep.subr.mxu0 0.0
  %138 = vmatpush1.msra.mxu0 0.0
  %139 = vmatprep.subr.mxu0 0.0
  %140 = vmatpush1.msra.mxu0 0.0
  %141 = vmatprep.subr.mxu0 0.0
  %142 = vmatpush1.msra.mxu0 0.0
  %143 = vmatprep.subr.mxu0 0.0
  %144 = vmatpush1.msra.mxu0 0.0
  %145 = vmatprep.subr.mxu0 0.0
  %146 = vmatpush1.msra.mxu0 0.0
  %147 = vmatprep.subr.mxu0 0.0
  %148 = vmatpush1.msra.mxu0 0.0
  %149 = vmatprep.subr.mxu0 0.0
  %150 = vmatpush1.msra.mxu0 0.0
  %151 = vmatprep.subr.mxu0 0.0
  %152 = vmatpush1.msra.mxu0 0.0
  %153 = vmatprep.subr.mxu0 0.0
  %154 = vmatpush1.msra.mxu0 0.0
  %155 = vmatprep.subr.mxu0 0.0
  %156 = vmatpush1.msra.mxu0 0.0
  %157 = vmatprep.subr.mxu0 0.0
  %158 = vmatpush1.msra.mxu0 0.0
  %159 = vmatprep.subr.mxu0 0.0
  %160 = vmatpush1.msra.mxu0 0.0
  %161 = vmatprep.mubr.f32.mxu0 0.0
  %162 = vmatmul.mubr.f32.gmra.mrb[0].mxu0 %v17
  %v163 = vpop.f32.mrb[0].mxu0
  %v164 = vadd.f32 0.0, %v163
  %v165 = vpop.f32.mrb[0].mxu0
  %166 = vmatprep.mubr.f32.mxu0 0.0
  %167 = vmatmul.mubr.f32.gmra.mrb[0].mxu0 %v18
  %v168 = vpop.f32.mrb[0].mxu0
  %v169 = vadd.f32 0.0, %v168
  %v170 = vpop.f32.mrb[0].mxu0
  %171 = vmatprep.mubr.f32.mxu0 0.0
  %172 = vmatmul.mubr.f32.gmra.mrb[0].mxu0 %v19
  %v173 = vpop.f32.mrb[0].mxu0
  %v174 = vadd.f32 0.0, %v173
  %v175 = vpop.f32.mrb[0].mxu0
  %176 = vmatprep.mubr.f32.mxu0 0.0
  %177 = vmatmul.mubr.f32.gmra.mrb[0].mxu0 %v20
  %v178 = vpop.f32.mrb[0].mxu0
  %v179 = vadd.f32 0.0, %v178
  %v180 = vpop.f32.mrb[0].mxu0
  %181 = vmatprep.mubr.f32.mxu0 0.0
  %182 = vmatmul.mubr.f32.gmra.mrb[0].mxu0 %v21
  %v183 = vpop.f32.mrb[0].mxu0
  %v184 = vadd.f32 0.0, %v183
  %v185 = vpop.f32.mrb[0].mxu0
  %186 = vmatprep.mubr.f32.mxu0 0.0
  %187 = vmatmul.mubr.f32.gmra.mrb[0].mxu0 %v22
  %v188 = vpop.f32.mrb[0].mxu0
  %v189 = vadd.f32 0.0, %v188
  %v190 = vpop.f32.mrb[0].mxu0
  %191 = vmatprep.mubr.f32.mxu0 0.0
  %192 = vmatmul.mubr.f32.gmra.mrb[0].mxu0 %v23
  %v193 = vpop.f32.mrb[0].mxu0
  %v194 = vadd.f32 0.0, %v193
  %v195 = vpop.f32.mrb[0].mxu0
  %196 = vmatprep.mubr.f32.mxu0 0.0
  %197 = vmatmul.mubr.f32.gmra.mrb[0].mxu0 %v24
  %v198 = vpop.f32.mrb[0].mxu0
  %v199 = vadd.f32 0.0, %v198
  %v200 = vpop.f32.mrb[0].mxu0
  %201 = vmatprep.mubr.f32.mxu0 0.0
  %202 = vmatmul.mubr.f32.gmra.mrb[0].mxu0 %v25
  %v203 = vpop.f32.mrb[0].mxu0
  %v204 = vadd.f32 0.0, %v203
  %v205 = vpop.f32.mrb[0].mxu0
  %206 = vmatprep.mubr.f32.mxu0 0.0
  %207 = vmatmul.mubr.f32.gmra.mrb[0].mxu0 %v26
  %v208 = vpop.f32.mrb[0].mxu0
  %v209 = vadd.f32 0.0, %v208
  %v210 = vpop.f32.mrb[0].mxu0
  %211 = vmatprep.mubr.f32.mxu0 0.0
  %212 = vmatmul.mubr.f32.gmra.mrb[0].mxu0 %v27
  %v213 = vpop.f32.mrb[0].mxu0
  %v214 = vadd.f32 0.0, %v213
  %v215 = vpop.f32.mrb[0].mxu0
  %216 = vmatprep.mubr.f32.mxu0 0.0
  %217 = vmatmul.mubr.f32.gmra.mrb[0].mxu0 %v28
  %v218 = vpop.f32.mrb[0].mxu0
  %v219 = vadd.f32 0.0, %v218
  %v220 = vpop.f32.mrb[0].mxu0
  %221 = vmatprep.mubr.f32.mxu0 0.0
  %222 = vmatmul.mubr.f32.gmra.mrb[0].mxu0 %v29
  %v223 = vpop.f32.mrb[0].mxu0
  %v224 = vadd.f32 0.0, %v223
  %v225 = vpop.f32.mrb[0].mxu0
  %226 = vmatprep.mubr.f32.mxu0 0.0
  %227 = vmatmul.mubr.f32.gmra.mrb[0].mxu0 %v30
  %v228 = vpop.f32.mrb[0].mxu0
  %v229 = vadd.f32 0.0, %v228
  %v230 = vpop.f32.mrb[0].mxu0
  %231 = vmatprep.mubr.f32.mxu0 0.0
  %232 = vmatmul.mubr.f32.gmra.mrb[0].mxu0 %v31
  %v233 = vpop.f32.mrb[0].mxu0
  %v234 = vadd.f32 0.0, %v233
  %v235 = vpop.f32.mrb[0].mxu0
  %236 = vmatprep.mubr.f32.mxu0 0.0
  %237 = vmatmul.mubr.f32.gmra.mrb[0].mxu0 %v32
  %v238 = vpop.f32.mrb[0].mxu0
  %v239 = vadd.f32 0.0, %v238
  %v240 = vpop.f32.mrb[0].mxu0
  %241 = vmatprep.mubr.f32.mxu0 0.0
  %242 = vmatmul.mubr.f32.gmra.mrb[0].mxu0 %v33
  %v243 = vpop.f32.mrb[0].mxu0
  %v244 = vadd.f32 0.0, %v243
  %v245 = vpop.f32.mrb[0].mxu0
  %246 = vmatprep.mubr.f32.mxu0 0.0
  %247 = vmatmul.mubr.f32.gmra.mrb[0].mxu0 %v34
  %v248 = vpop.f32.mrb[0].mxu0
  %v249 = vadd.f32 0.0, %v248
  %v250 = vpop.f32.mrb[0].mxu0
  %251 = vmatprep.mubr.f32.mxu0 0.0
  %252 = vmatmul.mubr.f32.gmra.mrb[0].mxu0 %v35
  %v253 = vpop.f32.mrb[0].mxu0
  %v254 = vadd.f32 0.0, %v253
  %v255 = vpop.f32.mrb[0].mxu0
  %256 = vmatprep.mubr.f32.mxu0 0.0
  %257 = vmatmul.mubr.f32.gmra.mrb[0].mxu0 %v36
  %v258 = vpop.f32.mrb[0].mxu0
  %v259 = vadd.f32 0.0, %v258
  %v260 = vpop.f32.mrb[0].mxu0
  %261 = vmatprep.mubr.f32.mxu0 0.0
  %262 = vmatmul.mubr.f32.gmra.mrb[0].mxu0 %v37
  %v263 = vpop.f32.mrb[0].mxu0
  %v264 = vadd.f32 0.0, %v263
  %v265 = vpop.f32.mrb[0].mxu0
  %266 = vmatprep.mubr.f32.mxu0 0.0
  %267 = vmatmul.mubr.f32.gmra.mrb[0].mxu0 %v38
  %v268 = vpop.f32.mrb[0].mxu0
  %v269 = vadd.f32 0.0, %v268
  %v270 = vpop.f32.mrb[0].mxu0
  %271 = vmatprep.mubr.f32.mxu0 0.0
  %272 = vmatmul.mubr.f32.gmra.mrb[0].mxu0 %v39
  %v273 = vpop.f32.mrb[0].mxu0
  %v274 = vadd.f32 0.0, %v273
  %v275 = vpop.f32.mrb[0].mxu0
  %276 = vmatprep.mubr.f32.mxu0 0.0
  %277 = vmatmul.mubr.f32.gmra.mrb[0].mxu0 %v40
  %v278 = vpop.f32.mrb[0].mxu0
  %v279 = vadd.f32 0.0, %v278
  %v280 = vpop.f32.mrb[0].mxu0
  %281 = vmatprep.mubr.f32.mxu0 0.0
  %282 = vmatmul.mubr.f32.gmra.mrb[0].mxu0 %v41
  %v283 = vpop.f32.mrb[0].mxu0
  %v284 = vadd.f32 0.0, %v283
  %v285 = vpop.f32.mrb[0].mxu0
  %286 = vmatprep.mubr.f32.mxu0 0.0
  %287 = vmatmul.mubr.f32.gmra.mrb[0].mxu0 %v42
  %v288 = vpop.f32.mrb[0].mxu0
  %v289 = vadd.f32 0.0, %v288
  %v290 = vpop.f32.mrb[0].mxu0
  %291 = vmatprep.mubr.f32.mxu0 0.0
  %292 = vmatmul.mubr.f32.gmra.mrb[0].mxu0 %v43
  %v293 = vpop.f32.mrb[0].mxu0
  %v294 = vadd.f32 0.0, %v293
  %v295 = vpop.f32.mrb[0].mxu0
  %296 = vmatprep.mubr.f32.mxu0 0.0
  %297 = vmatmul.mubr.f32.gmra.mrb[0].mxu0 %v44
  %v298 = vpop.f32.mrb[0].mxu0
  %v299 = vadd.f32 0.0, %v298
  %v300 = vpop.f32.mrb[0].mxu0
  %301 = vmatprep.mubr.f32.mxu0 0.0
  %302 = vmatmul.mubr.f32.gmra.mrb[0].mxu0 %v45
  %v303 = vpop.f32.mrb[0].mxu0
  %v304 = vadd.f32 0.0, %v303
  %v305 = vpop.f32.mrb[0].mxu0
  %306 = vmatprep.mubr.f32.mxu0 0.0
  %307 = vmatmul.mubr.f32.gmra.mrb[0].mxu0 %v46
  %v308 = vpop.f32.mrb[0].mxu0
  %v309 = vadd.f32 0.0, %v308
  %v310 = vpop.f32.mrb[0].mxu0
  %311 = vmatprep.mubr.f32.mxu0 0.0
  %312 = vmatmul.mubr.f32.gmra.mrb[0].mxu0 %v47
  %v313 = vpop.f32.mrb[0].mxu0
  %v314 = vadd.f32 0.0, %v313
  %v315 = vpop.f32.mrb[0].mxu0
  %316 = vmatprep.mubr.f32.mxu0 0.0
  %317 = vmatmul.mubr.f32.gmra.mrb[0].mxu0 %v48
  %v318 = vpop.f32.mrb[0].mxu0
  %v319 = vadd.f32 0.0, %v318
  %v320 = vpop.f32.mrb[0].mxu0
  %321 = vmatprep.mubr.f32.mxu0 0.0
  %322 = vmatmul.mubr.f32.gmra.mrb[0].mxu0 %v49
  %v323 = vpop.f32.mrb[0].mxu0
  %v324 = vadd.f32 0.0, %v323
  %v325 = vpop.f32.mrb[0].mxu0
  %326 = vmatprep.mubr.f32.mxu0 0.0
  %327 = vmatmul.mubr.f32.gmra.mrb[0].mxu0 %v50
  %v328 = vpop.f32.mrb[0].mxu0
  %v329 = vadd.f32 0.0, %v328
  %v330 = vpop.f32.mrb[0].mxu0
  %331 = vmatprep.mubr.f32.mxu0 0.0
  %332 = vmatmul.mubr.f32.gmra.mrb[0].mxu0 %v51
  %v333 = vpop.f32.mrb[0].mxu0
  %v334 = vadd.f32 0.0, %v333
  %v335 = vpop.f32.mrb[0].mxu0
  %336 = vmatprep.mubr.f32.mxu0 0.0
  %337 = vmatmul.mubr.f32.gmra.mrb[0].mxu0 %v52
  %v338 = vpop.f32.mrb[0].mxu0
  %v339 = vadd.f32 0.0, %v338
  %v340 = vpop.f32.mrb[0].mxu0
  %341 = vmatprep.mubr.f32.mxu0 0.0
  %342 = vmatmul.mubr.f32.gmra.mrb[0].mxu0 %v53
  %v343 = vpop.f32.mrb[0].mxu0
  %v344 = vadd.f32 0.0, %v343
  %v345 = vpop.f32.mrb[0].mxu0
  %346 = vmatprep.mubr.f32.mxu0 0.0
  %347 = vmatmul.mubr.f32.gmra.mrb[0].mxu0 %v54
  %v348 = vpop.f32.mrb[0].mxu0
  %v349 = vadd.f32 0.0, %v348
  %v350 = vpop.f32.mrb[0].mxu0
  %351 = vmatprep.mubr.f32.mxu0 0.0
  %352 = vmatmul.mubr.f32.gmra.mrb[0].mxu0 %v55
  %v353 = vpop.f32.mrb[0].mxu0
  %v354 = vadd.f32 0.0, %v353
  %v355 = vpop.f32.mrb[0].mxu0
  %356 = vmatprep.mubr.f32.mxu0 0.0
  %357 = vmatmul.mubr.f32.gmra.mrb[0].mxu0 %v56
  %v358 = vpop.f32.mrb[0].mxu0
  %v359 = vadd.f32 0.0, %v358
  %v360 = vpop.f32.mrb[0].mxu0
  %361 = vmatprep.mubr.f32.mxu0 0.0
  %362 = vmatmul.mubr.f32.gmra.mrb[0].mxu0 %v57
  %v363 = vpop.f32.mrb[0].mxu0
  %v364 = vadd.f32 0.0, %v363
  %v365 = vpop.f32.mrb[0].mxu0
  %366 = vmatprep.mubr.f32.mxu0 0.0
  %367 = vmatmul.mubr.f32.gmra.mrb[0].mxu0 %v58
  %v368 = vpop.f32.mrb[0].mxu0
  %v369 = vadd.f32 0.0, %v368
  %v370 = vpop.f32.mrb[0].mxu0
  %371 = vmatprep.mubr.f32.mxu0 0.0
  %372 = vmatmul.mubr.f32.gmra.mrb[0].mxu0 %v59
  %v373 = vpop.f32.mrb[0].mxu0
  %v374 = vadd.f32 0.0, %v373
  %v375 = vpop.f32.mrb[0].mxu0
  %376 = vmatprep.mubr.f32.mxu0 0.0
  %377 = vmatmul.mubr.f32.gmra.mrb[0].mxu0 %v60
  %v378 = vpop.f32.mrb[0].mxu0
  %v379 = vadd.f32 0.0, %v378
  %v380 = vpop.f32.mrb[0].mxu0
  %381 = vmatprep.mubr.f32.mxu0 0.0
  %382 = vmatmul.mubr.f32.gmra.mrb[0].mxu0 %v61
  %v383 = vpop.f32.mrb[0].mxu0
  %v384 = vadd.f32 0.0, %v383
  %v385 = vpop.f32.mrb[0].mxu0
  %386 = vmatprep.mubr.f32.mxu0 0.0
  %387 = vmatmul.mubr.f32.gmra.mrb[0].mxu0 %v62
  %v388 = vpop.f32.mrb[0].mxu0
  %v389 = vadd.f32 0.0, %v388
  %v390 = vpop.f32.mrb[0].mxu0
  %391 = vmatprep.mubr.f32.mxu0 0.0
  %392 = vmatmul.mubr.f32.gmra.mrb[0].mxu0 %v63
  %v393 = vpop.f32.mrb[0].mxu0
  %v394 = vadd.f32 0.0, %v393
  %v395 = vpop.f32.mrb[0].mxu0
  %396 = vmatprep.mubr.f32.mxu0 0.0
  %397 = vmatmul.mubr.f32.gmra.mrb[0].mxu0 %v64
  %v398 = vpop.f32.mrb[0].mxu0
  %v399 = vadd.f32 0.0, %v398
  %v400 = vpop.f32.mrb[0].mxu0
  %401 = vmatprep.mubr.f32.mxu0 0.0
  %402 = vmatmul.mubr.f32.gmra.mrb[0].mxu0 %v65
  %v403 = vpop.f32.mrb[0].mxu0
  %v404 = vadd.f32 0.0, %v403
  %v405 = vpop.f32.mrb[0].mxu0
  %406 = vmatprep.mubr.f32.mxu0 0.0
  %407 = vmatmul.mubr.f32.gmra.mrb[0].mxu0 %v66
  %v408 = vpop.f32.mrb[0].mxu0
  %v409 = vadd.f32 0.0, %v408
  %v410 = vpop.f32.mrb[0].mxu0
  %411 = vmatprep.mubr.f32.mxu0 0.0
  %412 = vmatmul.mubr.f32.gmra.mrb[0].mxu0 %v67
  %v413 = vpop.f32.mrb[0].mxu0
  %v414 = vadd.f32 0.0, %v413
  %v415 = vpop.f32.mrb[0].mxu0
  %416 = vmatprep.mubr.f32.mxu0 0.0
  %417 = vmatmul.mubr.f32.gmra.mrb[0].mxu0 %v68
  %v418 = vpop.f32.mrb[0].mxu0
  %v419 = vadd.f32 0.0, %v418
  %v420 = vpop.f32.mrb[0].mxu0
  %421 = vmatprep.mubr.f32.mxu0 0.0
  %422 = vmatmul.mubr.f32.gmra.mrb[0].mxu0 %v69
  %v423 = vpop.f32.mrb[0].mxu0
  %v424 = vadd.f32 0.0, %v423
  %v425 = vpop.f32.mrb[0].mxu0
  %426 = vmatprep.mubr.f32.mxu0 0.0
  %427 = vmatmul.mubr.f32.gmra.mrb[0].mxu0 %v70
  %v428 = vpop.f32.mrb[0].mxu0
  %v429 = vadd.f32 0.0, %v428
  %v430 = vpop.f32.mrb[0].mxu0
  %431 = vmatprep.mubr.f32.mxu0 0.0
  %432 = vmatmul.mubr.f32.gmra.mrb[0].mxu0 %v71
  %v433 = vpop.f32.mrb[0].mxu0
  %v434 = vadd.f32 0.0, %v433
  %v435 = vpop.f32.mrb[0].mxu0
  %436 = vmatprep.mubr.f32.mxu0 0.0
  %437 = vmatmul.mubr.f32.gmra.mrb[0].mxu0 %v72
  %v438 = vpop.f32.mrb[0].mxu0
  %v439 = vadd.f32 0.0, %v438
  %v440 = vpop.f32.mrb[0].mxu0
  %441 = vmatprep.mubr.f32.mxu0 0.0
  %442 = vmatmul.mubr.f32.gmra.mrb[0].mxu0 %v73
  %v443 = vpop.f32.mrb[0].mxu0
  %v444 = vadd.f32 0.0, %v443
  %v445 = vpop.f32.mrb[0].mxu0
  %446 = vmatprep.mubr.f32.mxu0 0.0
  %447 = vmatmul.mubr.f32.gmra.mrb[0].mxu0 %v74
  %v448 = vpop.f32.mrb[0].mxu0
  %v449 = vadd.f32 0.0, %v448
  %v450 = vpop.f32.mrb[0].mxu0
  %451 = vmatprep.mubr.f32.mxu0 0.0
  %452 = vmatmul.mubr.f32.gmra.mrb[0].mxu0 %v75
  %v453 = vpop.f32.mrb[0].mxu0
  %v454 = vadd.f32 0.0, %v453
  %v455 = vpop.f32.mrb[0].mxu0
  %456 = vmatprep.mubr.f32.mxu0 0.0
  %457 = vmatmul.mubr.f32.gmra.mrb[0].mxu0 %v76
  %v458 = vpop.f32.mrb[0].mxu0
  %v459 = vadd.f32 0.0, %v458
  %v460 = vpop.f32.mrb[0].mxu0
  %461 = vmatprep.mubr.f32.mxu0 0.0
  %462 = vmatmul.mubr.f32.gmra.mrb[0].mxu0 %v77
  %v463 = vpop.f32.mrb[0].mxu0
  %v464 = vadd.f32 0.0, %v463
  %v465 = vpop.f32.mrb[0].mxu0
  %466 = vmatprep.mubr.f32.mxu0 0.0
  %467 = vmatmul.mubr.f32.gmra.mrb[0].mxu0 %v78
  %v468 = vpop.f32.mrb[0].mxu0
  %v469 = vadd.f32 0.0, %v468
  %v470 = vpop.f32.mrb[0].mxu0
  %471 = vmatprep.mubr.f32.mxu0 0.0
  %472 = vmatmul.mubr.f32.gmra.mrb[0].mxu0 %v79
  %v473 = vpop.f32.mrb[0].mxu0
  %v474 = vadd.f32 0.0, %v473
  %v475 = vpop.f32.mrb[0].mxu0
  %476 = vmatprep.mubr.f32.mxu0 0.0
  %477 = vmatmul.mubr.f32.gmra.mrb[0].mxu0 %v80
  %v478 = vpop.f32.mrb[0].mxu0
  %v479 = vadd.f32 0.0, %v478
  %v480 = vpop.f32.mrb[0].mxu0
  %481 = vdwg.mxu0
  %v482 = vld [vmem:[%s2] sm:$0x1]
  %v484 = vlaneseq
  %v485 = vshrl.u32 %v484, 7
  %v486 = vsub.s32 0, %v485
  %v487 = vrot.slane %v482, %v486
  %v489 = vmul.f32 %v164, %v487
  %v490 = vmul.f32 %v169, %v487
  %v491 = vmul.f32 %v174, %v487
  %v492 = vmul.f32 %v179, %v487
  %v493 = vmul.f32 %v184, %v487
  %v494 = vmul.f32 %v189, %v487
  %v495 = vmul.f32 %v194, %v487
  %v496 = vmul.f32 %v199, %v487
  %v497 = vmul.f32 %v204, %v487
  %v498 = vmul.f32 %v209, %v487
  %v499 = vmul.f32 %v214, %v487
  %v500 = vmul.f32 %v219, %v487
  %v501 = vmul.f32 %v224, %v487
  %v502 = vmul.f32 %v229, %v487
  %v503 = vmul.f32 %v234, %v487
  %v504 = vmul.f32 %v239, %v487
  %v505 = vmul.f32 %v244, %v487
  %v506 = vmul.f32 %v249, %v487
  %v507 = vmul.f32 %v254, %v487
  %v508 = vmul.f32 %v259, %v487
  %v509 = vmul.f32 %v264, %v487
  %v510 = vmul.f32 %v269, %v487
  %v511 = vmul.f32 %v274, %v487
  %v512 = vmul.f32 %v279, %v487
  %v513 = vmul.f32 %v284, %v487
  %v514 = vmul.f32 %v289, %v487
  %v515 = vmul.f32 %v294, %v487
  %v516 = vmul.f32 %v299, %v487
  %v517 = vmul.f32 %v304, %v487
  %v518 = vmul.f32 %v309, %v487
  %v519 = vmul.f32 %v314, %v487
  %v520 = vmul.f32 %v319, %v487
  %v521 = vmul.f32 %v324, %v487
  %v522 = vmul.f32 %v329, %v487
  %v523 = vmul.f32 %v334, %v487
  %v524 = vmul.f32 %v339, %v487
  %v525 = vmul.f32 %v344, %v487
  %v526 = vmul.f32 %v349, %v487
  %v527 = vmul.f32 %v354, %v487
  %v528 = vmul.f32 %v359, %v487
  %v529 = vmul.f32 %v364, %v487
  %v530 = vmul.f32 %v369, %v487
  %v531 = vmul.f32 %v374, %v487
  %v532 = vmul.f32 %v379, %v487
  %v533 = vmul.f32 %v384, %v487
  %v534 = vmul.f32 %v389, %v487
  %v535 = vmul.f32 %v394, %v487
  %v536 = vmul.f32 %v399, %v487
  %v537 = vmul.f32 %v404, %v487
  %v538 = vmul.f32 %v409, %v487
  %v539 = vmul.f32 %v414, %v487
  %v540 = vmul.f32 %v419, %v487
  %v541 = vmul.f32 %v424, %v487
  %v542 = vmul.f32 %v429, %v487
  %v543 = vmul.f32 %v434, %v487
  %v544 = vmul.f32 %v439, %v487
  %v545 = vmul.f32 %v444, %v487
  %v546 = vmul.f32 %v449, %v487
  %v547 = vmul.f32 %v454, %v487
  %v548 = vmul.f32 %v459, %v487
  %v549 = vmul.f32 %v464, %v487
  %v550 = vmul.f32 %v469, %v487
  %v551 = vmul.f32 %v474, %v487
  %v552 = vmul.f32 %v479, %v487
  %v553 = vld [vmem:[%s3] sm:$0x1]
  %v555 = vlaneseq
  %v556 = vshrl.u32 %v555, 7
  %v557 = vsub.s32 0, %v556
  %v558 = vrot.slane %v553, %v557
  %v560 = vadd.f32 %v489, %v558
  %v561 = vadd.f32 %v490, %v558
  %v562 = vadd.f32 %v491, %v558
  %v563 = vadd.f32 %v492, %v558
  %v564 = vadd.f32 %v493, %v558
  %v565 = vadd.f32 %v494, %v558
  %v566 = vadd.f32 %v495, %v558
  %v567 = vadd.f32 %v496, %v558
  %v568 = vadd.f32 %v497, %v558
  %v569 = vadd.f32 %v498, %v558
  %v570 = vadd.f32 %v499, %v558
  %v571 = vadd.f32 %v500, %v558
  %v572 = vadd.f32 %v501, %v558
  %v573 = vadd.f32 %v502, %v558
  %v574 = vadd.f32 %v503, %v558
  %v575 = vadd.f32 %v504, %v558
  %v576 = vadd.f32 %v505, %v558
  %v577 = vadd.f32 %v506, %v558
  %v578 = vadd.f32 %v507, %v558
  %v579 = vadd.f32 %v508, %v558
  %v580 = vadd.f32 %v509, %v558
  %v581 = vadd.f32 %v510, %v558
  %v582 = vadd.f32 %v511, %v558
  %v583 = vadd.f32 %v512, %v558
  %v584 = vadd.f32 %v513, %v558
  %v585 = vadd.f32 %v514, %v558
  %v586 = vadd.f32 %v515, %v558
  %v587 = vadd.f32 %v516, %v558
  %v588 = vadd.f32 %v517, %v558
  %v589 = vadd.f32 %v518, %v558
  %v590 = vadd.f32 %v519, %v558
  %v591 = vadd.f32 %v520, %v558
  %v592 = vadd.f32 %v521, %v558
  %v593 = vadd.f32 %v522, %v558
  %v594 = vadd.f32 %v523, %v558
  %v595 = vadd.f32 %v524, %v558
  %v596 = vadd.f32 %v525, %v558
  %v597 = vadd.f32 %v526, %v558
  %v598 = vadd.f32 %v527, %v558
  %v599 = vadd.f32 %v528, %v558
  %v600 = vadd.f32 %v529, %v558
  %v601 = vadd.f32 %v530, %v558
  %v602 = vadd.f32 %v531, %v558
  %v603 = vadd.f32 %v532, %v558
  %v604 = vadd.f32 %v533, %v558
  %v605 = vadd.f32 %v534, %v558
  %v606 = vadd.f32 %v535, %v558
  %v607 = vadd.f32 %v536, %v558
  %v608 = vadd.f32 %v537, %v558
  %v609 = vadd.f32 %v538, %v558
  %v610 = vadd.f32 %v539, %v558
  %v611 = vadd.f32 %v540, %v558
  %v612 = vadd.f32 %v541, %v558
  %v613 = vadd.f32 %v542, %v558
  %v614 = vadd.f32 %v543, %v558
  %v615 = vadd.f32 %v544, %v558
  %v616 = vadd.f32 %v545, %v558
  %v617 = vadd.f32 %v546, %v558
  %v618 = vadd.f32 %v547, %v558
  %v619 = vadd.f32 %v548, %v558
  %v620 = vadd.f32 %v549, %v558
  %v621 = vadd.f32 %v550, %v558
  %v622 = vadd.f32 %v551, %v558
  %v623 = vadd.f32 %v552, %v558
  %v624 = vmax.f32 %v560, 0.0
  %v625 = vmax.f32 %v561, 0.0
  %v626 = vmax.f32 %v562, 0.0
  %v627 = vmax.f32 %v563, 0.0
  %v628 = vmax.f32 %v564, 0.0
  %v629 = vmax.f32 %v565, 0.0
  %v630 = vmax.f32 %v566, 0.0
  %v631 = vmax.f32 %v567, 0.0
  %v632 = vmax.f32 %v568, 0.0
  %v633 = vmax.f32 %v569, 0.0
  %v634 = vmax.f32 %v570, 0.0
  %v635 = vmax.f32 %v571, 0.0
  %v636 = vmax.f32 %v572, 0.0
  %v637 = vmax.f32 %v573, 0.0
  %v638 = vmax.f32 %v574, 0.0
  %v639 = vmax.f32 %v575, 0.0
  %v640 = vmax.f32 %v576, 0.0
  %v641 = vmax.f32 %v577, 0.0
  %v642 = vmax.f32 %v578, 0.0
  %v643 = vmax.f32 %v579, 0.0
  %v644 = vmax.f32 %v580, 0.0
  %v645 = vmax.f32 %v581, 0.0
  %v646 = vmax.f32 %v582, 0.0
  %v647 = vmax.f32 %v583, 0.0
  %v648 = vmax.f32 %v584, 0.0
  %v649 = vmax.f32 %v585, 0.0
  %v650 = vmax.f32 %v586, 0.0
  %v651 = vmax.f32 %v587, 0.0
  %v652 = vmax.f32 %v588, 0.0
  %v653 = vmax.f32 %v589, 0.0
  %v654 = vmax.f32 %v590, 0.0
  %v655 = vmax.f32 %v591, 0.0
  %v656 = vmax.f32 %v592, 0.0
  %v657 = vmax.f32 %v593, 0.0
  %v658 = vmax.f32 %v594, 0.0
  %v659 = vmax.f32 %v595, 0.0
  %v660 = vmax.f32 %v596, 0.0
  %v661 = vmax.f32 %v597, 0.0
  %v662 = vmax.f32 %v598, 0.0
  %v663 = vmax.f32 %v599, 0.0
  %v664 = vmax.f32 %v600, 0.0
  %v665 = vmax.f32 %v601, 0.0
  %v666 = vmax.f32 %v602, 0.0
  %v667 = vmax.f32 %v603, 0.0
  %v668 = vmax.f32 %v604, 0.0
  %v669 = vmax.f32 %v605, 0.0
  %v670 = vmax.f32 %v606, 0.0
  %v671 = vmax.f32 %v607, 0.0
  %v672 = vmax.f32 %v608, 0.0
  %v673 = vmax.f32 %v609, 0.0
  %v674 = vmax.f32 %v610, 0.0
  %v675 = vmax.f32 %v611, 0.0
  %v676 = vmax.f32 %v612, 0.0
  %v677 = vmax.f32 %v613, 0.0
  %v678 = vmax.f32 %v614, 0.0
  %v679 = vmax.f32 %v615, 0.0
  %v680 = vmax.f32 %v616, 0.0
  %v681 = vmax.f32 %v617, 0.0
  %v682 = vmax.f32 %v618, 0.0
  %v683 = vmax.f32 %v619, 0.0
  %v684 = vmax.f32 %v620, 0.0
  %v685 = vmax.f32 %v621, 0.0
  %v686 = vmax.f32 %v622, 0.0
  %v687 = vmax.f32 %v623, 0.0
  %688 = vst [vmem:[%s4] sm:$0xff] %v624
  %689 = vst [vmem:[%s4 + $0x8] sm:$0xff] %v625
  %690 = vst [vmem:[%s4 + $0x10] sm:$0xff] %v626
  %691 = vst [vmem:[%s4 + $0x18] sm:$0xff] %v627
  %692 = vst [vmem:[%s4 + $0x20] sm:$0xff] %v628
  %693 = vst [vmem:[%s4 + $0x28] sm:$0xff] %v629
  %694 = vst [vmem:[%s4 + $0x30] sm:$0xff] %v630
  %695 = vst [vmem:[%s4 + $0x38] sm:$0xff] %v631
  %696 = vst [vmem:[%s4 + $0x40] sm:$0xff] %v632
  %697 = vst [vmem:[%s4 + $0x48] sm:$0xff] %v633
  %698 = vst [vmem:[%s4 + $0x50] sm:$0xff] %v634
  %699 = vst [vmem:[%s4 + $0x58] sm:$0xff] %v635
  %700 = vst [vmem:[%s4 + $0x60] sm:$0xff] %v636
  %701 = vst [vmem:[%s4 + $0x68] sm:$0xff] %v637
  %702 = vst [vmem:[%s4 + $0x70] sm:$0xff] %v638
  %703 = vst [vmem:[%s4 + $0x78] sm:$0xff] %v639
  %704 = vst [vmem:[%s4 + $0x80] sm:$0xff] %v640
  %705 = vst [vmem:[%s4 + $0x88] sm:$0xff] %v641
  %706 = vst [vmem:[%s4 + $0x90] sm:$0xff] %v642
  %707 = vst [vmem:[%s4 + $0x98] sm:$0xff] %v643
  %708 = vst [vmem:[%s4 + $0xa0] sm:$0xff] %v644
  %709 = vst [vmem:[%s4 + $0xa8] sm:$0xff] %v645
  %710 = vst [vmem:[%s4 + $0xb0] sm:$0xff] %v646
  %711 = vst [vmem:[%s4 + $0xb8] sm:$0xff] %v647
  %712 = vst [vmem:[%s4 + $0xc0] sm:$0xff] %v648
  %713 = vst [vmem:[%s4 + $0xc8] sm:$0xff] %v649
  %714 = vst [vmem:[%s4 + $0xd0] sm:$0xff] %v650
  %715 = vst [vmem:[%s4 + $0xd8] sm:$0xff] %v651
  %716 = vst [vmem:[%s4 + $0xe0] sm:$0xff] %v652
  %717 = vst [vmem:[%s4 + $0xe8] sm:$0xff] %v653
  %718 = vst [vmem:[%s4 + $0xf0] sm:$0xff] %v654
  %719 = vst [vmem:[%s4 + $0xf8] sm:$0xff] %v655
  %720 = vst [vmem:[%s4 + $0x100] sm:$0xff] %v656
  %721 = vst [vmem:[%s4 + $0x108] sm:$0xff] %v657
  %722 = vst [vmem:[%s4 + $0x110] sm:$0xff] %v658
  %723 = vst [vmem:[%s4 + $0x118] sm:$0xff] %v659
  %724 = vst [vmem:[%s4 + $0x120] sm:$0xff] %v660
  %725 = vst [vmem:[%s4 + $0x128] sm:$0xff] %v661
  %726 = vst [vmem:[%s4 + $0x130] sm:$0xff] %v662
  %727 = vst [vmem:[%s4 + $0x138] sm:$0xff] %v663
  %728 = vst [vmem:[%s4 + $0x140] sm:$0xff] %v664
  %729 = vst [vmem:[%s4 + $0x148] sm:$0xff] %v665
  %730 = vst [vmem:[%s4 + $0x150] sm:$0xff] %v666
  %731 = vst [vmem:[%s4 + $0x158] sm:$0xff] %v667
  %732 = vst [vmem:[%s4 + $0x160] sm:$0xff] %v668
  %733 = vst [vmem:[%s4 + $0x168] sm:$0xff] %v669
  %734 = vst [vmem:[%s4 + $0x170] sm:$0xff] %v670
  %735 = vst [vmem:[%s4 + $0x178] sm:$0xff] %v671
  %736 = vst [vmem:[%s4 + $0x180] sm:$0xff] %v672
  %737 = vst [vmem:[%s4 + $0x188] sm:$0xff] %v673
  %738 = vst [vmem:[%s4 + $0x190] sm:$0xff] %v674
  %739 = vst [vmem:[%s4 + $0x198] sm:$0xff] %v675
  %740 = vst [vmem:[%s4 + $0x1a0] sm:$0xff] %v676
  %741 = vst [vmem:[%s4 + $0x1a8] sm:$0xff] %v677
  %742 = vst [vmem:[%s4 + $0x1b0] sm:$0xff] %v678
  %743 = vst [vmem:[%s4 + $0x1b8] sm:$0xff] %v679
  %744 = vst [vmem:[%s4 + $0x1c0] sm:$0xff] %v680
  %745 = vst [vmem:[%s4 + $0x1c8] sm:$0xff] %v681
  %746 = vst [vmem:[%s4 + $0x1d0] sm:$0xff] %v682
  %747 = vst [vmem:[%s4 + $0x1d8] sm:$0xff] %v683
  %748 = vst [vmem:[%s4 + $0x1e0] sm:$0xff] %v684
  %749 = vst [vmem:[%s4 + $0x1e8] sm:$0xff] %v685
  %750 = vst [vmem:[%s4 + $0x1f0] sm:$0xff] %v686
  %751 = vst [vmem:[%s4 + $0x1f8] sm:$0xff] %v687
  // Predicated region
  $region18: #{bottleneck_forward.2} parent=0 // pred_check
    _
  $region19: #{bottleneck_forward.2} parent=0 // pred_check_branch
    %753 = sbr.rel (0) target = $region21
  $region20: #{bottleneck_forward.2} parent=0 // pred_region
    _
  $region21: #{bottleneck_forward.2} parent=0 // pred_fallthru
    _
  // Predicated region
  $region22: #{bottleneck_forward.2} parent=0 // pred_check
    _
  $region23: #{bottleneck_forward.2} parent=0 // pred_check_branch
    %755 = sbr.rel (0) target = $region25
  $region24: #{bottleneck_forward.2} parent=0 // pred_region
    _
  $region25: #{bottleneck_forward.2} parent=0 // pred_fallthru
    _

// kernel: bottleneck_forward.3
$region0: #{bottleneck_forward.3}
  #allocation0 [shape = 'u32[]', space=smem, size = 0x4, offset = 0x4, fixed_abs, tag = 'smem constant byte address 0x4 - core index']
  #allocation1 [shape = 'u32[144,128]{1,0:T(1,128)}', space=vmem, size = 0x12000, scoped, tag = 'internal scratch']
  %s0 = inlined_call_operand.vmem [shape: f32[2,18,18,128], index: 0, kind: input, shape index: {}]
  %s1 = inlined_call_operand.vmem [shape: f32[9,128], index: 1, kind: input, shape index: {}]
  %s2 = inlined_call_operand.vmem [shape: f32[1,128], index: 2, kind: input, shape index: {}]
  %s3 = inlined_call_operand.vmem [shape: f32[1,128], index: 3, kind: input, shape index: {}]
  %s4 = inlined_call_operand.vmem [shape: f32[128,128], index: 4, kind: input, shape index: {}]
  %s5 = inlined_call_operand.vmem [shape: f32[1,128], index: 5, kind: input, shape index: {}]
  %s6 = inlined_call_operand.vmem [shape: f32[1,128], index: 6, kind: input, shape index: {}]
  %s7 = inlined_call_operand.vmem [shape: f32[2,16,16,128], index: 7, kind: input, shape index: {}]
  %s8 = inlined_call_operand.vmem [shape: f32[2,16,16,128], index: 8, kind: output, shape index: {}]
  %s9 = sld [smem:[#allocation0]]
  $region65: #{bottleneck_forward.3} parent=0
    _
  %s11 = ssub.s32 1, %s9
  %s12 = scalar_select 0, %s11, %s9
  loop: start=0, step=1, limit=4
  $region2: #{bottleneck_forward.3} parent=0 // loop_pre_header
    _
  $region3: #{bottleneck_forward.3} parent=0 // loop_header
    %s14 = sphi 0, %s18
    %p15 = scmp.ge.s32.totalorder %s14, 4
    %s24 = sphi 0, %s26
    %s27 = sphi 0, %s24
    %s28 = sphi 0, %s27
    %s44 = sphi 0, %s28
    %s48 = sphi 0, %s48
    %s50 = sphi 0, %s48
    %s51 = sphi 0, %s50
    %s65 = sphi 0, %s51
    %s69 = sphi 0, %s69
    %s71 = sphi 0, %s69
    %s72 = sphi 0, %s71
    %s86 = sphi 0, %s72
    %s90 = sphi 0, %s90
    %s92 = sphi 0, %s90
    %s93 = sphi 0, %s92
    %s107 = sphi 0, %s93
    %s111 = sphi 0, %s111
    %s113 = sphi 0, %s111
    %s114 = sphi 0, %s113
    %s128 = sphi 0, %s114
    %s132 = sphi 0, %s132
    %s134 = sphi 0, %s132
    %s135 = sphi 0, %s134
    %s149 = sphi 0, %s135
    %s153 = sphi 0, %s153
    %s155 = sphi 0, %s153
    %s156 = sphi 0, %s155
    %s170 = sphi 0, %s156
    %s176 = sphi 0, %s178
    %s179 = sphi 0, %s176
    %s180 = sphi 0, %s179
    %s196 = sphi 0, %s180
    %s202 = sphi 0, %s204
    %s205 = sphi 0, %s202
    %s206 = sphi 0, %s205
    %s222 = sphi 0, %s206
  $region4: #{bottleneck_forward.3} parent=0 // loop_header_branch
    %17 = sbr.rel (%p15) target = $region8
  $region5: #{bottleneck_forward.3} parent=0 // loop_body
    %s19 = ssub.s32 %s14, 1
    %s20 = ssub.s32 %s14, 2
    %s21 = sadd.s32 %s14, 1
    %s22 = ssub.s32 %s14, %s21
    %p23 = scmp.eq.s32.totalorder %s22, 0
    %s25 = sadd.s32 %s24, 1
    %s26 = scalar_select %p23, %s24, %s25
    %p29 = pneg %p23
    %p30 = scmp.eq.s32.totalorder %s14, 1
    %p31 = por %p29, %p30
    %p32 = scmp.ne.s32.totalorder %s24, %s27
    %p33 = scmp.eq.s32.totalorder %s14, 0
    %p34 = por %p32, %p33
    %p35 = scmp.ne.s32.totalorder %s24, %s27
    %p36 = scmp.eq.s32.totalorder %s19, 1
    %p37 = por %p35, %p36
    %p38 = scmp.ne.s32.totalorder %s27, %s28
    %p39 = scmp.eq.s32.totalorder %s19, 0
    %p40 = por %p38, %p39
    %p41 = scmp.ne.s32.totalorder %s27, %s28
    %p42 = scmp.eq.s32.totalorder %s20, 1
    %p43 = por %p41, %p42
    %p45 = scmp.ne.s32.totalorder %s28, %s44
    %p46 = scmp.eq.s32.totalorder %s20, 0
    %p47 = por %p45, %p46
    %s49 = sadd.s32 %s48, 1
    %p52 = scmp.eq.s32.totalorder %s14, 1
    %p53 = scmp.ne.s32.totalorder %s48, %s50
    %p54 = scmp.eq.s32.totalorder %s14, 0
    %p55 = por %p53, %p54
    %p56 = scmp.ne.s32.totalorder %s48, %s50
    %p57 = scmp.eq.s32.totalorder %s19, 1
    %p58 = por %p56, %p57
    %p59 = scmp.ne.s32.totalorder %s50, %s51
    %p60 = scmp.eq.s32.totalorder %s19, 0
    %p61 = por %p59, %p60
    %p62 = scmp.ne.s32.totalorder %s50, %s51
    %p63 = scmp.eq.s32.totalorder %s20, 1
    %p64 = por %p62, %p63
    %p66 = scmp.ne.s32.totalorder %s51, %s65
    %p67 = scmp.eq.s32.totalorder %s20, 0
    %p68 = por %p66, %p67
    %s70 = sadd.s32 %s69, 1
    %p73 = scmp.eq.s32.totalorder %s14, 1
    %p74 = scmp.ne.s32.totalorder %s69, %s71
    %p75 = scmp.eq.s32.totalorder %s14, 0
    %p76 = por %p74, %p75
    %p77 = scmp.ne.s32.totalorder %s69, %s71
    %p78 = scmp.eq.s32.totalorder %s19, 1
    %p79 = por %p77, %p78
    %p80 = scmp.ne.s32.totalorder %s71, %s72
    %p81 = scmp.eq.s32.totalorder %s19, 0
    %p82 = por %p80, %p81
    %p83 = scmp.ne.s32.totalorder %s71, %s72
    %p84 = scmp.eq.s32.totalorder %s20, 1
    %p85 = por %p83, %p84
    %p87 = scmp.ne.s32.totalorder %s72, %s86
    %p88 = scmp.eq.s32.totalorder %s20, 0
    %p89 = por %p87, %p88
    %s91 = sadd.s32 %s90, 1
    %p94 = scmp.eq.s32.totalorder %s14, 1
    %p95 = scmp.ne.s32.totalorder %s90, %s92
    %p96 = scmp.eq.s32.totalorder %s14, 0
    %p97 = por %p95, %p96
    %p98 = scmp.ne.s32.totalorder %s90, %s92
    %p99 = scmp.eq.s32.totalorder %s19, 1
    %p100 = por %p98, %p99
    %p101 = scmp.ne.s32.totalorder %s92, %s93
    %p102 = scmp.eq.s32.totalorder %s19, 0
    %p103 = por %p101, %p102
    %p104 = scmp.ne.s32.totalorder %s92, %s93
    %p105 = scmp.eq.s32.totalorder %s20, 1
    %p106 = por %p104, %p105
    %p108 = scmp.ne.s32.totalorder %s93, %s107
    %p109 = scmp.eq.s32.totalorder %s20, 0
    %p110 = por %p108, %p109
    %s112 = sadd.s32 %s111, 1
    %p115 = scmp.eq.s32.totalorder %s14, 1
    %p116 = scmp.ne.s32.totalorder %s111, %s113
    %p117 = scmp.eq.s32.totalorder %s14, 0
    %p118 = por %p116, %p117
    %p119 = scmp.ne.s32.totalorder %s111, %s113
    %p120 = scmp.eq.s32.totalorder %s19, 1
    %p121 = por %p119, %p120
    %p122 = scmp.ne.s32.totalorder %s113, %s114
    %p123 = scmp.eq.s32.totalorder %s19, 0
    %p124 = por %p122, %p123
    %p125 = scmp.ne.s32.totalorder %s113, %s114
    %p126 = scmp.eq.s32.totalorder %s20, 1
    %p127 = por %p125, %p126
    %p129 = scmp.ne.s32.totalorder %s114, %s128
    %p130 = scmp.eq.s32.totalorder %s20, 0
    %p131 = por %p129, %p130
    %s133 = sadd.s32 %s132, 1
    %p136 = scmp.eq.s32.totalorder %s14, 1
    %p137 = scmp.ne.s32.totalorder %s132, %s134
    %p138 = scmp.eq.s32.totalorder %s14, 0
    %p139 = por %p137, %p138
    %p140 = scmp.ne.s32.totalorder %s132, %s134
    %p141 = scmp.eq.s32.totalorder %s19, 1
    %p142 = por %p140, %p141
    %p143 = scmp.ne.s32.totalorder %s134, %s135
    %p144 = scmp.eq.s32.totalorder %s19, 0
    %p145 = por %p143, %p144
    %p146 = scmp.ne.s32.totalorder %s134, %s135
    %p147 = scmp.eq.s32.totalorder %s20, 1
    %p148 = por %p146, %p147
    %p150 = scmp.ne.s32.totalorder %s135, %s149
    %p151 = scmp.eq.s32.totalorder %s20, 0
    %p152 = por %p150, %p151
    %s154 = sadd.s32 %s153, 1
    %p157 = scmp.eq.s32.totalorder %s14, 1
    %p158 = scmp.ne.s32.totalorder %s153, %s155
    %p159 = scmp.eq.s32.totalorder %s14, 0
    %p160 = por %p158, %p159
    %p161 = scmp.ne.s32.totalorder %s153, %s155
    %p162 = scmp.eq.s32.totalorder %s19, 1
    %p163 = por %p161, %p162
    %p164 = scmp.ne.s32.totalorder %s155, %s156
    %p165 = scmp.eq.s32.totalorder %s19, 0
    %p166 = por %p164, %p165
    %p167 = scmp.ne.s32.totalorder %s155, %s156
    %p168 = scmp.eq.s32.totalorder %s20, 1
    %p169 = por %p167, %p168
    %p171 = scmp.ne.s32.totalorder %s156, %s170
    %p172 = scmp.eq.s32.totalorder %s20, 0
    %p173 = por %p171, %p172
    %s174 = ssub.s32 %s14, %s21
    %p175 = scmp.eq.s32.totalorder %s174, 0
    %s177 = sadd.s32 %s176, 1
    %s178 = scalar_select %p175, %s176, %s177
    %p181 = pneg %p175
    %p182 = scmp.eq.s32.totalorder %s14, 1
    %p183 = por %p181, %p182
    %p184 = scmp.ne.s32.totalorder %s176, %s179
    %p185 = scmp.eq.s32.totalorder %s14, 0
    %p186 = por %p184, %p185
    %p187 = scmp.ne.s32.totalorder %s176, %s179
    %p188 = scmp.eq.s32.totalorder %s19, 1
    %p189 = por %p187, %p188
    %p190 = scmp.ne.s32.totalorder %s179, %s180
    %p191 = scmp.eq.s32.totalorder %s19, 0
    %p192 = por %p190, %p191
    %p193 = scmp.ne.s32.totalorder %s179, %s180
    %p194 = scmp.eq.s32.totalorder %s20, 1
    %p195 = por %p193, %p194
    %p197 = scmp.ne.s32.totalorder %s180, %s196
    %p198 = scmp.eq.s32.totalorder %s20, 0
    %p199 = por %p197, %p198
    %s200 = ssub.s32 %s14, %s21
    %p201 = scmp.eq.s32.totalorder %s200, 0
    %s203 = sadd.s32 %s202, 1
    %s204 = scalar_select %p201, %s202, %s203
    %p207 = pneg %p201
    %p208 = scmp.eq.s32.totalorder %s14, 1
    %p209 = por %p207, %p208
    %p210 = scmp.ne.s32.totalorder %s202, %s205
    %p211 = scmp.eq.s32.totalorder %s14, 0
    %p212 = por %p210, %p211
    %p213 = scmp.ne.s32.totalorder %s202, %s205
    %p214 = scmp.eq.s32.totalorder %s19, 1
    %p215 = por %p213, %p214
    %p216 = scmp.ne.s32.totalorder %s205, %s206
    %p217 = scmp.eq.s32.totalorder %s19, 0
    %p218 = por %p216, %p217
    %p219 = scmp.ne.s32.totalorder %s205, %s206
    %p220 = scmp.eq.s32.totalorder %s20, 1
    %p221 = por %p219, %p220
    %p223 = scmp.ne.s32.totalorder %s206, %s222
    %p224 = scmp.eq.s32.totalorder %s20, 0
    %p225 = por %p223, %p224
    %p226 = scmp.le.s32.totalorder 1, %s14
    %p227 = scmp.lt.s32.totalorder %s14, 3
    %p228 = pnand %p226, %p227
    %p229 = pneg %p228
    // Predicated region
    $region9: #{bottleneck_forward.3} parent=5 // pred_check
      _
    $region10: #{bottleneck_forward.3} parent=5 // pred_check_branch
      %231 = sbr.rel (%p228) target = $region12
    $region11: #{bottleneck_forward.3} parent=5 // pred_region
      %s232 = ssub.s32 %s14, 1
      // Predicated region
      $region13: #{bottleneck_forward.3} parent=11 // pred_check
        %p233 = pneg %p61
      $region14: #{bottleneck_forward.3} parent=11 // pred_check_branch
        %235 = sbr.rel (%p233) target = $region16
      $region15: #{bottleneck_forward.3} parent=11 // pred_region
        _
      $region16: #{bottleneck_forward.3} parent=11 // pred_fallthru
        _
      // Predicated region
      $region17: #{bottleneck_forward.3} parent=11 // pred_check
        %p236 = pneg %p82
      $region18: #{bottleneck_forward.3} parent=11 // pred_check_branch
        %238 = sbr.rel (%p236) target = $region20
      $region19: #{bottleneck_forward.3} parent=11 // pred_region
        _
      $region20: #{bottleneck_forward.3} parent=11 // pred_fallthru
        _
      // Predicated region
      $region21: #{bottleneck_forward.3} parent=11 // pred_check
        %p239 = pneg %p103
      $region22: #{bottleneck_forward.3} parent=11 // pred_check_branch
        %241 = sbr.rel (%p239) target = $region24
      $region23: #{bottleneck_forward.3} parent=11 // pred_region
        _
      $region24: #{bottleneck_forward.3} parent=11 // pred_fallthru
        _
      // Predicated region
      $region25: #{bottleneck_forward.3} parent=11 // pred_check
        %p242 = pneg %p124
      $region26: #{bottleneck_forward.3} parent=11 // pred_check_branch
        %244 = sbr.rel (%p242) target = $region28
      $region27: #{bottleneck_forward.3} parent=11 // pred_region
        _
      $region28: #{bottleneck_forward.3} parent=11 // pred_fallthru
        _
      // Predicated region
      $region29: #{bottleneck_forward.3} parent=11 // pred_check
        %p245 = pneg %p145
      $region30: #{bottleneck_forward.3} parent=11 // pred_check_branch
        %247 = sbr.rel (%p245) target = $region32
      $region31: #{bottleneck_forward.3} parent=11 // pred_region
        _
      $region32: #{bottleneck_forward.3} parent=11 // pred_fallthru
        _
      // Predicated region
      $region33: #{bottleneck_forward.3} parent=11 // pred_check
        %p248 = pneg %p166
      $region34: #{bottleneck_forward.3} parent=11 // pred_check_branch
        %250 = sbr.rel (%p248) target = $region36
      $region35: #{bottleneck_forward.3} parent=11 // pred_region
        _
      $region36: #{bottleneck_forward.3} parent=11 // pred_fallthru
        _
    $region12: #{bottleneck_forward.3} parent=5 // pred_fallthru
      _
    %p251 = scmp.lt.s32.totalorder %s14, 2
    // Predicated region
    $region37: #{bottleneck_forward.3} parent=5 // pred_check
      %p252 = pneg %p251
    $region38: #{bottleneck_forward.3} parent=5 // pred_check_branch
      %254 = sbr.rel (%p252) target = $region40
    $region39: #{bottleneck_forward.3} parent=5 // pred_region
      // Predicated region
      $region41: #{bottleneck_forward.3} parent=39 // pred_check
        %p255 = pneg %p34
      $region42: #{bottleneck_forward.3} parent=39 // pred_check_branch
        %257 = sbr.rel (%p255) target = $region44
      $region43: #{bottleneck_forward.3} parent=39 // pred_region
        %p258 = scmp.lt.s32.totalorder %s14, 1
        %s259 = scalar_select %p258, %s14, 1
        %s260 = smul.addr %s259, 54
        %s261 = smul.addr %s260, 8
        %s262 = scalar_lea.vmem %s0, %s261
      $region44: #{bottleneck_forward.3} parent=39 // pred_fallthru
        _
      // Predicated region
      $region45: #{bottleneck_forward.3} parent=39 // pred_check
        %p263 = pneg %p186
      $region46: #{bottleneck_forward.3} parent=39 // pred_check_branch
        %265 = sbr.rel (%p263) target = $region48
      $region47: #{bottleneck_forward.3} parent=39 // pred_region
        %p266 = scmp.lt.s32.totalorder %s14, 1
        %s267 = scalar_select %p266, %s14, 1
        %s268 = smul.addr %s267, 32
        %s269 = smul.addr %s268, 8
        %s270 = scalar_lea.vmem %s7, %s269
      $region48: #{bottleneck_forward.3} parent=39 // pred_fallthru
        _
    $region40: #{bottleneck_forward.3} parent=5 // pred_fallthru
      _
    %p271 = scmp.le.s32.totalorder 1, %s14
    %p272 = scmp.lt.s32.totalorder %s14, 3
    %p273 = pnand %p271, %p272
    %p274 = pneg %p273
    // Predicated region
    $region49: #{bottleneck_forward.3} parent=5 // pred_check
      _
    $region50: #{bottleneck_forward.3} parent=5 // pred_check_branch
      %276 = sbr.rel (%p273) target = $region52
    $region51: #{bottleneck_forward.3} parent=5 // pred_region
      %s277 = ssub.s32 %s14, 1
      %p278 = scmp.lt.s32.totalorder %s19, 1
      %s279 = scalar_select %p278, %s19, 1
      %s280 = smul.addr %s279, 54
      %s281 = smul.addr %s280, 8
      %s282 = scalar_lea.vmem %s0, %s281
      %p283 = pneg %p40
      %p284 = pneg %p37
      %p285 = pneg %p61
      %p286 = pneg %p58
      %p287 = pneg %p82
      %p288 = pneg %p79
      %p289 = pneg %p103
      %p290 = pneg %p100
      %p291 = pneg %p124
      %p292 = pneg %p121
      %p293 = pneg %p145
      %p294 = pneg %p142
      %p295 = pneg %p166
      %p296 = pneg %p163
      %p297 = scmp.lt.s32.totalorder %s19, 1
      %s298 = scalar_select %p297, %s19, 1
      %s299 = smul.addr %s298, 32
      %s300 = smul.addr %s299, 8
      %s301 = scalar_lea.vmem %s7, %s300
      %p302 = pneg %p192
      %p303 = pneg %p189
      %p304 = pneg %p218
      %p305 = pneg %p215
      %p306 = scmp.lt.s32.totalorder %s19, 1
      %s307 = scalar_select %p306, %s19, 1
      %s308 = smul.addr %s307, 32
      %s309 = smul.addr %s308, 8
      %s310 = scalar_lea.vmem %s8, %s309
      %p311 = scmp.lt.s32.totalorder %s19, 1
      %s312 = scalar_select %p311, %s19, 1
      %s313 = smul.addr %s312, 54
      %s314 = smul.addr %s313, 8
      %s315 = scalar_lea.vmem %s0, %s314
      %p316 = scmp.lt.s32.totalorder %s19, 1
      %s317 = scalar_select %p316, %s19, 1
      %s318 = smul.addr %s317, 32
      %s319 = smul.addr %s318, 8
      %s320 = scalar_lea.vmem %s7, %s319
      %p321 = scmp.lt.s32.totalorder %s19, 1
      %s322 = scalar_select %p321, %s19, 1
      %s323 = smul.addr %s322, 32
      %s324 = smul.addr %s323, 8
      %s325 = scalar_lea.vmem %s8, %s324
      %v326 = vld [vmem:[%s1] sm:$0xff]
      %v327 = vld [vmem:[%s1 + $0x8] sm:$0x1]
      %v328 = vld [vmem:[%s2] sm:$0x1]
      %v329 = vld [vmem:[%s3] sm:$0x1]
      %v330 = vld [vmem:[%s315] sm:$0xff]
      %v331 = vld [vmem:[%s315 + $0x8] sm:$0xff]
      %v332 = vld [vmem:[%s315 + $0x18] sm:$0xff]
      %v333 = vld [vmem:[%s315 + $0x20] sm:$0xff]
      %v334 = vld [vmem:[%s315 + $0x30] sm:$0xff]
      %v335 = vld [vmem:[%s315 + $0x38] sm:$0xff]
      %v336 = vld [vmem:[%s315 + $0x48] sm:$0xff]
      %v337 = vld [vmem:[%s315 + $0x50] sm:$0xff]
      %v338 = vld [vmem:[%s315 + $0x60] sm:$0xff]
      %v339 = vld [vmem:[%s315 + $0x68] sm:$0xff]
      %v340 = vld [vmem:[%s315 + $0x78] sm:$0xff]
      %v341 = vld [vmem:[%s315 + $0x80] sm:$0xff]
      %v342 = vld [vmem:[%s315 + $0x90] sm:$0xff]
      %v343 = vld [vmem:[%s315 + $0x98] sm:$0xff]
      %v344 = vld [vmem:[%s315 + $0xa8] sm:$0xff]
      %v345 = vld [vmem:[%s315 + $0xb0] sm:$0xff]
      %v346 = vld [vmem:[%s315 + $0xc0] sm:$0xff]
      %v347 = vld [vmem:[%s315 + $0xc8] sm:$0xff]
      %v348 = vld [vmem:[%s315 + $0xd8] sm:$0xff]
      %v349 = vld [vmem:[%s315 + $0xe0] sm:$0xff]
      %v350 = vld [vmem:[%s315 + $0xf0] sm:$0xff]
      %v351 = vld [vmem:[%s315 + $0xf8] sm:$0xff]
      %v352 = vld [vmem:[%s315 + $0x108] sm:$0xff]
      %v353 = vld [vmem:[%s315 + $0x110] sm:$0xff]
      %v354 = vld [vmem:[%s315 + $0x120] sm:$0xff]
      %v355 = vld [vmem:[%s315 + $0x128] sm:$0xff]
      %v356 = vld [vmem:[%s315 + $0x138] sm:$0xff]
      %v357 = vld [vmem:[%s315 + $0x140] sm:$0xff]
      %v358 = vld [vmem:[%s315 + $0x150] sm:$0xff]
      %v359 = vld [vmem:[%s315 + $0x158] sm:$0xff]
      %v360 = vld [vmem:[%s315 + $0x168] sm:$0xff]
      %v361 = vld [vmem:[%s315 + $0x170] sm:$0xff]
      %v362 = vlaneseq
      %v363 = vshrl.u32 %v362, 7
      %v364 = vsub.s32 0, %v363
      %v365 = vrot.slane %v326, %v364
      %v366 = vmul.f32 %v330, %v365
      %v367 = vmul.f32 %v331, %v365
      %v368 = vmul.f32 %v332, %v365
      %v369 = vmul.f32 %v333, %v365
      %v370 = vmul.f32 %v334, %v365
      %v371 = vmul.f32 %v335, %v365
      %v372 = vmul.f32 %v336, %v365
      %v373 = vmul.f32 %v337, %v365
      %v374 = vmul.f32 %v338, %v365
      %v375 = vmul.f32 %v339, %v365
      %v376 = vmul.f32 %v340, %v365
      %v377 = vmul.f32 %v341, %v365
      %v378 = vmul.f32 %v342, %v365
      %v379 = vmul.f32 %v343, %v365
      %v380 = vmul.f32 %v344, %v365
      %v381 = vmul.f32 %v345, %v365
      %v382 = vmul.f32 %v346, %v365
      %v383 = vmul.f32 %v347, %v365
      %v384 = vmul.f32 %v348, %v365
      %v385 = vmul.f32 %v349, %v365
      %v386 = vmul.f32 %v350, %v365
      %v387 = vmul.f32 %v351, %v365
      %v388 = vmul.f32 %v352, %v365
      %v389 = vmul.f32 %v353, %v365
      %v390 = vmul.f32 %v354, %v365
      %v391 = vmul.f32 %v355, %v365
      %v392 = vmul.f32 %v356, %v365
      %v393 = vmul.f32 %v357, %v365
      %v394 = vmul.f32 %v358, %v365
      %v395 = vmul.f32 %v359, %v365
      %v396 = vmul.f32 %v360, %v365
      %v397 = vmul.f32 %v361, %v365
      %v398 = vld [vmem:[%s315 + $0x1] sm:$0xff]
      %v399 = vld [vmem:[%s315 + $0x9] sm:$0xff]
      %v400 = vld [vmem:[%s315 + $0x19] sm:$0xff]
      %v401 = vld [vmem:[%s315 + $0x21] sm:$0xff]
      %v402 = vld [vmem:[%s315 + $0x31] sm:$0xff]
      %v403 = vld [vmem:[%s315 + $0x39] sm:$0xff]
      %v404 = vld [vmem:[%s315 + $0x49] sm:$0xff]
      %v405 = vld [vmem:[%s315 + $0x51] sm:$0xff]
      %v406 = vld [vmem:[%s315 + $0x61] sm:$0xff]
      %v407 = vld [vmem:[%s315 + $0x69] sm:$0xff]
      %v408 = vld [vmem:[%s315 + $0x79] sm:$0xff]
      %v409 = vld [vmem:[%s315 + $0x81] sm:$0xff]
      %v410 = vld [vmem:[%s315 + $0x91] sm:$0xff]
      %v411 = vld [vmem:[%s315 + $0x99] sm:$0xff]
      %v412 = vld [vmem:[%s315 + $0xa9] sm:$0xff]
      %v413 = vld [vmem:[%s315 + $0xb1] sm:$0xff]
      %v414 = vld [vmem:[%s315 + $0xc1] sm:$0xff]
      %v415 = vld [vmem:[%s315 + $0xc9] sm:$0xff]
      %v416 = vld [vmem:[%s315 + $0xd9] sm:$0xff]
      %v417 = vld [vmem:[%s315 + $0xe1] sm:$0xff]
      %v418 = vld [vmem:[%s315 + $0xf1] sm:$0xff]
      %v419 = vld [vmem:[%s315 + $0xf9] sm:$0xff]
      %v420 = vld [vmem:[%s315 + $0x109] sm:$0xff]
      %v421 = vld [vmem:[%s315 + $0x111] sm:$0xff]
      %v422 = vld [vmem:[%s315 + $0x121] sm:$0xff]
      %v423 = vld [vmem:[%s315 + $0x129] sm:$0xff]
      %v424 = vld [vmem:[%s315 + $0x139] sm:$0xff]
      %v425 = vld [vmem:[%s315 + $0x141] sm:$0xff]
      %v426 = vld [vmem:[%s315 + $0x151] sm:$0xff]
      %v427 = vld [vmem:[%s315 + $0x159] sm:$0xff]
      %v428 = vld [vmem:[%s315 + $0x169] sm:$0xff]
      %v429 = vld [vmem:[%s315 + $0x171] sm:$0xff]
      %v430 = vlaneseq
      %v431 = vshrl.u32 %v430, 7
      %v432 = vsub.s32 1, %v431
      %v433 = vrot.slane %v326, %v432
      %v434 = vmul.f32 %v398, %v433
      %v435 = vmul.f32 %v399, %v433
      %v436 = vmul.f32 %v400, %v433
      %v437 = vmul.f32 %v401, %v433
      %v438 = vmul.f32 %v402, %v433
      %v439 = vmul.f32 %v403, %v433
      %v440 = vmul.f32 %v404, %v433
      %v441 = vmul.f32 %v405, %v433
      %v442 = vmul.f32 %v406, %v433
      %v443 = vmul.f32 %v407, %v433
      %v444 = vmul.f32 %v408, %v433
      %v445 = vmul.f32 %v409, %v433
      %v446 = vmul.f32 %v410, %v433
      %v447 = vmul.f32 %v411, %v433
      %v448 = vmul.f32 %v412, %v433
      %v449 = vmul.f32 %v413, %v433
      %v450 = vmul.f32 %v414, %v433
      %v451 = vmul.f32 %v415, %v433
      %v452 = vmul.f32 %v416, %v433
      %v453 = vmul.f32 %v417, %v433
      %v454 = vmul.f32 %v418, %v433
      %v455 = vmul.f32 %v419, %v433
      %v456 = vmul.f32 %v420, %v433
      %v457 = vmul.f32 %v421, %v433
      %v458 = vmul.f32 %v422, %v433
      %v459 = vmul.f32 %v423, %v433
      %v460 = vmul.f32 %v424, %v433
      %v461 = vmul.f32 %v425, %v433
      %v462 = vmul.f32 %v426, %v433
      %v463 = vmul.f32 %v427, %v433
      %v464 = vmul.f32 %v428, %v433
      %v465 = vmul.f32 %v429, %v433
      %v466 = vadd.f32 %v366, %v434
      %v467 = vadd.f32 %v367, %v435
      %v468 = vadd.f32 %v368, %v436
      %v469 = vadd.f32 %v369, %v437
      %v470 = vadd.f32 %v370, %v438
      %v471 = vadd.f32 %v371, %v439
      %v472 = vadd.f32 %v372, %v440
      %v473 = vadd.f32 %v373, %v441
      %v474 = vadd.f32 %v374, %v442
      %v475 = vadd.f32 %v375, %v443
      %v476 = vadd.f32 %v376, %v444
      %v477 = vadd.f32 %v377, %v445
      %v478 = vadd.f32 %v378, %v446
      %v479 = vadd.f32 %v379, %v447
      %v480 = vadd.f32 %v380, %v448
      %v481 = vadd.f32 %v381, %v449
      %v482 = vadd.f32 %v382, %v450
      %v483 = vadd.f32 %v383, %v451
      %v484 = vadd.f32 %v384, %v452
      %v485 = vadd.f32 %v385, %v453
      %v486 = vadd.f32 %v386, %v454
      %v487 = vadd.f32 %v387, %v455
      %v488 = vadd.f32 %v388, %v456
      %v489 = vadd.f32 %v389, %v457
      %v490 = vadd.f32 %v390, %v458
      %v491 = vadd.f32 %v391, %v459
      %v492 = vadd.f32 %v392, %v460
      %v493 = vadd.f32 %v393, %v461
      %v494 = vadd.f32 %v394, %v462
      %v495 = vadd.f32 %v395, %v463
      %v496 = vadd.f32 %v396, %v464
      %v497 = vadd.f32 %v397, %v465
      %v498 = vld [vmem:[%s315 + $0x2] sm:$0xff]
      %v499 = vld [vmem:[%s315 + $0xa] sm:$0xff]
      %v500 = vld [vmem:[%s315 + $0x1a] sm:$0xff]
      %v501 = vld [vmem:[%s315 + $0x22] sm:$0xff]
      %v502 = vld [vmem:[%s315 + $0x32] sm:$0xff]
      %v503 = vld [vmem:[%s315 + $0x3a] sm:$0xff]
      %v504 = vld [vmem:[%s315 + $0x4a] sm:$0xff]
      %v505 = vld [vmem:[%s315 + $0x52] sm:$0xff]
      %v506 = vld [vmem:[%s315 + $0x62] sm:$0xff]
      %v507 = vld [vmem:[%s315 + $0x6a] sm:$0xff]
      %v508 = vld [vmem:[%s315 + $0x7a] sm:$0xff]
      %v509 = vld [vmem:[%s315 + $0x82] sm:$0xff]
      %v510 = vld [vmem:[%s315 + $0x92] sm:$0xff]
      %v511 = vld [vmem:[%s315 + $0x9a] sm:$0xff]
      %v512 = vld [vmem:[%s315 + $0xaa] sm:$0xff]
      %v513 = vld [vmem:[%s315 + $0xb2] sm:$0xff]
      %v514 = vld [vmem:[%s315 + $0xc2] sm:$0xff]
      %v515 = vld [vmem:[%s315 + $0xca] sm:$0xff]
      %v516 = vld [vmem:[%s315 + $0xda] sm:$0xff]
      %v517 = vld [vmem:[%s315 + $0xe2] sm:$0xff]
      %v518 = vld [vmem:[%s315 + $0xf2] sm:$0xff]
      %v519 = vld [vmem:[%s315 + $0xfa] sm:$0xff]
      %v520 = vld [vmem:[%s315 + $0x10a] sm:$0xff]
      %v521 = vld [vmem:[%s315 + $0x112] sm:$0xff]
      %v522 = vld [vmem:[%s315 + $0x122] sm:$0xff]
      %v523 = vld [vmem:[%s315 + $0x12a] sm:$0xff]
      %v524 = vld [vmem:[%s315 + $0x13a] sm:$0xff]
      %v525 = vld [vmem:[%s315 + $0x142] sm:$0xff]
      %v526 = vld [vmem:[%s315 + $0x152] sm:$0xff]
      %v527 = vld [vmem:[%s315 + $0x15a] sm:$0xff]
      %v528 = vld [vmem:[%s315 + $0x16a] sm:$0xff]
      %v529 = vld [vmem:[%s315 + $0x172] sm:$0xff]
      %v530 = vlaneseq
      %v531 = vshrl.u32 %v530, 7
      %v532 = vsub.s32 2, %v531
      %v533 = vrot.slane %v326, %v532
      %v534 = vmul.f32 %v498, %v533
      %v535 = vmul.f32 %v499, %v533
      %v536 = vmul.f32 %v500, %v533
      %v537 = vmul.f32 %v501, %v533
      %v538 = vmul.f32 %v502, %v533
      %v539 = vmul.f32 %v503, %v533
      %v540 = vmul.f32 %v504, %v533
      %v541 = vmul.f32 %v505, %v533
      %v542 = vmul.f32 %v506, %v533
      %v543 = vmul.f32 %v507, %v533
      %v544 = vmul.f32 %v508, %v533
      %v545 = vmul.f32 %v509, %v533
      %v546 = vmul.f32 %v510, %v533
      %v547 = vmul.f32 %v511, %v533
      %v548 = vmul.f32 %v512, %v533
      %v549 = vmul.f32 %v513, %v533
      %v550 = vmul.f32 %v514, %v533
      %v551 = vmul.f32 %v515, %v533
      %v552 = vmul.f32 %v516, %v533
      %v553 = vmul.f32 %v517, %v533
      %v554 = vmul.f32 %v518, %v533
      %v555 = vmul.f32 %v519, %v533
      %v556 = vmul.f32 %v520, %v533
      %v557 = vmul.f32 %v521, %v533
      %v558 = vmul.f32 %v522, %v533
      %v559 = vmul.f32 %v523, %v533
      %v560 = vmul.f32 %v524, %v533
      %v561 = vmul.f32 %v525, %v533
      %v562 = vmul.f32 %v526, %v533
      %v563 = vmul.f32 %v527, %v533
      %v564 = vmul.f32 %v528, %v533
      %v565 = vmul.f32 %v529, %v533
      %v566 = vadd.f32 %v466, %v534
      %v567 = vadd.f32 %v467, %v535
      %v568 = vadd.f32 %v468, %v536
      %v569 = vadd.f32 %v469, %v537
      %v570 = vadd.f32 %v470, %v538
      %v571 = vadd.f32 %v471, %v539
      %v572 = vadd.f32 %v472, %v540
      %v573 = vadd.f32 %v473, %v541
      %v574 = vadd.f32 %v474, %v542
      %v575 = vadd.f32 %v475, %v543
      %v576 = vadd.f32 %v476, %v544
      %v577 = vadd.f32 %v477, %v545
      %v578 = vadd.f32 %v478, %v546
      %v579 = vadd.f32 %v479, %v547
      %v580 = vadd.f32 %v480, %v548
      %v581 = vadd.f32 %v481, %v549
      %v582 = vadd.f32 %v482, %v550
      %v583 = vadd.f32 %v483, %v551
      %v584 = vadd.f32 %v484, %v552
      %v585 = vadd.f32 %v485, %v553
      %v586 = vadd.f32 %v486, %v554
      %v587 = vadd.f32 %v487, %v555
      %v588 = vadd.f32 %v488, %v556
      %v589 = vadd.f32 %v489, %v557
      %v590 = vadd.f32 %v490, %v558
      %v591 = vadd.f32 %v491, %v559
      %v592 = vadd.f32 %v492, %v560
      %v593 = vadd.f32 %v493, %v561
      %v594 = vadd.f32 %v494, %v562
      %v595 = vadd.f32 %v495, %v563
      %v596 = vadd.f32 %v496, %v564
      %v597 = vadd.f32 %v497, %v565
      %s598 = scalar_lea.vmem %s315, 24
      %v599 = vld [vmem:[%s598] sm:$0xff]
      %v600 = vld [vmem:[%s598 + $0x8] sm:$0xff]
      %v601 = vld [vmem:[%s598 + $0x18] sm:$0xff]
      %v602 = vld [vmem:[%s598 + $0x20] sm:$0xff]
      %v603 = vld [vmem:[%s598 + $0x30] sm:$0xff]
      %v604 = vld [vmem:[%s598 + $0x38] sm:$0xff]
      %v605 = vld [vmem:[%s598 + $0x48] sm:$0xff]
      %v606 = vld [vmem:[%s598 + $0x50] sm:$0xff]
      %v607 = vld [vmem:[%s598 + $0x60] sm:$0xff]
      %v608 = vld [vmem:[%s598 + $0x68] sm:$0xff]
      %v609 = vld [vmem:[%s598 + $0x78] sm:$0xff]
      %v610 = vld [vmem:[%s598 + $0x80] sm:$0xff]
      %v611 = vld [vmem:[%s598 + $0x90] sm:$0xff]
      %v612 = vld [vmem:[%s598 + $0x98] sm:$0xff]
      %v613 = vld [vmem:[%s598 + $0xa8] sm:$0xff]
      %v614 = vld [vmem:[%s598 + $0xb0] sm:$0xff]
      %v615 = vld [vmem:[%s598 + $0xc0] sm:$0xff]
      %v616 = vld [vmem:[%s598 + $0xc8] sm:$0xff]
      %v617 = vld [vmem:[%s598 + $0xd8] sm:$0xff]
      %v618 = vld [vmem:[%s598 + $0xe0] sm:$0xff]
      %v619 = vld [vmem:[%s598 + $0xf0] sm:$0xff]
      %v620 = vld [vmem:[%s598 + $0xf8] sm:$0xff]
      %v621 = vld [vmem:[%s598 + $0x108] sm:$0xff]
      %v622 = vld [vmem:[%s598 + $0x110] sm:$0xff]
      %v623 = vld [vmem:[%s598 + $0x120] sm:$0xff]
      %v624 = vld [vmem:[%s598 + $0x128] sm:$0xff]
      %v625 = vld [vmem:[%s598 + $0x138] sm:$0xff]
      %v626 = vld [vmem:[%s598 + $0x140] sm:$0xff]
      %v627 = vld [vmem:[%s598 + $0x150] sm:$0xff]
      %v628 = vld [vmem:[%s598 + $0x158] sm:$0xff]
      %v629 = vld [vmem:[%s598 + $0x168] sm:$0xff]
      %v630 = vld [vmem:[%s598 + $0x170] sm:$0xff]
      %v631 = vlaneseq
      %v632 = vshrl.u32 %v631, 7
      %v633 = vsub.s32 3, %v632
      %v634 = vrot.slane %v326, %v633
      %v635 = vmul.f32 %v599, %v634
      %v636 = vmul.f32 %v600, %v634
      %v637 = vmul.f32 %v601, %v634
      %v638 = vmul.f32 %v602, %v634
      %v639 = vmul.f32 %v603, %v634
      %v640 = vmul.f32 %v604, %v634
      %v641 = vmul.f32 %v605, %v634
      %v642 = vmul.f32 %v606, %v634
      %v643 = vmul.f32 %v607, %v634
      %v644 = vmul.f32 %v608, %v634
      %v645 = vmul.f32 %v609, %v634
      %v646 = vmul.f32 %v610, %v634
      %v647 = vmul.f32 %v611, %v634
      %v648 = vmul.f32 %v612, %v634
      %v649 = vmul.f32 %v613, %v634
      %v650 = vmul.f32 %v614, %v634
      %v651 = vmul.f32 %v615, %v634
      %v652 = vmul.f32 %v616, %v634
      %v653 = vmul.f32 %v617, %v634
      %v654 = vmul.f32 %v618, %v634
      %v655 = vmul.f32 %v619, %v634
      %v656 = vmul.f32 %v620, %v634
      %v657 = vmul.f32 %v621, %v634
      %v658 = vmul.f32 %v622, %v634
      %v659 = vmul.f32 %v623, %v634
      %v660 = vmul.f32 %v624, %v634
      %v661 = vmul.f32 %v625, %v634
      %v662 = vmul.f32 %v626, %v634
      %v663 = vmul.f32 %v627, %v634
      %v664 = vmul.f32 %v628, %v634
      %v665 = vmul.f32 %v629, %v634
      %v666 = vmul.f32 %v630, %v634
      %v667 = vadd.f32 %v566, %v635
      %v668 = vadd.f32 %v567, %v636
      %v669 = vadd.f32 %v568, %v637
      %v670 = vadd.f32 %v569, %v638
      %v671 = vadd.f32 %v570, %v639
      %v672 = vadd.f32 %v571, %v640
      %v673 = vadd.f32 %v572, %v641
      %v674 = vadd.f32 %v573, %v642
      %v675 = vadd.f32 %v574, %v643
      %v676 = vadd.f32 %v575, %v644
      %v677 = vadd.f32 %v576, %v645
      %v678 = vadd.f32 %v577, %v646
      %v679 = vadd.f32 %v578, %v647
      %v680 = vadd.f32 %v579, %v648
      %v681 = vadd.f32 %v580, %v649
      %v682 = vadd.f32 %v581, %v650
      %v683 = vadd.f32 %v582, %v651
      %v684 = vadd.f32 %v583, %v652
      %v685 = vadd.f32 %v584, %v653
      %v686 = vadd.f32 %v585, %v654
      %v687 = vadd.f32 %v586, %v655
      %v688 = vadd.f32 %v587, %v656
      %v689 = vadd.f32 %v588, %v657
      %v690 = vadd.f32 %v589, %v658
      %v691 = vadd.f32 %v590, %v659
      %v692 = vadd.f32 %v591, %v660
      %v693 = vadd.f32 %v592, %v661
      %v694 = vadd.f32 %v593, %v662
      %v695 = vadd.f32 %v594, %v663
      %v696 = vadd.f32 %v595, %v664
      %v697 = vadd.f32 %v596, %v665
      %v698 = vadd.f32 %v597, %v666
      %v699 = vld [vmem:[%s598 + $0x1] sm:$0xff]
      %v700 = vld [vmem:[%s598 + $0x9] sm:$0xff]
      %v701 = vld [vmem:[%s598 + $0x19] sm:$0xff]
      %v702 = vld [vmem:[%s598 + $0x21] sm:$0xff]
      %v703 = vld [vmem:[%s598 + $0x31] sm:$0xff]
      %v704 = vld [vmem:[%s598 + $0x39] sm:$0xff]
      %v705 = vld [vmem:[%s598 + $0x49] sm:$0xff]
      %v706 = vld [vmem:[%s598 + $0x51] sm:$0xff]
      %v707 = vld [vmem:[%s598 + $0x61] sm:$0xff]
      %v708 = vld [vmem:[%s598 + $0x69] sm:$0xff]
      %v709 = vld [vmem:[%s598 + $0x79] sm:$0xff]
      %v710 = vld [vmem:[%s598 + $0x81] sm:$0xff]
      %v711 = vld [vmem:[%s598 + $0x91] sm:$0xff]
      %v712 = vld [vmem:[%s598 + $0x99] sm:$0xff]
      %v713 = vld [vmem:[%s598 + $0xa9] sm:$0xff]
      %v714 = vld [vmem:[%s598 + $0xb1] sm:$0xff]
      %v715 = vld [vmem:[%s598 + $0xc1] sm:$0xff]
      %v716 = vld [vmem:[%s598 + $0xc9] sm:$0xff]
      %v717 = vld [vmem:[%s598 + $0xd9] sm:$0xff]
      %v718 = vld [vmem:[%s598 + $0xe1] sm:$0xff]
      %v719 = vld [vmem:[%s598 + $0xf1] sm:$0xff]
      %v720 = vld [vmem:[%s598 + $0xf9] sm:$0xff]
      %v721 = vld [vmem:[%s598 + $0x109] sm:$0xff]
      %v722 = vld [vmem:[%s598 + $0x111] sm:$0xff]
      %v723 = vld [vmem:[%s598 + $0x121] sm:$0xff]
      %v724 = vld [vmem:[%s598 + $0x129] sm:$0xff]
      %v725 = vld [vmem:[%s598 + $0x139] sm:$0xff]
      %v726 = vld [vmem:[%s598 + $0x141] sm:$0xff]
      %v727 = vld [vmem:[%s598 + $0x151] sm:$0xff]
      %v728 = vld [vmem:[%s598 + $0x159] sm:$0xff]
      %v729 = vld [vmem:[%s598 + $0x169] sm:$0xff]
      %v730 = vld [vmem:[%s598 + $0x171] sm:$0xff]
      %v731 = vlaneseq
      %v732 = vshrl.u32 %v731, 7
      %v733 = vsub.s32 4, %v732
      %v734 = vrot.slane %v326, %v733
      %v735 = vmul.f32 %v699, %v734
      %v736 = vmul.f32 %v700, %v734
      %v737 = vmul.f32 %v701, %v734
      %v738 = vmul.f32 %v702, %v734
      %v739 = vmul.f32 %v703, %v734
      %v740 = vmul.f32 %v704, %v734
      %v741 = vmul.f32 %v705, %v734
      %v742 = vmul.f32 %v706, %v734
      %v743 = vmul.f32 %v707, %v734
      %v744 = vmul.f32 %v708, %v734
      %v745 = vmul.f32 %v709, %v734
      %v746 = vmul.f32 %v710, %v734
      %v747 = vmul.f32 %v711, %v734
      %v748 = vmul.f32 %v712, %v734
      %v749 = vmul.f32 %v713, %v734
      %v750 = vmul.f32 %v714, %v734
      %v751 = vmul.f32 %v715, %v734
      %v752 = vmul.f32 %v716, %v734
      %v753 = vmul.f32 %v717, %v734
      %v754 = vmul.f32 %v718, %v734
      %v755 = vmul.f32 %v719, %v734
      %v756 = vmul.f32 %v720, %v734
      %v757 = vmul.f32 %v721, %v734
      %v758 = vmul.f32 %v722, %v734
      %v759 = vmul.f32 %v723, %v734
      %v760 = vmul.f32 %v724, %v734
      %v761 = vmul.f32 %v725, %v734
      %v762 = vmul.f32 %v726, %v734
      %v763 = vmul.f32 %v727, %v734
      %v764 = vmul.f32 %v728, %v734
      %v765 = vmul.f32 %v729, %v734
      %v766 = vmul.f32 %v730, %v734
      %v767 = vadd.f32 %v667, %v735
      %v768 = vadd.f32 %v668, %v736
      %v769 = vadd.f32 %v669, %v737
      %v770 = vadd.f32 %v670, %v738
      %v771 = vadd.f32 %v671, %v739
      %v772 = vadd.f32 %v672, %v740
      %v773 = vadd.f32 %v673, %v741
      %v774 = vadd.f32 %v674, %v742
      %v775 = vadd.f32 %v675, %v743
      %v776 = vadd.f32 %v676, %v744
      %v777 = vadd.f32 %v677, %v745
      %v778 = vadd.f32 %v678, %v746
      %v779 = vadd.f32 %v679, %v747
      %v780 = vadd.f32 %v680, %v748
      %v781 = vadd.f32 %v681, %v749
      %v782 = vadd.f32 %v682, %v750
      %v783 = vadd.f32 %v683, %v751
      %v784 = vadd.f32 %v684, %v752
      %v785 = vadd.f32 %v685, %v753
      %v786 = vadd.f32 %v686, %v754
      %v787 = vadd.f32 %v687, %v755
      %v788 = vadd.f32 %v688, %v756
      %v789 = vadd.f32 %v689, %v757
      %v790 = vadd.f32 %v690, %v758
      %v791 = vadd.f32 %v691, %v759
      %v792 = vadd.f32 %v692, %v760
      %v793 = vadd.f32 %v693, %v761
      %v794 = vadd.f32 %v694, %v762
      %v795 = vadd.f32 %v695, %v763
      %v796 = vadd.f32 %v696, %v764
      %v797 = vadd.f32 %v697, %v765
      %v798 = vadd.f32 %v698, %v766
      %v799 = vld [vmem:[%s598 + $0x2] sm:$0xff]
      %v800 = vld [vmem:[%s598 + $0xa] sm:$0xff]
      %v801 = vld [vmem:[%s598 + $0x1a] sm:$0xff]
      %v802 = vld [vmem:[%s598 + $0x22] sm:$0xff]
      %v803 = vld [vmem:[%s598 + $0x32] sm:$0xff]
      %v804 = vld [vmem:[%s598 + $0x3a] sm:$0xff]
      %v805 = vld [vmem:[%s598 + $0x4a] sm:$0xff]
      %v806 = vld [vmem:[%s598 + $0x52] sm:$0xff]
      %v807 = vld [vmem:[%s598 + $0x62] sm:$0xff]
      %v808 = vld [vmem:[%s598 + $0x6a] sm:$0xff]
      %v809 = vld [vmem:[%s598 + $0x7a] sm:$0xff]
      %v810 = vld [vmem:[%s598 + $0x82] sm:$0xff]
      %v811 = vld [vmem:[%s598 + $0x92] sm:$0xff]
      %v812 = vld [vmem:[%s598 + $0x9a] sm:$0xff]
      %v813 = vld [vmem:[%s598 + $0xaa] sm:$0xff]
      %v814 = vld [vmem:[%s598 + $0xb2] sm:$0xff]
      %v815 = vld [vmem:[%s598 + $0xc2] sm:$0xff]
      %v816 = vld [vmem:[%s598 + $0xca] sm:$0xff]
      %v817 = vld [vmem:[%s598 + $0xda] sm:$0xff]
      %v818 = vld [vmem:[%s598 + $0xe2] sm:$0xff]
      %v819 = vld [vmem:[%s598 + $0xf2] sm:$0xff]
      %v820 = vld [vmem:[%s598 + $0xfa] sm:$0xff]
      %v821 = vld [vmem:[%s598 + $0x10a] sm:$0xff]
      %v822 = vld [vmem:[%s598 + $0x112] sm:$0xff]
      %v823 = vld [vmem:[%s598 + $0x122] sm:$0xff]
      %v824 = vld [vmem:[%s598 + $0x12a] sm:$0xff]
      %v825 = vld [vmem:[%s598 + $0x13a] sm:$0xff]
      %v826 = vld [vmem:[%s598 + $0x142] sm:$0xff]
      %v827 = vld [vmem:[%s598 + $0x152] sm:$0xff]
      %v828 = vld [vmem:[%s598 + $0x15a] sm:$0xff]
      %v829 = vld [vmem:[%s598 + $0x16a] sm:$0xff]
      %v830 = vld [vmem:[%s598 + $0x172] sm:$0xff]
      %v831 = vlaneseq
      %v832 = vshrl.u32 %v831, 7
      %v833 = vsub.s32 5, %v832
      %v834 = vrot.slane %v326, %v833
      %v835 = vmul.f32 %v799, %v834
      %v836 = vmul.f32 %v800, %v834
      %v837 = vmul.f32 %v801, %v834
      %v838 = vmul.f32 %v802, %v834
      %v839 = vmul.f32 %v803, %v834
      %v840 = vmul.f32 %v804, %v834
      %v841 = vmul.f32 %v805, %v834
      %v842 = vmul.f32 %v806, %v834
      %v843 = vmul.f32 %v807, %v834
      %v844 = vmul.f32 %v808, %v834
      %v845 = vmul.f32 %v809, %v834
      %v846 = vmul.f32 %v810, %v834
      %v847 = vmul.f32 %v811, %v834
      %v848 = vmul.f32 %v812, %v834
      %v849 = vmul.f32 %v813, %v834
      %v850 = vmul.f32 %v814, %v834
      %v851 = vmul.f32 %v815, %v834
      %v852 = vmul.f32 %v816, %v834
      %v853 = vmul.f32 %v817, %v834
      %v854 = vmul.f32 %v818, %v834
      %v855 = vmul.f32 %v819, %v834
      %v856 = vmul.f32 %v820, %v834
      %v857 = vmul.f32 %v821, %v834
      %v858 = vmul.f32 %v822, %v834
      %v859 = vmul.f32 %v823, %v834
      %v860 = vmul.f32 %v824, %v834
      %v861 = vmul.f32 %v825, %v834
      %v862 = vmul.f32 %v826, %v834
      %v863 = vmul.f32 %v827, %v834
      %v864 = vmul.f32 %v828, %v834
      %v865 = vmul.f32 %v829, %v834
      %v866 = vmul.f32 %v830, %v834
      %v867 = vadd.f32 %v767, %v835
      %v868 = vadd.f32 %v768, %v836
      %v869 = vadd.f32 %v769, %v837
      %v870 = vadd.f32 %v770, %v838
      %v871 = vadd.f32 %v771, %v839
      %v872 = vadd.f32 %v772, %v840
      %v873 = vadd.f32 %v773, %v841
      %v874 = vadd.f32 %v774, %v842
      %v875 = vadd.f32 %v775, %v843
      %v876 = vadd.f32 %v776, %v844
      %v877 = vadd.f32 %v777, %v845
      %v878 = vadd.f32 %v778, %v846
      %v879 = vadd.f32 %v779, %v847
      %v880 = vadd.f32 %v780, %v848
      %v881 = vadd.f32 %v781, %v849
      %v882 = vadd.f32 %v782, %v850
      %v883 = vadd.f32 %v783, %v851
      %v884 = vadd.f32 %v784, %v852
      %v885 = vadd.f32 %v785, %v853
      %v886 = vadd.f32 %v786, %v854
      %v887 = vadd.f32 %v787, %v855
      %v888 = vadd.f32 %v788, %v856
      %v889 = vadd.f32 %v789, %v857
      %v890 = vadd.f32 %v790, %v858
      %v891 = vadd.f32 %v791, %v859
      %v892 = vadd.f32 %v792, %v860
      %v893 = vadd.f32 %v793, %v861
      %v894 = vadd.f32 %v794, %v862
      %v895 = vadd.f32 %v795, %v863
      %v896 = vadd.f32 %v796, %v864
      %v897 = vadd.f32 %v797, %v865
      %v898 = vadd.f32 %v798, %v866
      %s899 = scalar_lea.vmem %s315, 48
      %v900 = vld [vmem:[%s899] sm:$0xff]
      %v901 = vld [vmem:[%s899 + $0x8] sm:$0xff]
      %v902 = vld [vmem:[%s899 + $0x18] sm:$0xff]
      %v903 = vld [vmem:[%s899 + $0x20] sm:$0xff]
      %v904 = vld [vmem:[%s899 + $0x30] sm:$0xff]
      %v905 = vld [vmem:[%s899 + $0x38] sm:$0xff]
      %v906 = vld [vmem:[%s899 + $0x48] sm:$0xff]
      %v907 = vld [vmem:[%s899 + $0x50] sm:$0xff]
      %v908 = vld [vmem:[%s899 + $0x60] sm:$0xff]
      %v909 = vld [vmem:[%s899 + $0x68] sm:$0xff]
      %v910 = vld [vmem:[%s899 + $0x78] sm:$0xff]
      %v911 = vld [vmem:[%s899 + $0x80] sm:$0xff]
      %v912 = vld [vmem:[%s899 + $0x90] sm:$0xff]
      %v913 = vld [vmem:[%s899 + $0x98] sm:$0xff]
      %v914 = vld [vmem:[%s899 + $0xa8] sm:$0xff]
      %v915 = vld [vmem:[%s899 + $0xb0] sm:$0xff]
      %v916 = vld [vmem:[%s899 + $0xc0] sm:$0xff]
      %v917 = vld [vmem:[%s899 + $0xc8] sm:$0xff]
      %v918 = vld [vmem:[%s899 + $0xd8] sm:$0xff]
      %v919 = vld [vmem:[%s899 + $0xe0] sm:$0xff]
      %v920 = vld [vmem:[%s899 + $0xf0] sm:$0xff]
      %v921 = vld [vmem:[%s899 + $0xf8] sm:$0xff]
      %v922 = vld [vmem:[%s899 + $0x108] sm:$0xff]
      %v923 = vld [vmem:[%s899 + $0x110] sm:$0xff]
      %v924 = vld [vmem:[%s899 + $0x120] sm:$0xff]
      %v925 = vld [vmem:[%s899 + $0x128] sm:$0xff]
      %v926 = vld [vmem:[%s899 + $0x138] sm:$0xff]
      %v927 = vld [vmem:[%s899 + $0x140] sm:$0xff]
      %v928 = vld [vmem:[%s899 + $0x150] sm:$0xff]
      %v929 = vld [vmem:[%s899 + $0x158] sm:$0xff]
      %v930 = vld [vmem:[%s899 + $0x168] sm:$0xff]
      %v931 = vld [vmem:[%s899 + $0x170] sm:$0xff]
      %v932 = vlaneseq
      %v933 = vshrl.u32 %v932, 7
      %v934 = vsub.s32 6, %v933
      %v935 = vrot.slane %v326, %v934
      %v936 = vmul.f32 %v900, %v935
      %v937 = vmul.f32 %v901, %v935
      %v938 = vmul.f32 %v902, %v935
      %v939 = vmul.f32 %v903, %v935
      %v940 = vmul.f32 %v904, %v935
      %v941 = vmul.f32 %v905, %v935
      %v942 = vmul.f32 %v906, %v935
      %v943 = vmul.f32 %v907, %v935
      %v944 = vmul.f32 %v908, %v935
      %v945 = vmul.f32 %v909, %v935
      %v946 = vmul.f32 %v910, %v935
      %v947 = vmul.f32 %v911, %v935
      %v948 = vmul.f32 %v912, %v935
      %v949 = vmul.f32 %v913, %v935
      %v950 = vmul.f32 %v914, %v935
      %v951 = vmul.f32 %v915, %v935
      %v952 = vmul.f32 %v916, %v935
      %v953 = vmul.f32 %v917, %v935
      %v954 = vmul.f32 %v918, %v935
      %v955 = vmul.f32 %v919, %v935
      %v956 = vmul.f32 %v920, %v935
      %v957 = vmul.f32 %v921, %v935
      %v958 = vmul.f32 %v922, %v935
      %v959 = vmul.f32 %v923, %v935
      %v960 = vmul.f32 %v924, %v935
      %v961 = vmul.f32 %v925, %v935
      %v962 = vmul.f32 %v926, %v935
      %v963 = vmul.f32 %v927, %v935
      %v964 = vmul.f32 %v928, %v935
      %v965 = vmul.f32 %v929, %v935
      %v966 = vmul.f32 %v930, %v935
      %v967 = vmul.f32 %v931, %v935
      %v968 = vadd.f32 %v867, %v936
      %v969 = vadd.f32 %v868, %v937
      %v970 = vadd.f32 %v869, %v938
      %v971 = vadd.f32 %v870, %v939
      %v972 = vadd.f32 %v871, %v940
      %v973 = vadd.f32 %v872, %v941
      %v974 = vadd.f32 %v873, %v942
      %v975 = vadd.f32 %v874, %v943
      %v976 = vadd.f32 %v875, %v944
      %v977 = vadd.f32 %v876, %v945
      %v978 = vadd.f32 %v877, %v946
      %v979 = vadd.f32 %v878, %v947
      %v980 = vadd.f32 %v879, %v948
      %v981 = vadd.f32 %v880, %v949
      %v982 = vadd.f32 %v881, %v950
      %v983 = vadd.f32 %v882, %v951
      %v984 = vadd.f32 %v883, %v952
      %v985 = vadd.f32 %v884, %v953
      %v986 = vadd.f32 %v885, %v954
      %v987 = vadd.f32 %v886, %v955
      %v988 = vadd.f32 %v887, %v956
      %v989 = vadd.f32 %v888, %v957
      %v990 = vadd.f32 %v889, %v958
      %v991 = vadd.f32 %v890, %v959
      %v992 = vadd.f32 %v891, %v960
      %v993 = vadd.f32 %v892, %v961
      %v994 = vadd.f32 %v893, %v962
      %v995 = vadd.f32 %v894, %v963
      %v996 = vadd.f32 %v895, %v964
      %v997 = vadd.f32 %v896, %v965
      %v998 = vadd.f32 %v897, %v966
      %v999 = vadd.f32 %v898, %v967
      %v1000 = vld [vmem:[%s899 + $0x1] sm:$0xff]
      %v1001 = vld [vmem:[%s899 + $0x9] sm:$0xff]
      %v1002 = vld [vmem:[%s899 + $0x19] sm:$0xff]
      %v1003 = vld [vmem:[%s899 + $0x21] sm:$0xff]
      %v1004 = vld [vmem:[%s899 + $0x31] sm:$0xff]
      %v1005 = vld [vmem:[%s899 + $0x39] sm:$0xff]
      %v1006 = vld [vmem:[%s899 + $0x49] sm:$0xff]
      %v1007 = vld [vmem:[%s899 + $0x51] sm:$0xff]
      %v1008 = vld [vmem:[%s899 + $0x61] sm:$0xff]
      %v1009 = vld [vmem:[%s899 + $0x69] sm:$0xff]
      %v1010 = vld [vmem:[%s899 + $0x79] sm:$0xff]
      %v1011 = vld [vmem:[%s899 + $0x81] sm:$0xff]
      %v1012 = vld [vmem:[%s899 + $0x91] sm:$0xff]
      %v1013 = vld [vmem:[%s899 + $0x99] sm:$0xff]
      %v1014 = vld [vmem:[%s899 + $0xa9] sm:$0xff]
      %v1015 = vld [vmem:[%s899 + $0xb1] sm:$0xff]
      %v1016 = vld [vmem:[%s899 + $0xc1] sm:$0xff]
      %v1017 = vld [vmem:[%s899 + $0xc9] sm:$0xff]
      %v1018 = vld [vmem:[%s899 + $0xd9] sm:$0xff]
      %v1019 = vld [vmem:[%s899 + $0xe1] sm:$0xff]
      %v1020 = vld [vmem:[%s899 + $0xf1] sm:$0xff]
      %v1021 = vld [vmem:[%s899 + $0xf9] sm:$0xff]
      %v1022 = vld [vmem:[%s899 + $0x109] sm:$0xff]
      %v1023 = vld [vmem:[%s899 + $0x111] sm:$0xff]
      %v1024 = vld [vmem:[%s899 + $0x121] sm:$0xff]
      %v1025 = vld [vmem:[%s899 + $0x129] sm:$0xff]
      %v1026 = vld [vmem:[%s899 + $0x139] sm:$0xff]
      %v1027 = vld [vmem:[%s899 + $0x141] sm:$0xff]
      %v1028 = vld [vmem:[%s899 + $0x151] sm:$0xff]
      %v1029 = vld [vmem:[%s899 + $0x159] sm:$0xff]
      %v1030 = vld [vmem:[%s899 + $0x169] sm:$0xff]
      %v1031 = vld [vmem:[%s899 + $0x171] sm:$0xff]
      %v1032 = vlaneseq
      %v1033 = vshrl.u32 %v1032, 7
      %v1034 = vsub.s32 7, %v1033
      %v1035 = vrot.slane %v326, %v1034
      %v1036 = vmul.f32 %v1000, %v1035
      %v1037 = vmul.f32 %v1001, %v1035
      %v1038 = vmul.f32 %v1002, %v1035
      %v1039 = vmul.f32 %v1003, %v1035
      %v1040 = vmul.f32 %v1004, %v1035
      %v1041 = vmul.f32 %v1005, %v1035
      %v1042 = vmul.f32 %v1006, %v1035
      %v1043 = vmul.f32 %v1007, %v1035
      %v1044 = vmul.f32 %v1008, %v1035
      %v1045 = vmul.f32 %v1009, %v1035
      %v1046 = vmul.f32 %v1010, %v1035
      %v1047 = vmul.f32 %v1011, %v1035
      %v1048 = vmul.f32 %v1012, %v1035
      %v1049 = vmul.f32 %v1013, %v1035
      %v1050 = vmul.f32 %v1014, %v1035
      %v1051 = vmul.f32 %v1015, %v1035
      %v1052 = vmul.f32 %v1016, %v1035
      %v1053 = vmul.f32 %v1017, %v1035
      %v1054 = vmul.f32 %v1018, %v1035
      %v1055 = vmul.f32 %v1019, %v1035
      %v1056 = vmul.f32 %v1020, %v1035
      %v1057 = vmul.f32 %v1021, %v1035
      %v1058 = vmul.f32 %v1022, %v1035
      %v1059 = vmul.f32 %v1023, %v1035
      %v1060 = vmul.f32 %v1024, %v1035
      %v1061 = vmul.f32 %v1025, %v1035
      %v1062 = vmul.f32 %v1026, %v1035
      %v1063 = vmul.f32 %v1027, %v1035
      %v1064 = vmul.f32 %v1028, %v1035
      %v1065 = vmul.f32 %v1029, %v1035
      %v1066 = vmul.f32 %v1030, %v1035
      %v1067 = vmul.f32 %v1031, %v1035
      %v1068 = vadd.f32 %v968, %v1036
      %v1069 = vadd.f32 %v969, %v1037
      %v1070 = vadd.f32 %v970, %v1038
      %v1071 = vadd.f32 %v971, %v1039
      %v1072 = vadd.f32 %v972, %v1040
      %v1073 = vadd.f32 %v973, %v1041
      %v1074 = vadd.f32 %v974, %v1042
      %v1075 = vadd.f32 %v975, %v1043
      %v1076 = vadd.f32 %v976, %v1044
      %v1077 = vadd.f32 %v977, %v1045
      %v1078 = vadd.f32 %v978, %v1046
      %v1079 = vadd.f32 %v979, %v1047
      %v1080 = vadd.f32 %v980, %v1048
      %v1081 = vadd.f32 %v981, %v1049
      %v1082 = vadd.f32 %v982, %v1050
      %v1083 = vadd.f32 %v983, %v1051
      %v1084 = vadd.f32 %v984, %v1052
      %v1085 = vadd.f32 %v985, %v1053
      %v1086 = vadd.f32 %v986, %v1054
      %v1087 = vadd.f32 %v987, %v1055
      %v1088 = vadd.f32 %v988, %v1056
      %v1089 = vadd.f32 %v989, %v1057
      %v1090 = vadd.f32 %v990, %v1058
      %v1091 = vadd.f32 %v991, %v1059
      %v1092 = vadd.f32 %v992, %v1060
      %v1093 = vadd.f32 %v993, %v1061
      %v1094 = vadd.f32 %v994, %v1062
      %v1095 = vadd.f32 %v995, %v1063
      %v1096 = vadd.f32 %v996, %v1064
      %v1097 = vadd.f32 %v997, %v1065
      %v1098 = vadd.f32 %v998, %v1066
      %v1099 = vadd.f32 %v999, %v1067
      %v1100 = vld [vmem:[%s899 + $0x2] sm:$0xff]
      %v1101 = vld [vmem:[%s899 + $0xa] sm:$0xff]
      %v1102 = vld [vmem:[%s899 + $0x1a] sm:$0xff]
      %v1103 = vld [vmem:[%s899 + $0x22] sm:$0xff]
      %v1104 = vld [vmem:[%s899 + $0x32] sm:$0xff]
      %v1105 = vld [vmem:[%s899 + $0x3a] sm:$0xff]
      %v1106 = vld [vmem:[%s899 + $0x4a] sm:$0xff]
      %v1107 = vld [vmem:[%s899 + $0x52] sm:$0xff]
      %v1108 = vld [vmem:[%s899 + $0x62] sm:$0xff]
      %v1109 = vld [vmem:[%s899 + $0x6a] sm:$0xff]
      %v1110 = vld [vmem:[%s899 + $0x7a] sm:$0xff]
      %v1111 = vld [vmem:[%s899 + $0x82] sm:$0xff]
      %v1112 = vld [vmem:[%s899 + $0x92] sm:$0xff]
      %v1113 = vld [vmem:[%s899 + $0x9a] sm:$0xff]
      %v1114 = vld [vmem:[%s899 + $0xaa] sm:$0xff]
      %v1115 = vld [vmem:[%s899 + $0xb2] sm:$0xff]
      %v1116 = vld [vmem:[%s899 + $0xc2] sm:$0xff]
      %v1117 = vld [vmem:[%s899 + $0xca] sm:$0xff]
      %v1118 = vld [vmem:[%s899 + $0xda] sm:$0xff]
      %v1119 = vld [vmem:[%s899 + $0xe2] sm:$0xff]
      %v1120 = vld [vmem:[%s899 + $0xf2] sm:$0xff]
      %v1121 = vld [vmem:[%s899 + $0xfa] sm:$0xff]
      %v1122 = vld [vmem:[%s899 + $0x10a] sm:$0xff]
      %v1123 = vld [vmem:[%s899 + $0x112] sm:$0xff]
      %v1124 = vld [vmem:[%s899 + $0x122] sm:$0xff]
      %v1125 = vld [vmem:[%s899 + $0x12a] sm:$0xff]
      %v1126 = vld [vmem:[%s899 + $0x13a] sm:$0xff]
      %v1127 = vld [vmem:[%s899 + $0x142] sm:$0xff]
      %v1128 = vld [vmem:[%s899 + $0x152] sm:$0xff]
      %v1129 = vld [vmem:[%s899 + $0x15a] sm:$0xff]
      %v1130 = vld [vmem:[%s899 + $0x16a] sm:$0xff]
      %v1131 = vld [vmem:[%s899 + $0x172] sm:$0xff]
      %v1132 = vlaneseq
      %v1133 = vshrl.u32 %v1132, 7
      %v1134 = vsub.s32 0, %v1133
      %v1135 = vrot.slane %v327, %v1134
      %v1136 = vmul.f32 %v1100, %v1135
      %v1137 = vmul.f32 %v1101, %v1135
      %v1138 = vmul.f32 %v1102, %v1135
      %v1139 = vmul.f32 %v1103, %v1135
      %v1140 = vmul.f32 %v1104, %v1135
      %v1141 = vmul.f32 %v1105, %v1135
      %v1142 = vmul.f32 %v1106, %v1135
      %v1143 = vmul.f32 %v1107, %v1135
      %v1144 = vmul.f32 %v1108, %v1135
      %v1145 = vmul.f32 %v1109, %v1135
      %v1146 = vmul.f32 %v1110, %v1135
      %v1147 = vmul.f32 %v1111, %v1135
      %v1148 = vmul.f32 %v1112, %v1135
      %v1149 = vmul.f32 %v1113, %v1135
      %v1150 = vmul.f32 %v1114, %v1135
      %v1151 = vmul.f32 %v1115, %v1135
      %v1152 = vmul.f32 %v1116, %v1135
      %v1153 = vmul.f32 %v1117, %v1135
      %v1154 = vmul.f32 %v1118, %v1135
      %v1155 = vmul.f32 %v1119, %v1135
      %v1156 = vmul.f32 %v1120, %v1135
      %v1157 = vmul.f32 %v1121, %v1135
      %v1158 = vmul.f32 %v1122, %v1135
      %v1159 = vmul.f32 %v1123, %v1135
      %v1160 = vmul.f32 %v1124, %v1135
      %v1161 = vmul.f32 %v1125, %v1135
      %v1162 = vmul.f32 %v1126, %v1135
      %v1163 = vmul.f32 %v1127, %v1135
      %v1164 = vmul.f32 %v1128, %v1135
      %v1165 = vmul.f32 %v1129, %v1135
      %v1166 = vmul.f32 %v1130, %v1135
      %v1167 = vmul.f32 %v1131, %v1135
      %v1168 = vadd.f32 %v1068, %v1136
      %v1169 = vadd.f32 %v1069, %v1137
      %v1170 = vadd.f32 %v1070, %v1138
      %v1171 = vadd.f32 %v1071, %v1139
      %v1172 = vadd.f32 %v1072, %v1140
      %v1173 = vadd.f32 %v1073, %v1141
      %v1174 = vadd.f32 %v1074, %v1142
      %v1175 = vadd.f32 %v1075, %v1143
      %v1176 = vadd.f32 %v1076, %v1144
      %v1177 = vadd.f32 %v1077, %v1145
      %v1178 = vadd.f32 %v1078, %v1146
      %v1179 = vadd.f32 %v1079, %v1147
      %v1180 = vadd.f32 %v1080, %v1148
      %v1181 = vadd.f32 %v1081, %v1149
      %v1182 = vadd.f32 %v1082, %v1150
      %v1183 = vadd.f32 %v1083, %v1151
      %v1184 = vadd.f32 %v1084, %v1152
      %v1185 = vadd.f32 %v1085, %v1153
      %v1186 = vadd.f32 %v1086, %v1154
      %v1187 = vadd.f32 %v1087, %v1155
      %v1188 = vadd.f32 %v1088, %v1156
      %v1189 = vadd.f32 %v1089, %v1157
      %v1190 = vadd.f32 %v1090, %v1158
      %v1191 = vadd.f32 %v1091, %v1159
      %v1192 = vadd.f32 %v1092, %v1160
      %v1193 = vadd.f32 %v1093, %v1161
      %v1194 = vadd.f32 %v1094, %v1162
      %v1195 = vadd.f32 %v1095, %v1163
      %v1196 = vadd.f32 %v1096, %v1164
      %v1197 = vadd.f32 %v1097, %v1165
      %v1198 = vadd.f32 %v1098, %v1166
      %v1199 = vadd.f32 %v1099, %v1167
      %v1201 = vlaneseq
      %v1202 = vshrl.u32 %v1201, 7
      %v1203 = vsub.s32 0, %v1202
      %v1204 = vrot.slane %v328, %v1203
      %v1206 = vmul.f32 %v1168, %v1204
      %v1207 = vmul.f32 %v1169, %v1204
      %v1208 = vmul.f32 %v1170, %v1204
      %v1209 = vmul.f32 %v1171, %v1204
      %v1210 = vmul.f32 %v1172, %v1204
      %v1211 = vmul.f32 %v1173, %v1204
      %v1212 = vmul.f32 %v1174, %v1204
      %v1213 = vmul.f32 %v1175, %v1204
      %v1214 = vmul.f32 %v1176, %v1204
      %v1215 = vmul.f32 %v1177, %v1204
      %v1216 = vmul.f32 %v1178, %v1204
      %v1217 = vmul.f32 %v1179, %v1204
      %v1218 = vmul.f32 %v1180, %v1204
      %v1219 = vmul.f32 %v1181, %v1204
      %v1220 = vmul.f32 %v1182, %v1204
      %v1221 = vmul.f32 %v1183, %v1204
      %v1222 = vmul.f32 %v1184, %v1204
      %v1223 = vmul.f32 %v1185, %v1204
      %v1224 = vmul.f32 %v1186, %v1204
      %v1225 = vmul.f32 %v1187, %v1204
      %v1226 = vmul.f32 %v1188, %v1204
      %v1227 = vmul.f32 %v1189, %v1204
      %v1228 = vmul.f32 %v1190, %v1204
      %v1229 = vmul.f32 %v1191, %v1204
      %v1230 = vmul.f32 %v1192, %v1204
      %v1231 = vmul.f32 %v1193, %v1204
      %v1232 = vmul.f32 %v1194, %v1204
      %v1233 = vmul.f32 %v1195, %v1204
      %v1234 = vmul.f32 %v1196, %v1204
      %v1235 = vmul.f32 %v1197, %v1204
      %v1236 = vmul.f32 %v1198, %v1204
      %v1237 = vmul.f32 %v1199, %v1204
      %v1239 = vlaneseq
      %v1240 = vshrl.u32 %v1239, 7
      %v1241 = vsub.s32 0, %v1240
      %v1242 = vrot.slane %v329, %v1241
      %v1244 = vadd.f32 %v1206, %v1242
      %v1245 = vadd.f32 %v1207, %v1242
      %v1246 = vadd.f32 %v1208, %v1242
      %v1247 = vadd.f32 %v1209, %v1242
      %v1248 = vadd.f32 %v1210, %v1242
      %v1249 = vadd.f32 %v1211, %v1242
      %v1250 = vadd.f32 %v1212, %v1242
      %v1251 = vadd.f32 %v1213, %v1242
      %v1252 = vadd.f32 %v1214, %v1242
      %v1253 = vadd.f32 %v1215, %v1242
      %v1254 = vadd.f32 %v1216, %v1242
      %v1255 = vadd.f32 %v1217, %v1242
      %v1256 = vadd.f32 %v1218, %v1242
      %v1257 = vadd.f32 %v1219, %v1242
      %v1258 = vadd.f32 %v1220, %v1242
      %v1259 = vadd.f32 %v1221, %v1242
      %v1260 = vadd.f32 %v1222, %v1242
      %v1261 = vadd.f32 %v1223, %v1242
      %v1262 = vadd.f32 %v1224, %v1242
      %v1263 = vadd.f32 %v1225, %v1242
      %v1264 = vadd.f32 %v1226, %v1242
      %v1265 = vadd.f32 %v1227, %v1242
      %v1266 = vadd.f32 %v1228, %v1242
      %v1267 = vadd.f32 %v1229, %v1242
      %v1268 = vadd.f32 %v1230, %v1242
      %v1269 = vadd.f32 %v1231, %v1242
      %v1270 = vadd.f32 %v1232, %v1242
      %v1271 = vadd.f32 %v1233, %v1242
      %v1272 = vadd.f32 %v1234, %v1242
      %v1273 = vadd.f32 %v1235, %v1242
      %v1274 = vadd.f32 %v1236, %v1242
      %v1275 = vadd.f32 %v1237, %v1242
      %v1276 = vmax.f32 %v1244, 0.0
      %v1277 = vmax.f32 %v1245, 0.0
      %v1278 = vmax.f32 %v1246, 0.0
      %v1279 = vmax.f32 %v1247, 0.0
      %v1280 = vmax.f32 %v1248, 0.0
      %v1281 = vmax.f32 %v1249, 0.0
      %v1282 = vmax.f32 %v1250, 0.0
      %v1283 = vmax.f32 %v1251, 0.0
      %v1284 = vmax.f32 %v1252, 0.0
      %v1285 = vmax.f32 %v1253, 0.0
      %v1286 = vmax.f32 %v1254, 0.0
      %v1287 = vmax.f32 %v1255, 0.0
      %v1288 = vmax.f32 %v1256, 0.0
      %v1289 = vmax.f32 %v1257, 0.0
      %v1290 = vmax.f32 %v1258, 0.0
      %v1291 = vmax.f32 %v1259, 0.0
      %v1292 = vmax.f32 %v1260, 0.0
      %v1293 = vmax.f32 %v1261, 0.0
      %v1294 = vmax.f32 %v1262, 0.0
      %v1295 = vmax.f32 %v1263, 0.0
      %v1296 = vmax.f32 %v1264, 0.0
      %v1297 = vmax.f32 %v1265, 0.0
      %v1298 = vmax.f32 %v1266, 0.0
      %v1299 = vmax.f32 %v1267, 0.0
      %v1300 = vmax.f32 %v1268, 0.0
      %v1301 = vmax.f32 %v1269, 0.0
      %v1302 = vmax.f32 %v1270, 0.0
      %v1303 = vmax.f32 %v1271, 0.0
      %v1304 = vmax.f32 %v1272, 0.0
      %v1305 = vmax.f32 %v1273, 0.0
      %v1306 = vmax.f32 %v1274, 0.0
      %v1307 = vmax.f32 %v1275, 0.0
      %v1308 = vld [vmem:[%s4] sm:$0xff]
      %v1309 = vld [vmem:[%s4 + $0x8] sm:$0xff]
      %v1310 = vld [vmem:[%s4 + $0x10] sm:$0xff]
      %v1311 = vld [vmem:[%s4 + $0x18] sm:$0xff]
      %v1312 = vld [vmem:[%s4 + $0x20] sm:$0xff]
      %v1313 = vld [vmem:[%s4 + $0x28] sm:$0xff]
      %v1314 = vld [vmem:[%s4 + $0x30] sm:$0xff]
      %v1315 = vld [vmem:[%s4 + $0x38] sm:$0xff]
      %v1316 = vld [vmem:[%s4 + $0x40] sm:$0xff]
      %v1317 = vld [vmem:[%s4 + $0x48] sm:$0xff]
      %v1318 = vld [vmem:[%s4 + $0x50] sm:$0xff]
      %v1319 = vld [vmem:[%s4 + $0x58] sm:$0xff]
      %v1320 = vld [vmem:[%s4 + $0x60] sm:$0xff]
      %v1321 = vld [vmem:[%s4 + $0x68] sm:$0xff]
      %v1322 = vld [vmem:[%s4 + $0x70] sm:$0xff]
      %v1323 = vld [vmem:[%s4 + $0x78] sm:$0xff]
      %1324 = vmatprep.subr.mxu0 0.0
      %1325 = vmatpush1.msra.mxu0 %v1308
      %1326 = vmatprep.subr.mxu0 0.0
      %1327 = vmatpush1.msra.mxu0 %v1309
      %1328 = vmatprep.subr.mxu0 0.0
      %1329 = vmatpush1.msra.mxu0 %v1310
      %1330 = vmatprep.subr.mxu0 0.0
      %1331 = vmatpush1.msra.mxu0 %v1311
      %1332 = vmatprep.subr.mxu0 0.0
      %1333 = vmatpush1.msra.mxu0 %v1312
      %1334 = vmatprep.subr.mxu0 0.0
      %1335 = vmatpush1.msra.mxu0 %v1313
      %1336 = vmatprep.subr.mxu0 0.0
      %1337 = vmatpush1.msra.mxu0 %v1314
      %1338 = vmatprep.subr.mxu0 0.0
      %1339 = vmatpush1.msra.mxu0 %v1315
      %1340 = vmatprep.subr.mxu0 0.0
      %1341 = vmatpush1.msra.mxu0 %v1316
      %1342 = vmatprep.subr.mxu0 0.0
      %1343 = vmatpush1.msra.mxu0 %v1317
      %1344 = vmatprep.subr.mxu0 0.0
      %1345 = vmatpush1.msra.mxu0 %v1318
      %1346 = vmatprep.subr.mxu0 0.0
      %1347 = vmatpush1.msra.mxu0 %v1319
      %1348 = vmatprep.subr.mxu0 0.0
      %1349 = vmatpush1.msra.mxu0 %v1320
      %1350 = vmatprep.subr.mxu0 0.0
      %1351 = vmatpush1.msra.mxu0 %v1321
      %1352 = vmatprep.subr.mxu0 0.0
      %1353 = vmatpush1.msra.mxu0 %v1322
      %1354 = vmatprep.subr.mxu0 0.0
      %1355 = vmatpush1.msra.mxu0 %v1323
      %1356 = vmatprep.subr.mxu0 0.0
      %1357 = vmatpush1.msra.mxu0 0.0
      %1358 = vmatprep.subr.mxu0 0.0
      %1359 = vmatpush1.msra.mxu0 0.0
      %1360 = vmatprep.subr.mxu0 0.0
      %1361 = vmatpush1.msra.mxu0 0.0
      %1362 = vmatprep.subr.mxu0 0.0
      %1363 = vmatpush1.msra.mxu0 0.0
      %1364 = vmatprep.subr.mxu0 0.0
      %1365 = vmatpush1.msra.mxu0 0.0
      %1366 = vmatprep.subr.mxu0 0.0
      %1367 = vmatpush1.msra.mxu0 0.0
      %1368 = vmatprep.subr.mxu0 0.0
      %1369 = vmatpush1.msra.mxu0 0.0
      %1370 = vmatprep.subr.mxu0 0.0
      %1371 = vmatpush1.msra.mxu0 0.0
      %1372 = vmatprep.subr.mxu0 0.0
      %1373 = vmatpush1.msra.mxu0 0.0
      %1374 = vmatprep.subr.mxu0 0.0
      %1375 = vmatpush1.msra.mxu0 0.0
      %1376 = vmatprep.subr.mxu0 0.0
      %1377 = vmatpush1.msra.mxu0 0.0
      %1378 = vmatprep.subr.mxu0 0.0
      %1379 = vmatpush1.msra.mxu0 0.0
      %1380 = vmatprep.subr.mxu0 0.0
      %1381 = vmatpush1.msra.mxu0 0.0
      %1382 = vmatprep.subr.mxu0 0.0
      %1383 = vmatpush1.msra.mxu0 0.0
      %1384 = vmatprep.subr.mxu0 0.0
      %1385 = vmatpush1.msra.mxu0 0.0
      %1386 = vmatprep.subr.mxu0 0.0
      %1387 = vmatpush1.msra.mxu0 0.0
      %1388 = vmatprep.mubr.f32.mxu0 0.0
      %1389 = vmatmul.mubr.f32.gmra.mrb[0].mxu0 %v1276
      %v1390 = vpop.f32.mrb[0].mxu0
      %v1391 = vadd.f32 0.0, %v1390
      %v1392 = vpop.f32.mrb[0].mxu0
      %1393 = vmatprep.mubr.f32.mxu0 0.0
      %1394 = vmatmul.mubr.f32.gmra.mrb[0].mxu0 %v1277
      %v1395 = vpop.f32.mrb[0].mxu0
      %v1396 = vadd.f32 0.0, %v1395
      %v1397 = vpop.f32.mrb[0].mxu0
      %1398 = vmatprep.mubr.f32.mxu0 0.0
      %1399 = vmatmul.mubr.f32.gmra.mrb[0].mxu0 %v1278
      %v1400 = vpop.f32.mrb[0].mxu0
      %v1401 = vadd.f32 0.0, %v1400
      %v1402 = vpop.f32.mrb[0].mxu0
      %1403 = vmatprep.mubr.f32.mxu0 0.0
      %1404 = vmatmul.mubr.f32.gmra.mrb[0].mxu0 %v1279
      %v1405 = vpop.f32.mrb[0].mxu0
      %v1406 = vadd.f32 0.0, %v1405
      %v1407 = vpop.f32.mrb[0].mxu0
      %1408 = vmatprep.mubr.f32.mxu0 0.0
      %1409 = vmatmul.mubr.f32.gmra.mrb[0].mxu0 %v1280
      %v1410 = vpop.f32.mrb[0].mxu0
      %v1411 = vadd.f32 0.0, %v1410
      %v1412 = vpop.f32.mrb[0].mxu0
      %1413 = vmatprep.mubr.f32.mxu0 0.0
      %1414 = vmatmul.mubr.f32.gmra.mrb[0].mxu0 %v1281
      %v1415 = vpop.f32.mrb[0].mxu0
      %v1416 = vadd.f32 0.0, %v1415
      %v1417 = vpop.f32.mrb[0].mxu0
      %1418 = vmatprep.mubr.f32.mxu0 0.0
      %1419 = vmatmul.mubr.f32.gmra.mrb[0].mxu0 %v1282
      %v1420 = vpop.f32.mrb[0].mxu0
      %v1421 = vadd.f32 0.0, %v1420
      %v1422 = vpop.f32.mrb[0].mxu0
      %1423 = vmatprep.mubr.f32.mxu0 0.0
      %1424 = vmatmul.mubr.f32.gmra.mrb[0].mxu0 %v1283
      %v1425 = vpop.f32.mrb[0].mxu0
      %v1426 = vadd.f32 0.0, %v1425
      %v1427 = vpop.f32.mrb[0].mxu0
      %1428 = vmatprep.mubr.f32.mxu0 0.0
      %1429 = vmatmul.mubr.f32.gmra.mrb[0].mxu0 %v1284
      %v1430 = vpop.f32.mrb[0].mxu0
      %v1431 = vadd.f32 0.0, %v1430
      %v1432 = vpop.f32.mrb[0].mxu0
      %1433 = vmatprep.mubr.f32.mxu0 0.0
      %1434 = vmatmul.mubr.f32.gmra.mrb[0].mxu0 %v1285
      %v1435 = vpop.f32.mrb[0].mxu0
      %v1436 = vadd.f32 0.0, %v1435
      %v1437 = vpop.f32.mrb[0].mxu0
      %1438 = vmatprep.mubr.f32.mxu0 0.0
      %1439 = vmatmul.mubr.f32.gmra.mrb[0].mxu0 %v1286
      %v1440 = vpop.f32.mrb[0].mxu0
      %v1441 = vadd.f32 0.0, %v1440
      %v1442 = vpop.f32.mrb[0].mxu0
      %1443 = vmatprep.mubr.f32.mxu0 0.0
      %1444 = vmatmul.mubr.f32.gmra.mrb[0].mxu0 %v1287
      %v1445 = vpop.f32.mrb[0].mxu0
      %v1446 = vadd.f32 0.0, %v1445
      %v1447 = vpop.f32.mrb[0].mxu0
      %1448 = vmatprep.mubr.f32.mxu0 0.0
      %1449 = vmatmul.mubr.f32.gmra.mrb[0].mxu0 %v1288
      %v1450 = vpop.f32.mrb[0].mxu0
      %v1451 = vadd.f32 0.0, %v1450
      %v1452 = vpop.f32.mrb[0].mxu0
      %1453 = vmatprep.mubr.f32.mxu0 0.0
      %1454 = vmatmul.mubr.f32.gmra.mrb[0].mxu0 %v1289
      %v1455 = vpop.f32.mrb[0].mxu0
      %v1456 = vadd.f32 0.0, %v1455
      %v1457 = vpop.f32.mrb[0].mxu0
      %1458 = vmatprep.mubr.f32.mxu0 0.0
      %1459 = vmatmul.mubr.f32.gmra.mrb[0].mxu0 %v1290
      %v1460 = vpop.f32.mrb[0].mxu0
      %v1461 = vadd.f32 0.0, %v1460
      %v1462 = vpop.f32.mrb[0].mxu0
      %1463 = vmatprep.mubr.f32.mxu0 0.0
      %1464 = vmatmul.mubr.f32.gmra.mrb[0].mxu0 %v1291
      %v1465 = vpop.f32.mrb[0].mxu0
      %v1466 = vadd.f32 0.0, %v1465
      %v1467 = vpop.f32.mrb[0].mxu0
      %1468 = vmatprep.mubr.f32.mxu0 0.0
      %1469 = vmatmul.mubr.f32.gmra.mrb[0].mxu0 %v1292
      %v1470 = vpop.f32.mrb[0].mxu0
      %v1471 = vadd.f32 0.0, %v1470
      %v1472 = vpop.f32.mrb[0].mxu0
      %1473 = vmatprep.mubr.f32.mxu0 0.0
      %1474 = vmatmul.mubr.f32.gmra.mrb[0].mxu0 %v1293
      %v1475 = vpop.f32.mrb[0].mxu0
      %v1476 = vadd.f32 0.0, %v1475
      %v1477 = vpop.f32.mrb[0].mxu0
      %1478 = vmatprep.mubr.f32.mxu0 0.0
      %1479 = vmatmul.mubr.f32.gmra.mrb[0].mxu0 %v1294
      %v1480 = vpop.f32.mrb[0].mxu0
      %v1481 = vadd.f32 0.0, %v1480
      %v1482 = vpop.f32.mrb[0].mxu0
      %1483 = vmatprep.mubr.f32.mxu0 0.0
      %1484 = vmatmul.mubr.f32.gmra.mrb[0].mxu0 %v1295
      %v1485 = vpop.f32.mrb[0].mxu0
      %v1486 = vadd.f32 0.0, %v1485
      %v1487 = vpop.f32.mrb[0].mxu0
      %1488 = vmatprep.mubr.f32.mxu0 0.0
      %1489 = vmatmul.mubr.f32.gmra.mrb[0].mxu0 %v1296
      %v1490 = vpop.f32.mrb[0].mxu0
      %v1491 = vadd.f32 0.0, %v1490
      %v1492 = vpop.f32.mrb[0].mxu0
      %1493 = vmatprep.mubr.f32.mxu0 0.0
      %1494 = vmatmul.mubr.f32.gmra.mrb[0].mxu0 %v1297
      %v1495 = vpop.f32.mrb[0].mxu0
      %v1496 = vadd.f32 0.0, %v1495
      %v1497 = vpop.f32.mrb[0].mxu0
      %1498 = vmatprep.mubr.f32.mxu0 0.0
      %1499 = vmatmul.mubr.f32.gmra.mrb[0].mxu0 %v1298
      %v1500 = vpop.f32.mrb[0].mxu0
      %v1501 = vadd.f32 0.0, %v1500
      %v1502 = vpop.f32.mrb[0].mxu0
      %1503 = vmatprep.mubr.f32.mxu0 0.0
      %1504 = vmatmul.mubr.f32.gmra.mrb[0].mxu0 %v1299
      %v1505 = vpop.f32.mrb[0].mxu0
      %v1506 = vadd.f32 0.0, %v1505
      %v1507 = vpop.f32.mrb[0].mxu0
      %1508 = vmatprep.mubr.f32.mxu0 0.0
      %1509 = vmatmul.mubr.f32.gmra.mrb[0].mxu0 %v1300
      %v1510 = vpop.f32.mrb[0].mxu0
      %v1511 = vadd.f32 0.0, %v1510
      %v1512 = vpop.f32.mrb[0].mxu0
      %1513 = vmatprep.mubr.f32.mxu0 0.0
      %1514 = vmatmul.mubr.f32.gmra.mrb[0].mxu0 %v1301
      %v1515 = vpop.f32.mrb[0].mxu0
      %v1516 = vadd.f32 0.0, %v1515
      %v1517 = vpop.f32.mrb[0].mxu0
      %1518 = vmatprep.mubr.f32.mxu0 0.0
      %1519 = vmatmul.mubr.f32.gmra.mrb[0].mxu0 %v1302
      %v1520 = vpop.f32.mrb[0].mxu0
      %v1521 = vadd.f32 0.0, %v1520
      %v1522 = vpop.f32.mrb[0].mxu0
      %1523 = vmatprep.mubr.f32.mxu0 0.0
      %1524 = vmatmul.mubr.f32.gmra.mrb[0].mxu0 %v1303
      %v1525 = vpop.f32.mrb[0].mxu0
      %v1526 = vadd.f32 0.0, %v1525
      %v1527 = vpop.f32.mrb[0].mxu0
      %1528 = vmatprep.mubr.f32.mxu0 0.0
      %1529 = vmatmul.mubr.f32.gmra.mrb[0].mxu0 %v1304
      %v1530 = vpop.f32.mrb[0].mxu0
      %v1531 = vadd.f32 0.0, %v1530
      %v1532 = vpop.f32.mrb[0].mxu0
      %1533 = vmatprep.mubr.f32.mxu0 0.0
      %1534 = vmatmul.mubr.f32.gmra.mrb[0].mxu0 %v1305
      %v1535 = vpop.f32.mrb[0].mxu0
      %v1536 = vadd.f32 0.0, %v1535
      %v1537 = vpop.f32.mrb[0].mxu0
      %1538 = vmatprep.mubr.f32.mxu0 0.0
      %1539 = vmatmul.mubr.f32.gmra.mrb[0].mxu0 %v1306
      %v1540 = vpop.f32.mrb[0].mxu0
      %v1541 = vadd.f32 0.0, %v1540
      %v1542 = vpop.f32.mrb[0].mxu0
      %1543 = vmatprep.mubr.f32.mxu0 0.0
      %1544 = vmatmul.mubr.f32.gmra.mrb[0].mxu0 %v1307
      %v1545 = vpop.f32.mrb[0].mxu0
      %v1546 = vadd.f32 0.0, %v1545
      %v1547 = vpop.f32.mrb[0].mxu0
      %1548 = vdwg.mxu0
      %v1549 = vld [vmem:[%s5] sm:$0x1]
      %v1551 = vlaneseq
      %v1552 = vshrl.u32 %v1551, 7
      %v1553 = vsub.s32 0, %v1552
      %v1554 = vrot.slane %v1549, %v1553
      %v1556 = vmul.f32 %v1391, %v1554
      %v1557 = vmul.f32 %v1396, %v1554
      %v1558 = vmul.f32 %v1401, %v1554
      %v1559 = vmul.f32 %v1406, %v1554
      %v1560 = vmul.f32 %v1411, %v1554
      %v1561 = vmul.f32 %v1416, %v1554
      %v1562 = vmul.f32 %v1421, %v1554
      %v1563 = vmul.f32 %v1426, %v1554
      %v1564 = vmul.f32 %v1431, %v1554
      %v1565 = vmul.f32 %v1436, %v1554
      %v1566 = vmul.f32 %v1441, %v1554
      %v1567 = vmul.f32 %v1446, %v1554
      %v1568 = vmul.f32 %v1451, %v1554
      %v1569 = vmul.f32 %v1456, %v1554
      %v1570 = vmul.f32 %v1461, %v1554
      %v1571 = vmul.f32 %v1466, %v1554
      %v1572 = vmul.f32 %v1471, %v1554
      %v1573 = vmul.f32 %v1476, %v1554
      %v1574 = vmul.f32 %v1481, %v1554
      %v1575 = vmul.f32 %v1486, %v1554
      %v1576 = vmul.f32 %v1491, %v1554
      %v1577 = vmul.f32 %v1496, %v1554
      %v1578 = vmul.f32 %v1501, %v1554
      %v1579 = vmul.f32 %v1506, %v1554
      %v1580 = vmul.f32 %v1511, %v1554
      %v1581 = vmul.f32 %v1516, %v1554
      %v1582 = vmul.f32 %v1521, %v1554
      %v1583 = vmul.f32 %v1526, %v1554
      %v1584 = vmul.f32 %v1531, %v1554
      %v1585 = vmul.f32 %v1536, %v1554
      %v1586 = vmul.f32 %v1541, %v1554
      %v1587 = vmul.f32 %v1546, %v1554
      %v1588 = vld [vmem:[%s6] sm:$0x1]
      %v1590 = vlaneseq
      %v1591 = vshrl.u32 %v1590, 7
      %v1592 = vsub.s32 0, %v1591
      %v1593 = vrot.slane %v1588, %v1592
      %v1595 = vadd.f32 %v1556, %v1593
      %v1596 = vadd.f32 %v1557, %v1593
      %v1597 = vadd.f32 %v1558, %v1593
      %v1598 = vadd.f32 %v1559, %v1593
      %v1599 = vadd.f32 %v1560, %v1593
      %v1600 = vadd.f32 %v1561, %v1593
      %v1601 = vadd.f32 %v1562, %v1593
      %v1602 = vadd.f32 %v1563, %v1593
      %v1603 = vadd.f32 %v1564, %v1593
      %v1604 = vadd.f32 %v1565, %v1593
      %v1605 = vadd.f32 %v1566, %v1593
      %v1606 = vadd.f32 %v1567, %v1593
      %v1607 = vadd.f32 %v1568, %v1593
      %v1608 = vadd.f32 %v1569, %v1593
      %v1609 = vadd.f32 %v1570, %v1593
      %v1610 = vadd.f32 %v1571, %v1593
      %v1611 = vadd.f32 %v1572, %v1593
      %v1612 = vadd.f32 %v1573, %v1593
      %v1613 = vadd.f32 %v1574, %v1593
      %v1614 = vadd.f32 %v1575, %v1593
      %v1615 = vadd.f32 %v1576, %v1593
      %v1616 = vadd.f32 %v1577, %v1593
      %v1617 = vadd.f32 %v1578, %v1593
      %v1618 = vadd.f32 %v1579, %v1593
      %v1619 = vadd.f32 %v1580, %v1593
      %v1620 = vadd.f32 %v1581, %v1593
      %v1621 = vadd.f32 %v1582, %v1593
      %v1622 = vadd.f32 %v1583, %v1593
      %v1623 = vadd.f32 %v1584, %v1593
      %v1624 = vadd.f32 %v1585, %v1593
      %v1625 = vadd.f32 %v1586, %v1593
      %v1626 = vadd.f32 %v1587, %v1593
      %v1627 = vld [vmem:[%s320] sm:$0xff]
      %v1628 = vld [vmem:[%s320 + $0x8] sm:$0xff]
      %v1629 = vld [vmem:[%s320 + $0x10] sm:$0xff]
      %v1630 = vld [vmem:[%s320 + $0x18] sm:$0xff]
      %v1631 = vld [vmem:[%s320 + $0x20] sm:$0xff]
      %v1632 = vld [vmem:[%s320 + $0x28] sm:$0xff]
      %v1633 = vld [vmem:[%s320 + $0x30] sm:$0xff]
      %v1634 = vld [vmem:[%s320 + $0x38] sm:$0xff]
      %v1635 = vld [vmem:[%s320 + $0x40] sm:$0xff]
      %v1636 = vld [vmem:[%s320 + $0x48] sm:$0xff]
      %v1637 = vld [vmem:[%s320 + $0x50] sm:$0xff]
      %v1638 = vld [vmem:[%s320 + $0x58] sm:$0xff]
      %v1639 = vld [vmem:[%s320 + $0x60] sm:$0xff]
      %v1640 = vld [vmem:[%s320 + $0x68] sm:$0xff]
      %v1641 = vld [vmem:[%s320 + $0x70] sm:$0xff]
      %v1642 = vld [vmem:[%s320 + $0x78] sm:$0xff]
      %v1643 = vld [vmem:[%s320 + $0x80] sm:$0xff]
      %v1644 = vld [vmem:[%s320 + $0x88] sm:$0xff]
      %v1645 = vld [vmem:[%s320 + $0x90] sm:$0xff]
      %v1646 = vld [vmem:[%s320 + $0x98] sm:$0xff]
      %v1647 = vld [vmem:[%s320 + $0xa0] sm:$0xff]
      %v1648 = vld [vmem:[%s320 + $0xa8] sm:$0xff]
      %v1649 = vld [vmem:[%s320 + $0xb0] sm:$0xff]
      %v1650 = vld [vmem:[%s320 + $0xb8] sm:$0xff]
      %v1651 = vld [vmem:[%s320 + $0xc0] sm:$0xff]
      %v1652 = vld [vmem:[%s320 + $0xc8] sm:$0xff]
      %v1653 = vld [vmem:[%s320 + $0xd0] sm:$0xff]
      %v1654 = vld [vmem:[%s320 + $0xd8] sm:$0xff]
      %v1655 = vld [vmem:[%s320 + $0xe0] sm:$0xff]
      %v1656 = vld [vmem:[%s320 + $0xe8] sm:$0xff]
      %v1657 = vld [vmem:[%s320 + $0xf0] sm:$0xff]
      %v1658 = vld [vmem:[%s320 + $0xf8] sm:$0xff]
      %v1659 = vadd.f32 %v1595, %v1627
      %v1660 = vadd.f32 %v1596, %v1628
      %v1661 = vadd.f32 %v1597, %v1629
      %v1662 = vadd.f32 %v1598, %v1630
      %v1663 = vadd.f32 %v1599, %v1631
      %v1664 = vadd.f32 %v1600, %v1632
      %v1665 = vadd.f32 %v1601, %v1633
      %v1666 = vadd.f32 %v1602, %v1634
      %v1667 = vadd.f32 %v1603, %v1635
      %v1668 = vadd.f32 %v1604, %v1636
      %v1669 = vadd.f32 %v1605, %v1637
      %v1670 = vadd.f32 %v1606, %v1638
      %v1671 = vadd.f32 %v1607, %v1639
      %v1672 = vadd.f32 %v1608, %v1640
      %v1673 = vadd.f32 %v1609, %v1641
      %v1674 = vadd.f32 %v1610, %v1642
      %v1675 = vadd.f32 %v1611, %v1643
      %v1676 = vadd.f32 %v1612, %v1644
      %v1677 = vadd.f32 %v1613, %v1645
      %v1678 = vadd.f32 %v1614, %v1646
      %v1679 = vadd.f32 %v1615, %v1647
      %v1680 = vadd.f32 %v1616, %v1648
      %v1681 = vadd.f32 %v1617, %v1649
      %v1682 = vadd.f32 %v1618, %v1650
      %v1683 = vadd.f32 %v1619, %v1651
      %v1684 = vadd.f32 %v1620, %v1652
      %v1685 = vadd.f32 %v1621, %v1653
      %v1686 = vadd.f32 %v1622, %v1654
      %v1687 = vadd.f32 %v1623, %v1655
      %v1688 = vadd.f32 %v1624, %v1656
      %v1689 = vadd.f32 %v1625, %v1657
      %v1690 = vadd.f32 %v1626, %v1658
      %v1691 = vmax.f32 %v1659, 0.0
      %v1692 = vmax.f32 %v1660, 0.0
      %v1693 = vmax.f32 %v1661, 0.0
      %v1694 = vmax.f32 %v1662, 0.0
      %v1695 = vmax.f32 %v1663, 0.0
      %v1696 = vmax.f32 %v1664, 0.0
      %v1697 = vmax.f32 %v1665, 0.0
      %v1698 = vmax.f32 %v1666, 0.0
      %v1699 = vmax.f32 %v1667, 0.0
      %v1700 = vmax.f32 %v1668, 0.0
      %v1701 = vmax.f32 %v1669, 0.0
      %v1702 = vmax.f32 %v1670, 0.0
      %v1703 = vmax.f32 %v1671, 0.0
      %v1704 = vmax.f32 %v1672, 0.0
      %v1705 = vmax.f32 %v1673, 0.0
      %v1706 = vmax.f32 %v1674, 0.0
      %v1707 = vmax.f32 %v1675, 0.0
      %v1708 = vmax.f32 %v1676, 0.0
      %v1709 = vmax.f32 %v1677, 0.0
      %v1710 = vmax.f32 %v1678, 0.0
      %v1711 = vmax.f32 %v1679, 0.0
      %v1712 = vmax.f32 %v1680, 0.0
      %v1713 = vmax.f32 %v1681, 0.0
      %v1714 = vmax.f32 %v1682, 0.0
      %v1715 = vmax.f32 %v1683, 0.0
      %v1716 = vmax.f32 %v1684, 0.0
      %v1717 = vmax.f32 %v1685, 0.0
      %v1718 = vmax.f32 %v1686, 0.0
      %v1719 = vmax.f32 %v1687, 0.0
      %v1720 = vmax.f32 %v1688, 0.0
      %v1721 = vmax.f32 %v1689, 0.0
      %v1722 = vmax.f32 %v1690, 0.0
      %1723 = vst [vmem:[%s325] sm:$0xff] %v1691
      %1724 = vst [vmem:[%s325 + $0x8] sm:$0xff] %v1692
      %1725 = vst [vmem:[%s325 + $0x10] sm:$0xff] %v1693
      %1726 = vst [vmem:[%s325 + $0x18] sm:$0xff] %v1694
      %1727 = vst [vmem:[%s325 + $0x20] sm:$0xff] %v1695
      %1728 = vst [vmem:[%s325 + $0x28] sm:$0xff] %v1696
      %1729 = vst [vmem:[%s325 + $0x30] sm:$0xff] %v1697
      %1730 = vst [vmem:[%s325 + $0x38] sm:$0xff] %v1698
      %1731 = vst [vmem:[%s325 + $0x40] sm:$0xff] %v1699
      %1732 = vst [vmem:[%s325 + $0x48] sm:$0xff] %v1700
      %1733 = vst [vmem:[%s325 + $0x50] sm:$0xff] %v1701
      %1734 = vst [vmem:[%s325 + $0x58] sm:$0xff] %v1702
      %1735 = vst [vmem:[%s325 + $0x60] sm:$0xff] %v1703
      %1736 = vst [vmem:[%s325 + $0x68] sm:$0xff] %v1704
      %1737 = vst [vmem:[%s325 + $0x70] sm:$0xff] %v1705
      %1738 = vst [vmem:[%s325 + $0x78] sm:$0xff] %v1706
      %1739 = vst [vmem:[%s325 + $0x80] sm:$0xff] %v1707
      %1740 = vst [vmem:[%s325 + $0x88] sm:$0xff] %v1708
      %1741 = vst [vmem:[%s325 + $0x90] sm:$0xff] %v1709
      %1742 = vst [vmem:[%s325 + $0x98] sm:$0xff] %v1710
      %1743 = vst [vmem:[%s325 + $0xa0] sm:$0xff] %v1711
      %1744 = vst [vmem:[%s325 + $0xa8] sm:$0xff] %v1712
      %1745 = vst [vmem:[%s325 + $0xb0] sm:$0xff] %v1713
      %1746 = vst [vmem:[%s325 + $0xb8] sm:$0xff] %v1714
      %1747 = vst [vmem:[%s325 + $0xc0] sm:$0xff] %v1715
      %1748 = vst [vmem:[%s325 + $0xc8] sm:$0xff] %v1716
      %1749 = vst [vmem:[%s325 + $0xd0] sm:$0xff] %v1717
      %1750 = vst [vmem:[%s325 + $0xd8] sm:$0xff] %v1718
      %1751 = vst [vmem:[%s325 + $0xe0] sm:$0xff] %v1719
      %1752 = vst [vmem:[%s325 + $0xe8] sm:$0xff] %v1720
      %1753 = vst [vmem:[%s325 + $0xf0] sm:$0xff] %v1721
      %1754 = vst [vmem:[%s325 + $0xf8] sm:$0xff] %v1722
      %p1755 = scmp.lt.s32.totalorder %s19, 1
      %s1756 = scalar_select %p1755, %s19, 1
      %s1757 = smul.addr %s1756, 32
      %s1758 = smul.addr %s1757, 8
      %s1759 = scalar_lea.vmem %s8, %s1758
      // Predicated region
      $region53: #{bottleneck_forward.3} parent=51 // pred_check
        %p1760 = pneg %p215
      $region54: #{bottleneck_forward.3} parent=51 // pred_check_branch
        %1762 = sbr.rel (%p1760) target = $region56
      $region55: #{bottleneck_forward.3} parent=51 // pred_region
        _
      $region56: #{bottleneck_forward.3} parent=51 // pred_fallthru
        _
    $region52: #{bottleneck_forward.3} parent=5 // pred_fallthru
      _
    %p1763 = scmp.le.s32.totalorder 2, %s14
    // Predicated region
    $region57: #{bottleneck_forward.3} parent=5 // pred_check
      %p1764 = pneg %p1763
    $region58: #{bottleneck_forward.3} parent=5 // pred_check_branch
      %1766 = sbr.rel (%p1764) target = $region60
    $region59: #{bottleneck_forward.3} parent=5 // pred_region
      %s1767 = ssub.s32 %s14, 2
      // Predicated region
      $region61: #{bottleneck_forward.3} parent=59 // pred_check
        %p1768 = pneg %p221
      $region62: #{bottleneck_forward.3} parent=59 // pred_check_branch
        %1770 = sbr.rel (%p1768) target = $region64
      $region63: #{bottleneck_forward.3} parent=59 // pred_region
        %p1771 = scmp.lt.s32.totalorder %s20, 1
        %s1772 = scalar_select %p1771, %s20, 1
        %s1773 = smul.addr %s1772, 32
        %s1774 = smul.addr %s1773, 8
        %s1775 = scalar_lea.vmem %s8, %s1774
      $region64: #{bottleneck_forward.3} parent=59 // pred_fallthru
        _
    $region60: #{bottleneck_forward.3} parent=5 // pred_fallthru
      _
  $region6: #{bottleneck_forward.3} parent=0 // loop_footer
    %s18 = sadd.s32 1, %s14
  $region7: #{bottleneck_forward.3} parent=0 // loop_footer_branch
    %13 = sbr.rel target = $region3
  $region8: #{bottleneck_forward.3} parent=0 // loop_exit
    _

</llo_original>
